<compile_context>
chip_gen: v7x
topology: tpu7x:2x2x1
jax: 0.10.0
libtpu: 0.0.40
codegen_flags: <defaults>
</compile_context>

<pallas_src>
import functools

import jax
import jax.numpy as jnp
from jax import lax
from jax.experimental import pallas as pl
from jax.experimental.pallas import tpu as pltpu

# --- module hyper-parameters (from the PyTorch source) ---
N_EMBED = 384
NUM_HEADS = 6
HEAD_SIZE = N_EMBED // NUM_HEADS      # 64
BLOCK_SIZE = 256                      # max context


def _round_up(a, b):
    return (a + b - 1) // b * b


def _mha_kernel(x_ref, wq_ref, wkv_ref, wp_ref, bp_ref, o_ref,
                m_sc, l_sc, acc_sc, cat_sc, *, num_heads, head_size, tq, tk):
    """One (batch, query-tile) grid step of fused causal MHA + output projection.

    x_ref   : (1, Tp, C) bf16 — full (padded) sequence for this batch element
    wq_ref  : (C, C)   bf16 — fused per-head query weights (lane-dense)
    wkv_ref : (C, 2C)  bf16 — fused per-head [K | V] weights (lane-dense)
    wp_ref  : (C, C)   bf16 — output projection
    bp_ref  : (1, C)   f32  — output projection bias
    o_ref   : (1, tq, C)
    scratch : m/l (H, tq, 1) f32, acc (H, tq, hs) f32, cat (tq, C) bf16
    """
    H, hs = num_heads, head_size
    C = H * hs
    qi = pl.program_id(1)
    scale = head_size ** -0.5

    # --- Q projection for this query tile: one wide (tq,C)@(C,C) bf16 matmul ---
    q_start = pl.multiple_of(qi * tq, tq)
    x_q = x_ref[0, pl.ds(q_start, tq), :]                              # (tq, C) bf16
    q = jnp.dot(x_q, wq_ref[...], preferred_element_type=jnp.float32)
    q = (q * scale).astype(jnp.bfloat16)                               # scale folded in

    # --- init online-softmax running stats (VMEM scratch, per query tile) ---
    m_sc[...] = jnp.full_like(m_sc, -jnp.inf)
    l_sc[...] = jnp.zeros_like(l_sc)
    acc_sc[...] = jnp.zeros_like(acc_sc)

    row = qi * tq + lax.broadcasted_iota(jnp.int32, (tq, tk), 0)

    def kv_step(ki, carry):
        # KV projection for this KV tile: one wide (tk,C)@(C,2C) bf16 matmul.
        k_start = pl.multiple_of(ki * tk, tk)
        x_k = x_ref[0, pl.ds(k_start, tk), :]                          # (tk, C) bf16
        kv = jnp.dot(x_k, wkv_ref[...],
                     preferred_element_type=jnp.float32).astype(jnp.bfloat16)  # (tk, 2C)

        # Causal mask recomputed per KV tile (global positions); large finite
        # negative is NaN-safe for zero-padded rows.
        col = ki * tk + lax.broadcasted_iota(jnp.int32, (tq, tk), 1)
        causal = col <= row

        # Static unroll over 6 heads; per-head working set is a (tq, tk) tile and
        # all running state lives in VMEM scratch, so live ranges stay bounded.
        for h in range(H):
            lo = h * hs
            k_h = kv[:, lo:lo + hs]                                    # (tk, hs)
            v_h = kv[:, C + lo:C + lo + hs]                            # (tk, hs)

            # s = q_h @ k_h.T without materializing a transpose of k.
            s = lax.dot_general(
                q[:, lo:lo + hs], k_h,
                dimension_numbers=(((1,), (1,)), ((), ())),
                preferred_element_type=jnp.float32)                    # (tq, tk)
            s = jnp.where(causal, s, -1e30)

            m_prev = m_sc[h]
            m_new = jnp.maximum(m_prev, jnp.max(s, axis=-1, keepdims=True))
            alpha = jnp.exp(m_prev - m_new)
            p = jnp.exp(s - m_new)
            l_sc[h] = alpha * l_sc[h] + jnp.sum(p, axis=-1, keepdims=True)
            acc_sc[h] = alpha * acc_sc[h] + jnp.dot(
                p.astype(jnp.bfloat16), v_h, preferred_element_type=jnp.float32)
            m_sc[h] = m_new
        return carry

    # Only KV tiles at or below the diagonal block (skips upper triangle).
    lax.fori_loop(0, qi + 1, kv_step, 0)

    # --- concat normalized head outputs into a lane-dense (tq, C) bf16 tile ---
    for h in range(H):
        inv_l = pl.reciprocal(l_sc[h], approx=True)
        cat_sc[:, h * hs:(h + 1) * hs] = (acc_sc[h] * inv_l).astype(jnp.bfloat16)

    # --- single output-projection matmul: (tq,C)@(C,C), K=384 full MXU depth ---
    out = jnp.dot(cat_sc[...], wp_ref[...], preferred_element_type=jnp.float32)
    o_ref[0] = (out + bp_ref[...]).astype(o_ref.dtype)


def multi_head_attention(x, wq, wk, wv, w_proj, b_proj):
    """x: (B, T, C). wq/wk/wv: (H, C, hs). w_proj: (C, C). b_proj: (1, C)."""
    B, T, C = x.shape
    H, _, hs = wq.shape

    # Query/KV tile size: 128 for long sequences, otherwise the 8-aligned seq.
    tq = min(128, _round_up(T, 8))
    Tp = _round_up(T, tq)
    n_q = Tp // tq

    # Pre-cast activations to bf16 (halves x DMA) and zero-pad the sequence.
    # Zero-padded key rows are masked out by causality for all valid queries;
    # padded query rows are sliced off below.
    x_bf = x.astype(jnp.bfloat16)
    if Tp != T:
        x_bf = jnp.pad(x_bf, ((0, 0), (0, Tp - T), (0, 0)))

    # Lane-dense fused weights: (H, C, hs) -> (C, H*hs); Q separate (query tile
    # only), K|V fused (KV tiles), all bf16 for the MXU.
    def to_lane_dense(w):
        return jnp.transpose(w, (1, 0, 2)).reshape(C, H * hs)

    w_q = to_lane_dense(wq).astype(jnp.bfloat16)                       # (C, C)
    w_kv = jnp.concatenate([to_lane_dense(wk), to_lane_dense(wv)],
                           axis=-1).astype(jnp.bfloat16)               # (C, 2C)
    w_p = w_proj.astype(jnp.bfloat16)                                  # (C, C)
    b_p = b_proj.astype(jnp.float32)                                   # (1, C)

    kernel = functools.partial(_mha_kernel, num_heads=H, head_size=hs,
                               tq=tq, tk=tq)

    out = pl.pallas_call(
        kernel,
        out_shape=jax.ShapeDtypeStruct((B, Tp, C), x.dtype),
        grid_spec=pltpu.PrefetchScalarGridSpec(
            num_scalar_prefetch=0,
            grid=(B, n_q),
            in_specs=[
                pl.BlockSpec((1, Tp, C), lambda b, q: (b, 0, 0)),      # x (full seq/batch)
                pl.BlockSpec((C, C), lambda b, q: (0, 0)),             # Wq   (bf16)
                pl.BlockSpec((C, 2 * C), lambda b, q: (0, 0)),         # Wkv  (bf16)
                pl.BlockSpec((C, C), lambda b, q: (0, 0)),             # Wproj(bf16)
                pl.BlockSpec((1, C), lambda b, q: (0, 0)),             # bias (f32)
            ],
            out_specs=pl.BlockSpec((1, tq, C), lambda b, q: (b, q, 0)),
            scratch_shapes=[
                pltpu.VMEM((H, tq, 1), jnp.float32),    # running max
                pltpu.VMEM((H, tq, 1), jnp.float32),    # running sum
                pltpu.VMEM((H, tq, hs), jnp.float32),   # running per-head acc
                pltpu.VMEM((tq, C), jnp.bfloat16),      # concat-head scratch
            ],
        ),
        compiler_params=pltpu.CompilerParams(
            dimension_semantics=("parallel", "parallel"),
            vmem_limit_bytes=32 * 1024 * 1024),
    )(x_bf, w_q, w_kv, w_p, b_p)

    return out[:, :T, :] if Tp != T else out


def _reference(x, wq, wk, wv, w_proj, b_proj):
    """Plain-JAX f32 reference mirroring the PyTorch forward (eval mode)."""
    B, T, C = x.shape
    H, _, hs = wq.shape
    outs = []
    for h in range(H):
        q = x @ wq[h]
        k = x @ wk[h]
        v = x @ wv[h]
        w = (q @ jnp.swapaxes(k, -2, -1)) * (hs ** -0.5)
        mask = jnp.tril(jnp.ones((T, T), dtype=bool))
        w = jnp.where(mask[None], w, -jnp.inf)
        w = jax.nn.softmax(w, axis=-1)
        outs.append(w @ v)
    cat = jnp.concatenate(outs, axis=-1)
    return cat @ w_proj + b_proj[0]


if __name__ == "__main__":
    key = jax.random.PRNGKey(0)
    C, H, hs = N_EMBED, NUM_HEADS, HEAD_SIZE

    # Small shape plus the design point T = block_size (and a non-multiple-of-128
    # length to exercise the padding / masking path).
    for (B, T) in [(2, 8), (2, 200), (2, 256)]:
        kx, kq, kk, kv, kp, kb = jax.random.split(jax.random.fold_in(key, T), 6)
        x = jax.random.normal(kx, (B, T, C), dtype=jnp.float32)
        wq = jax.random.normal(kq, (H, C, hs), dtype=jnp.float32) * 0.02
        wk = jax.random.normal(kk, (H, C, hs), dtype=jnp.float32) * 0.02
        wv = jax.random.normal(kv, (H, C, hs), dtype=jnp.float32) * 0.02
        w_proj = jax.random.normal(kp, (C, C), dtype=jnp.float32) * 0.02
        b_proj = jax.random.normal(kb, (1, C), dtype=jnp.float32) * 0.02

        out = multi_head_attention(x, wq, wk, wv, w_proj, b_proj)
        out = jax.block_until_ready(out)

        ref = _reference(x, wq, wk, wv, w_proj, b_proj)
        assert out.shape == (B, T, C)
        err = float(jnp.max(jnp.abs(out - ref)))
        # bf16 MXU operands + approx reciprocal -> loosened tolerance vs f32 ref.
        assert jnp.allclose(out, ref, atol=5e-2, rtol=5e-2), (B, T, err)

    print("KERNEL_OK")
</pallas_src>

<mosaic_0001>
module attributes {stable_mosaic.version = 11 : i64} {
  func.func @_mha_kernel(%arg0: i32, %arg1: i32, %arg2: memref<1x8x384xbf16, #tpu.memory_space<vmem>>, %arg3: memref<384x384xbf16, #tpu.memory_space<vmem>>, %arg4: memref<384x768xbf16, #tpu.memory_space<vmem>>, %arg5: memref<384x384xbf16, #tpu.memory_space<vmem>>, %arg6: memref<1x384xf32, #tpu.memory_space<vmem>>, %arg7: memref<1x8x384xf32, #tpu.memory_space<vmem>>, %arg8: memref<6x8x1xf32, #tpu.memory_space<vmem>>, %arg9: memref<6x8x1xf32, #tpu.memory_space<vmem>>, %arg10: memref<6x8x64xf32, #tpu.memory_space<vmem>>, %arg11: memref<8x384xbf16, #tpu.memory_space<vmem>>) attributes {dimension_semantics = [#tpu.dimension_semantics<parallel>, #tpu.dimension_semantics<parallel>], iteration_bounds = array<i64: 2, 1>, scalar_prefetch = 0 : i64, scratch_operands = 4 : i64, tpu.core_type = #tpu.core_type<tc>, window_params = [{transform_indices = @transform_0, window_bounds = array<i64: 1, 8, 384>}, {pipeline_mode = #tpu.pipeline_mode<synchronous>, transform_indices = @transform_1, window_bounds = array<i64: 384, 384>}, {pipeline_mode = #tpu.pipeline_mode<synchronous>, transform_indices = @transform_2, window_bounds = array<i64: 384, 768>}, {pipeline_mode = #tpu.pipeline_mode<synchronous>, transform_indices = @transform_3, window_bounds = array<i64: 384, 384>}, {pipeline_mode = #tpu.pipeline_mode<synchronous>, transform_indices = @transform_4, window_bounds = array<i64: 1, 384>}, {transform_indices = @transform_5, window_bounds = array<i64: 1, 8, 384>}]} {
    %c8_i32 = arith.constant 8 : i32
    %0 = arith.muli %arg1, %c8_i32 : i32
    %1 = tpu.assume_multiple %0, 8 : i32
    %c0 = arith.constant 0 : index
    %2 = arith.index_cast %1 : i32 to index
    %c0_0 = arith.constant 0 : index
    %3 = vector.load %arg2[%c0, %2, %c0_0] : memref<1x8x384xbf16, #tpu.memory_space<vmem>>, vector<1x8x384xbf16>
    %4 = vector.shape_cast %3 : vector<1x8x384xbf16> to vector<8x384xbf16>
    %c0_1 = arith.constant 0 : index
    %c0_2 = arith.constant 0 : index
    %5 = vector.load %arg3[%c0_1, %c0_2] : memref<384x384xbf16, #tpu.memory_space<vmem>>, vector<384x384xbf16>
    %cst = arith.constant dense<0.000000e+00> : vector<8x384xf32>
    %6 = tpu.matmul %4, %5, %cst {dimension_numbers = #tpu.dot_dimension_numbers<[1], [0], [0], [1], [0, 0, 1, 1], [], []>} : vector<8x384xbf16>, vector<384x384xbf16>, vector<8x384xf32> -> vector<8x384xf32>
    %cst_3 = arith.constant 1.250000e-01 : f32
    %7 = vector.broadcast %cst_3 : f32 to vector<8x384xf32>
    %8 = arith.mulf %6, %7 : vector<8x384xf32>
    %9 = arith.truncf %8 : vector<8x384xf32> to vector<8x384xbf16>
    %cst_4 = arith.constant 0xFF800000 : f32
    %10 = vector.broadcast %cst_4 : f32 to vector<6x8x1xf32>
    %c0_5 = arith.constant 0 : index
    %c0_6 = arith.constant 0 : index
    %c0_7 = arith.constant 0 : index
    %11 = vector.load %arg8[%c0_5, %c0_6, %c0_7] : memref<6x8x1xf32, #tpu.memory_space<vmem>>, vector<6x8x1xf32>
    tpu.vector_store %arg8[%c0_5, %c0_6, %c0_7], %10 {strides = array<i32>} : memref<6x8x1xf32, #tpu.memory_space<vmem>>, vector<6x8x1xf32>,
    %cst_8 = arith.constant 0.000000e+00 : f32
    %12 = vector.broadcast %cst_8 : f32 to vector<6x8x1xf32>
    %c0_9 = arith.constant 0 : index
    %c0_10 = arith.constant 0 : index
    %c0_11 = arith.constant 0 : index
    %13 = vector.load %arg9[%c0_9, %c0_10, %c0_11] : memref<6x8x1xf32, #tpu.memory_space<vmem>>, vector<6x8x1xf32>
    tpu.vector_store %arg9[%c0_9, %c0_10, %c0_11], %12 {strides = array<i32>} : memref<6x8x1xf32, #tpu.memory_space<vmem>>, vector<6x8x1xf32>,
    %cst_12 = arith.constant 0.000000e+00 : f32
    %14 = vector.broadcast %cst_12 : f32 to vector<6x8x64xf32>
    %c0_13 = arith.constant 0 : index
    %c0_14 = arith.constant 0 : index
    %c0_15 = arith.constant 0 : index
    %15 = vector.load %arg10[%c0_13, %c0_14, %c0_15] : memref<6x8x64xf32, #tpu.memory_space<vmem>>, vector<6x8x64xf32>
    tpu.vector_store %arg10[%c0_13, %c0_14, %c0_15], %14 {strides = array<i32>} : memref<6x8x64xf32, #tpu.memory_space<vmem>>, vector<6x8x64xf32>,
    %c8_i32_16 = arith.constant 8 : i32
    %16 = arith.muli %arg1, %c8_i32_16 : i32
    %17 = tpu.iota {dimensions = array<i32: 0>} : vector<8x8xi32>
    %18 = vector.broadcast %16 : i32 to vector<8x8xi32>
    %19 = arith.addi %18, %17 : vector<8x8xi32>
    %c1_i32 = arith.constant 1 : i32
    %20 = arith.addi %arg1, %c1_i32 : i32
    %c0_i32 = arith.constant 0 : i32
    %c0_i32_17 = arith.constant 0 : i32
    %21 = arith.subi %20, %c0_i32_17 : i32
    %22 = arith.addi %c0_i32_17, %21 : i32
    %c1_i32_18 = arith.constant 1 : i32
    scf.for %arg12 = %c0_i32_17 to %22 step %c1_i32_18  : i32 {
      %c8_i32_67 = arith.constant 8 : i32
      %86 = arith.muli %arg12, %c8_i32_67 : i32
      %87 = tpu.assume_multiple %86, 8 : i32
      %c0_68 = arith.constant 0 : index
      %88 = arith.index_cast %87 : i32 to index
      %c0_69 = arith.constant 0 : index
      %89 = vector.load %arg2[%c0_68, %88, %c0_69] : memref<1x8x384xbf16, #tpu.memory_space<vmem>>, vector<1x8x384xbf16>
      %90 = vector.shape_cast %89 : vector<1x8x384xbf16> to vector<8x384xbf16>
      %c0_70 = arith.constant 0 : index
      %c0_71 = arith.constant 0 : index
      %91 = vector.load %arg4[%c0_70, %c0_71] : memref<384x768xbf16, #tpu.memory_space<vmem>>, vector<384x768xbf16>
      %cst_72 = arith.constant dense<0.000000e+00> : vector<8x768xf32>
      %92 = tpu.matmul %90, %91, %cst_72 {dimension_numbers = #tpu.dot_dimension_numbers<[1], [0], [0], [1], [0, 0, 1, 1], [], []>} : vector<8x384xbf16>, vector<384x768xbf16>, vector<8x768xf32> -> vector<8x768xf32>
      %93 = arith.truncf %92 : vector<8x768xf32> to vector<8x768xbf16>
      %c8_i32_73 = arith.constant 8 : i32
      %94 = arith.muli %arg12, %c8_i32_73 : i32
      %95 = tpu.iota {dimensions = array<i32: 1>} : vector<8x8xi32>
      %96 = vector.broadcast %94 : i32 to vector<8x8xi32>
      %97 = arith.addi %96, %95 : vector<8x8xi32>
      %98 = arith.cmpi sle, %97, %19 : vector<8x8xi32>
      %99 = vector.extract_strided_slice %93 {offsets = [0, 0], sizes = [8, 64], strides = [1, 1]} : vector<8x768xbf16> to vector<8x64xbf16>
      %100 = vector.extract_strided_slice %93 {offsets = [0, 384], sizes = [8, 64], strides = [1, 1]} : vector<8x768xbf16> to vector<8x64xbf16>
      %101 = vector.extract_strided_slice %9 {offsets = [0, 0], sizes = [8, 64], strides = [1, 1]} : vector<8x384xbf16> to vector<8x64xbf16>
      %cst_74 = arith.constant dense<0.000000e+00> : vector<8x8xf32>
      %102 = tpu.matmul %101, %99, %cst_74 {dimension_numbers = #tpu.dot_dimension_numbers<[1], [1], [0], [0], [0, 0, 1, 0], [], []>} : vector<8x64xbf16>, vector<8x64xbf16>, vector<8x8xf32> -> vector<8x8xf32>
      %cst_75 = arith.constant -1.000000e+30 : f32
      %103 = vector.broadcast %cst_75 : f32 to vector<8x8xf32>
      %104 = arith.select %98, %102, %103 : vector<8x8xi1>, vector<8x8xf32>
      %c0_76 = arith.constant 0 : index
      %c0_77 = arith.constant 0 : index
      %c0_78 = arith.constant 0 : index
      %105 = vector.load %arg8[%c0_76, %c0_77, %c0_78] : memref<6x8x1xf32, #tpu.memory_space<vmem>>, vector<1x8x1xf32>
      %106 = vector.shape_cast %105 : vector<1x8x1xf32> to vector<8x1xf32>
      %cst_79 = arith.constant dense<0xFF800000> : vector<8xf32>
      %107 = vector.multi_reduction <maximumf>, %104, %cst_79 [1] : vector<8x8xf32> to vector<8xf32>
      %108 = vector.shape_cast %107 : vector<8xf32> to vector<8x1xf32>
      %109 = arith.maximumf %106, %108 : vector<8x1xf32>
      %110 = arith.subf %106, %109 : vector<8x1xf32>
      %111 = math.exp %110 : vector<8x1xf32>
      %112 = vector.broadcast %109 : vector<8x1xf32> to vector<8x8xf32>
      %113 = arith.subf %104, %112 : vector<8x8xf32>
      %114 = math.exp %113 : vector<8x8xf32>
      %c0_80 = arith.constant 0 : index
      %c0_81 = arith.constant 0 : index
      %c0_82 = arith.constant 0 : index
      %115 = vector.load %arg9[%c0_80, %c0_81, %c0_82] : memref<6x8x1xf32, #tpu.memory_space<vmem>>, vector<1x8x1xf32>
      %116 = vector.shape_cast %115 : vector<1x8x1xf32> to vector<8x1xf32>
      %117 = arith.mulf %111, %116 : vector<8x1xf32>
      %cst_83 = arith.constant dense<0.000000e+00> : vector<8xf32>
      %118 = vector.multi_reduction <add>, %114, %cst_83 [1] : vector<8x8xf32> to vector<8xf32>
      %119 = vector.shape_cast %118 : vector<8xf32> to vector<8x1xf32>
      %120 = arith.addf %117, %119 : vector<8x1xf32>
      %c0_84 = arith.constant 0 : index
      %c0_85 = arith.constant 0 : index
      %c0_86 = arith.constant 0 : index
      %121 = vector.load %arg9[%c0_84, %c0_85, %c0_86] : memref<6x8x1xf32, #tpu.memory_space<vmem>>, vector<1x8x1xf32>
      %122 = vector.shape_cast %121 : vector<1x8x1xf32> to vector<8x1xf32>
      %123 = vector.shape_cast %120 : vector<8x1xf32> to vector<1x8x1xf32>
      tpu.vector_store %arg9[%c0_84, %c0_85, %c0_86], %123 {strides = array<i32>} : memref<6x8x1xf32, #tpu.memory_space<vmem>>, vector<1x8x1xf32>,
      %c0_87 = arith.constant 0 : index
      %c0_88 = arith.constant 0 : index
      %c0_89 = arith.constant 0 : index
      %124 = vector.load %arg10[%c0_87, %c0_88, %c0_89] : memref<6x8x64xf32, #tpu.memory_space<vmem>>, vector<1x8x64xf32>
      %125 = vector.shape_cast %124 : vector<1x8x64xf32> to vector<8x64xf32>
      %126 = vector.broadcast %111 : vector<8x1xf32> to vector<8x64xf32>
      %127 = arith.mulf %126, %125 : vector<8x64xf32>
      %128 = arith.truncf %114 : vector<8x8xf32> to vector<8x8xbf16>
      %cst_90 = arith.constant dense<0.000000e+00> : vector<8x64xf32>
      %129 = tpu.matmul %128, %100, %cst_90 {dimension_numbers = #tpu.dot_dimension_numbers<[1], [0], [0], [1], [0, 0, 1, 1], [], []>} : vector<8x8xbf16>, vector<8x64xbf16>, vector<8x64xf32> -> vector<8x64xf32>
      %130 = arith.addf %127, %129 : vector<8x64xf32>
      %c0_91 = arith.constant 0 : index
      %c0_92 = arith.constant 0 : index
      %c0_93 = arith.constant 0 : index
      %131 = vector.load %arg10[%c0_91, %c0_92, %c0_93] : memref<6x8x64xf32, #tpu.memory_space<vmem>>, vector<1x8x64xf32>
      %132 = vector.shape_cast %131 : vector<1x8x64xf32> to vector<8x64xf32>
      %133 = vector.shape_cast %130 : vector<8x64xf32> to vector<1x8x64xf32>
      tpu.vector_store %arg10[%c0_91, %c0_92, %c0_93], %133 {strides = array<i32>} : memref<6x8x64xf32, #tpu.memory_space<vmem>>, vector<1x8x64xf32>,
      %c0_94 = arith.constant 0 : index
      %c0_95 = arith.constant 0 : index
      %c0_96 = arith.constant 0 : index
      %134 = vector.load %arg8[%c0_94, %c0_95, %c0_96] : memref<6x8x1xf32, #tpu.memory_space<vmem>>, vector<1x8x1xf32>
      %135 = vector.shape_cast %134 : vector<1x8x1xf32> to vector<8x1xf32>
      %136 = vector.shape_cast %109 : vector<8x1xf32> to vector<1x8x1xf32>
      tpu.vector_store %arg8[%c0_94, %c0_95, %c0_96], %136 {strides = array<i32>} : memref<6x8x1xf32, #tpu.memory_space<vmem>>, vector<1x8x1xf32>,
      %137 = vector.extract_strided_slice %93 {offsets = [0, 64], sizes = [8, 64], strides = [1, 1]} : vector<8x768xbf16> to vector<8x64xbf16>
      %138 = vector.extract_strided_slice %93 {offsets = [0, 448], sizes = [8, 64], strides = [1, 1]} : vector<8x768xbf16> to vector<8x64xbf16>
      %139 = vector.extract_strided_slice %9 {offsets = [0, 64], sizes = [8, 64], strides = [1, 1]} : vector<8x384xbf16> to vector<8x64xbf16>
      %cst_97 = arith.constant dense<0.000000e+00> : vector<8x8xf32>
      %140 = tpu.matmul %139, %137, %cst_97 {dimension_numbers = #tpu.dot_dimension_numbers<[1], [1], [0], [0], [0, 0, 1, 0], [], []>} : vector<8x64xbf16>, vector<8x64xbf16>, vector<8x8xf32> -> vector<8x8xf32>
      %cst_98 = arith.constant -1.000000e+30 : f32
      %141 = vector.broadcast %cst_98 : f32 to vector<8x8xf32>
      %142 = arith.select %98, %140, %141 : vector<8x8xi1>, vector<8x8xf32>
      %c1_99 = arith.constant 1 : index
      %c0_100 = arith.constant 0 : index
      %c0_101 = arith.constant 0 : index
      %143 = vector.load %arg8[%c1_99, %c0_100, %c0_101] : memref<6x8x1xf32, #tpu.memory_space<vmem>>, vector<1x8x1xf32>
      %144 = vector.shape_cast %143 : vector<1x8x1xf32> to vector<8x1xf32>
      %cst_102 = arith.constant dense<0xFF800000> : vector<8xf32>
      %145 = vector.multi_reduction <maximumf>, %142, %cst_102 [1] : vector<8x8xf32> to vector<8xf32>
      %146 = vector.shape_cast %145 : vector<8xf32> to vector<8x1xf32>
      %147 = arith.maximumf %144, %146 : vector<8x1xf32>
      %148 = arith.subf %144, %147 : vector<8x1xf32>
      %149 = math.exp %148 : vector<8x1xf32>
      %150 = vector.broadcast %147 : vector<8x1xf32> to vector<8x8xf32>
      %151 = arith.subf %142, %150 : vector<8x8xf32>
      %152 = math.exp %151 : vector<8x8xf32>
      %c1_103 = arith.constant 1 : index
      %c0_104 = arith.constant 0 : index
      %c0_105 = arith.constant 0 : index
      %153 = vector.load %arg9[%c1_103, %c0_104, %c0_105] : memref<6x8x1xf32, #tpu.memory_space<vmem>>, vector<1x8x1xf32>
      %154 = vector.shape_cast %153 : vector<1x8x1xf32> to vector<8x1xf32>
      %155 = arith.mulf %149, %154 : vector<8x1xf32>
      %cst_106 = arith.constant dense<0.000000e+00> : vector<8xf32>
      %156 = vector.multi_reduction <add>, %152, %cst_106 [1] : vector<8x8xf32> to vector<8xf32>
      %157 = vector.shape_cast %156 : vector<8xf32> to vector<8x1xf32>
      %158 = arith.addf %155, %157 : vector<8x1xf32>
      %c1_107 = arith.constant 1 : index
      %c0_108 = arith.constant 0 : index
      %c0_109 = arith.constant 0 : index
      %159 = vector.load %arg9[%c1_107, %c0_108, %c0_109] : memref<6x8x1xf32, #tpu.memory_space<vmem>>, vector<1x8x1xf32>
      %160 = vector.shape_cast %159 : vector<1x8x1xf32> to vector<8x1xf32>
      %161 = vector.shape_cast %158 : vector<8x1xf32> to vector<1x8x1xf32>
      tpu.vector_store %arg9[%c1_107, %c0_108, %c0_109], %161 {strides = array<i32>} : memref<6x8x1xf32, #tpu.memory_space<vmem>>, vector<1x8x1xf32>,
      %c1_110 = arith.constant 1 : index
      %c0_111 = arith.constant 0 : index
      %c0_112 = arith.constant 0 : index
      %162 = vector.load %arg10[%c1_110, %c0_111, %c0_112] : memref<6x8x64xf32, #tpu.memory_space<vmem>>, vector<1x8x64xf32>
      %163 = vector.shape_cast %162 : vector<1x8x64xf32> to vector<8x64xf32>
      %164 = vector.broadcast %149 : vector<8x1xf32> to vector<8x64xf32>
      %165 = arith.mulf %164, %163 : vector<8x64xf32>
      %166 = arith.truncf %152 : vector<8x8xf32> to vector<8x8xbf16>
      %cst_113 = arith.constant dense<0.000000e+00> : vector<8x64xf32>
      %167 = tpu.matmul %166, %138, %cst_113 {dimension_numbers = #tpu.dot_dimension_numbers<[1], [0], [0], [1], [0, 0, 1, 1], [], []>} : vector<8x8xbf16>, vector<8x64xbf16>, vector<8x64xf32> -> vector<8x64xf32>
      %168 = arith.addf %165, %167 : vector<8x64xf32>
      %c1_114 = arith.constant 1 : index
      %c0_115 = arith.constant 0 : index
      %c0_116 = arith.constant 0 : index
      %169 = vector.load %arg10[%c1_114, %c0_115, %c0_116] : memref<6x8x64xf32, #tpu.memory_space<vmem>>, vector<1x8x64xf32>
      %170 = vector.shape_cast %169 : vector<1x8x64xf32> to vector<8x64xf32>
      %171 = vector.shape_cast %168 : vector<8x64xf32> to vector<1x8x64xf32>
      tpu.vector_store %arg10[%c1_114, %c0_115, %c0_116], %171 {strides = array<i32>} : memref<6x8x64xf32, #tpu.memory_space<vmem>>, vector<1x8x64xf32>,
      %c1_117 = arith.constant 1 : index
      %c0_118 = arith.constant 0 : index
      %c0_119 = arith.constant 0 : index
      %172 = vector.load %arg8[%c1_117, %c0_118, %c0_119] : memref<6x8x1xf32, #tpu.memory_space<vmem>>, vector<1x8x1xf32>
      %173 = vector.shape_cast %172 : vector<1x8x1xf32> to vector<8x1xf32>
      %174 = vector.shape_cast %147 : vector<8x1xf32> to vector<1x8x1xf32>
      tpu.vector_store %arg8[%c1_117, %c0_118, %c0_119], %174 {strides = array<i32>} : memref<6x8x1xf32, #tpu.memory_space<vmem>>, vector<1x8x1xf32>,
      %175 = vector.extract_strided_slice %93 {offsets = [0, 128], sizes = [8, 64], strides = [1, 1]} : vector<8x768xbf16> to vector<8x64xbf16>
      %176 = vector.extract_strided_slice %93 {offsets = [0, 512], sizes = [8, 64], strides = [1, 1]} : vector<8x768xbf16> to vector<8x64xbf16>
      %177 = vector.extract_strided_slice %9 {offsets = [0, 128], sizes = [8, 64], strides = [1, 1]} : vector<8x384xbf16> to vector<8x64xbf16>
      %cst_120 = arith.constant dense<0.000000e+00> : vector<8x8xf32>
      %178 = tpu.matmul %177, %175, %cst_120 {dimension_numbers = #tpu.dot_dimension_numbers<[1], [1], [0], [0], [0, 0, 1, 0], [], []>} : vector<8x64xbf16>, vector<8x64xbf16>, vector<8x8xf32> -> vector<8x8xf32>
      %cst_121 = arith.constant -1.000000e+30 : f32
      %179 = vector.broadcast %cst_121 : f32 to vector<8x8xf32>
      %180 = arith.select %98, %178, %179 : vector<8x8xi1>, vector<8x8xf32>
      %c2_122 = arith.constant 2 : index
      %c0_123 = arith.constant 0 : index
      %c0_124 = arith.constant 0 : index
      %181 = vector.load %arg8[%c2_122, %c0_123, %c0_124] : memref<6x8x1xf32, #tpu.memory_space<vmem>>, vector<1x8x1xf32>
      %182 = vector.shape_cast %181 : vector<1x8x1xf32> to vector<8x1xf32>
      %cst_125 = arith.constant dense<0xFF800000> : vector<8xf32>
      %183 = vector.multi_reduction <maximumf>, %180, %cst_125 [1] : vector<8x8xf32> to vector<8xf32>
      %184 = vector.shape_cast %183 : vector<8xf32> to vector<8x1xf32>
      %185 = arith.maximumf %182, %184 : vector<8x1xf32>
      %186 = arith.subf %182, %185 : vector<8x1xf32>
      %187 = math.exp %186 : vector<8x1xf32>
      %188 = vector.broadcast %185 : vector<8x1xf32> to vector<8x8xf32>
      %189 = arith.subf %180, %188 : vector<8x8xf32>
      %190 = math.exp %189 : vector<8x8xf32>
      %c2_126 = arith.constant 2 : index
      %c0_127 = arith.constant 0 : index
      %c0_128 = arith.constant 0 : index
      %191 = vector.load %arg9[%c2_126, %c0_127, %c0_128] : memref<6x8x1xf32, #tpu.memory_space<vmem>>, vector<1x8x1xf32>
      %192 = vector.shape_cast %191 : vector<1x8x1xf32> to vector<8x1xf32>
      %193 = arith.mulf %187, %192 : vector<8x1xf32>
      %cst_129 = arith.constant dense<0.000000e+00> : vector<8xf32>
      %194 = vector.multi_reduction <add>, %190, %cst_129 [1] : vector<8x8xf32> to vector<8xf32>
      %195 = vector.shape_cast %194 : vector<8xf32> to vector<8x1xf32>
      %196 = arith.addf %193, %195 : vector<8x1xf32>
      %c2_130 = arith.constant 2 : index
      %c0_131 = arith.constant 0 : index
      %c0_132 = arith.constant 0 : index
      %197 = vector.load %arg9[%c2_130, %c0_131, %c0_132] : memref<6x8x1xf32, #tpu.memory_space<vmem>>, vector<1x8x1xf32>
      %198 = vector.shape_cast %197 : vector<1x8x1xf32> to vector<8x1xf32>
      %199 = vector.shape_cast %196 : vector<8x1xf32> to vector<1x8x1xf32>
      tpu.vector_store %arg9[%c2_130, %c0_131, %c0_132], %199 {strides = array<i32>} : memref<6x8x1xf32, #tpu.memory_space<vmem>>, vector<1x8x1xf32>,
      %c2_133 = arith.constant 2 : index
      %c0_134 = arith.constant 0 : index
      %c0_135 = arith.constant 0 : index
      %200 = vector.load %arg10[%c2_133, %c0_134, %c0_135] : memref<6x8x64xf32, #tpu.memory_space<vmem>>, vector<1x8x64xf32>
      %201 = vector.shape_cast %200 : vector<1x8x64xf32> to vector<8x64xf32>
      %202 = vector.broadcast %187 : vector<8x1xf32> to vector<8x64xf32>
      %203 = arith.mulf %202, %201 : vector<8x64xf32>
      %204 = arith.truncf %190 : vector<8x8xf32> to vector<8x8xbf16>
      %cst_136 = arith.constant dense<0.000000e+00> : vector<8x64xf32>
      %205 = tpu.matmul %204, %176, %cst_136 {dimension_numbers = #tpu.dot_dimension_numbers<[1], [0], [0], [1], [0, 0, 1, 1], [], []>} : vector<8x8xbf16>, vector<8x64xbf16>, vector<8x64xf32> -> vector<8x64xf32>
      %206 = arith.addf %203, %205 : vector<8x64xf32>
      %c2_137 = arith.constant 2 : index
      %c0_138 = arith.constant 0 : index
      %c0_139 = arith.constant 0 : index
      %207 = vector.load %arg10[%c2_137, %c0_138, %c0_139] : memref<6x8x64xf32, #tpu.memory_space<vmem>>, vector<1x8x64xf32>
      %208 = vector.shape_cast %207 : vector<1x8x64xf32> to vector<8x64xf32>
      %209 = vector.shape_cast %206 : vector<8x64xf32> to vector<1x8x64xf32>
      tpu.vector_store %arg10[%c2_137, %c0_138, %c0_139], %209 {strides = array<i32>} : memref<6x8x64xf32, #tpu.memory_space<vmem>>, vector<1x8x64xf32>,
      %c2_140 = arith.constant 2 : index
      %c0_141 = arith.constant 0 : index
      %c0_142 = arith.constant 0 : index
      %210 = vector.load %arg8[%c2_140, %c0_141, %c0_142] : memref<6x8x1xf32, #tpu.memory_space<vmem>>, vector<1x8x1xf32>
      %211 = vector.shape_cast %210 : vector<1x8x1xf32> to vector<8x1xf32>
      %212 = vector.shape_cast %185 : vector<8x1xf32> to vector<1x8x1xf32>
      tpu.vector_store %arg8[%c2_140, %c0_141, %c0_142], %212 {strides = array<i32>} : memref<6x8x1xf32, #tpu.memory_space<vmem>>, vector<1x8x1xf32>,
      %213 = vector.extract_strided_slice %93 {offsets = [0, 192], sizes = [8, 64], strides = [1, 1]} : vector<8x768xbf16> to vector<8x64xbf16>
      %214 = vector.extract_strided_slice %93 {offsets = [0, 576], sizes = [8, 64], strides = [1, 1]} : vector<8x768xbf16> to vector<8x64xbf16>
      %215 = vector.extract_strided_slice %9 {offsets = [0, 192], sizes = [8, 64], strides = [1, 1]} : vector<8x384xbf16> to vector<8x64xbf16>
      %cst_143 = arith.constant dense<0.000000e+00> : vector<8x8xf32>
      %216 = tpu.matmul %215, %213, %cst_143 {dimension_numbers = #tpu.dot_dimension_numbers<[1], [1], [0], [0], [0, 0, 1, 0], [], []>} : vector<8x64xbf16>, vector<8x64xbf16>, vector<8x8xf32> -> vector<8x8xf32>
      %cst_144 = arith.constant -1.000000e+30 : f32
      %217 = vector.broadcast %cst_144 : f32 to vector<8x8xf32>
      %218 = arith.select %98, %216, %217 : vector<8x8xi1>, vector<8x8xf32>
      %c3_145 = arith.constant 3 : index
      %c0_146 = arith.constant 0 : index
      %c0_147 = arith.constant 0 : index
      %219 = vector.load %arg8[%c3_145, %c0_146, %c0_147] : memref<6x8x1xf32, #tpu.memory_space<vmem>>, vector<1x8x1xf32>
      %220 = vector.shape_cast %219 : vector<1x8x1xf32> to vector<8x1xf32>
      %cst_148 = arith.constant dense<0xFF800000> : vector<8xf32>
      %221 = vector.multi_reduction <maximumf>, %218, %cst_148 [1] : vector<8x8xf32> to vector<8xf32>
      %222 = vector.shape_cast %221 : vector<8xf32> to vector<8x1xf32>
      %223 = arith.maximumf %220, %222 : vector<8x1xf32>
      %224 = arith.subf %220, %223 : vector<8x1xf32>
      %225 = math.exp %224 : vector<8x1xf32>
      %226 = vector.broadcast %223 : vector<8x1xf32> to vector<8x8xf32>
      %227 = arith.subf %218, %226 : vector<8x8xf32>
      %228 = math.exp %227 : vector<8x8xf32>
      %c3_149 = arith.constant 3 : index
      %c0_150 = arith.constant 0 : index
      %c0_151 = arith.constant 0 : index
      %229 = vector.load %arg9[%c3_149, %c0_150, %c0_151] : memref<6x8x1xf32, #tpu.memory_space<vmem>>, vector<1x8x1xf32>
      %230 = vector.shape_cast %229 : vector<1x8x1xf32> to vector<8x1xf32>
      %231 = arith.mulf %225, %230 : vector<8x1xf32>
      %cst_152 = arith.constant dense<0.000000e+00> : vector<8xf32>
      %232 = vector.multi_reduction <add>, %228, %cst_152 [1] : vector<8x8xf32> to vector<8xf32>
      %233 = vector.shape_cast %232 : vector<8xf32> to vector<8x1xf32>
      %234 = arith.addf %231, %233 : vector<8x1xf32>
      %c3_153 = arith.constant 3 : index
      %c0_154 = arith.constant 0 : index
      %c0_155 = arith.constant 0 : index
      %235 = vector.load %arg9[%c3_153, %c0_154, %c0_155] : memref<6x8x1xf32, #tpu.memory_space<vmem>>, vector<1x8x1xf32>
      %236 = vector.shape_cast %235 : vector<1x8x1xf32> to vector<8x1xf32>
      %237 = vector.shape_cast %234 : vector<8x1xf32> to vector<1x8x1xf32>
      tpu.vector_store %arg9[%c3_153, %c0_154, %c0_155], %237 {strides = array<i32>} : memref<6x8x1xf32, #tpu.memory_space<vmem>>, vector<1x8x1xf32>,
      %c3_156 = arith.constant 3 : index
      %c0_157 = arith.constant 0 : index
      %c0_158 = arith.constant 0 : index
      %238 = vector.load %arg10[%c3_156, %c0_157, %c0_158] : memref<6x8x64xf32, #tpu.memory_space<vmem>>, vector<1x8x64xf32>
      %239 = vector.shape_cast %238 : vector<1x8x64xf32> to vector<8x64xf32>
      %240 = vector.broadcast %225 : vector<8x1xf32> to vector<8x64xf32>
      %241 = arith.mulf %240, %239 : vector<8x64xf32>
      %242 = arith.truncf %228 : vector<8x8xf32> to vector<8x8xbf16>
      %cst_159 = arith.constant dense<0.000000e+00> : vector<8x64xf32>
      %243 = tpu.matmul %242, %214, %cst_159 {dimension_numbers = #tpu.dot_dimension_numbers<[1], [0], [0], [1], [0, 0, 1, 1], [], []>} : vector<8x8xbf16>, vector<8x64xbf16>, vector<8x64xf32> -> vector<8x64xf32>
      %244 = arith.addf %241, %243 : vector<8x64xf32>
      %c3_160 = arith.constant 3 : index
      %c0_161 = arith.constant 0 : index
      %c0_162 = arith.constant 0 : index
      %245 = vector.load %arg10[%c3_160, %c0_161, %c0_162] : memref<6x8x64xf32, #tpu.memory_space<vmem>>, vector<1x8x64xf32>
      %246 = vector.shape_cast %245 : vector<1x8x64xf32> to vector<8x64xf32>
      %247 = vector.shape_cast %244 : vector<8x64xf32> to vector<1x8x64xf32>
      tpu.vector_store %arg10[%c3_160, %c0_161, %c0_162], %247 {strides = array<i32>} : memref<6x8x64xf32, #tpu.memory_space<vmem>>, vector<1x8x64xf32>,
      %c3_163 = arith.constant 3 : index
      %c0_164 = arith.constant 0 : index
      %c0_165 = arith.constant 0 : index
      %248 = vector.load %arg8[%c3_163, %c0_164, %c0_165] : memref<6x8x1xf32, #tpu.memory_space<vmem>>, vector<1x8x1xf32>
      %249 = vector.shape_cast %248 : vector<1x8x1xf32> to vector<8x1xf32>
      %250 = vector.shape_cast %223 : vector<8x1xf32> to vector<1x8x1xf32>
      tpu.vector_store %arg8[%c3_163, %c0_164, %c0_165], %250 {strides = array<i32>} : memref<6x8x1xf32, #tpu.memory_space<vmem>>, vector<1x8x1xf32>,
      %251 = vector.extract_strided_slice %93 {offsets = [0, 256], sizes = [8, 64], strides = [1, 1]} : vector<8x768xbf16> to vector<8x64xbf16>
      %252 = vector.extract_strided_slice %93 {offsets = [0, 640], sizes = [8, 64], strides = [1, 1]} : vector<8x768xbf16> to vector<8x64xbf16>
      %253 = vector.extract_strided_slice %9 {offsets = [0, 256], sizes = [8, 64], strides = [1, 1]} : vector<8x384xbf16> to vector<8x64xbf16>
      %cst_166 = arith.constant dense<0.000000e+00> : vector<8x8xf32>
      %254 = tpu.matmul %253, %251, %cst_166 {dimension_numbers = #tpu.dot_dimension_numbers<[1], [1], [0], [0], [0, 0, 1, 0], [], []>} : vector<8x64xbf16>, vector<8x64xbf16>, vector<8x8xf32> -> vector<8x8xf32>
      %cst_167 = arith.constant -1.000000e+30 : f32
      %255 = vector.broadcast %cst_167 : f32 to vector<8x8xf32>
      %256 = arith.select %98, %254, %255 : vector<8x8xi1>, vector<8x8xf32>
      %c4_168 = arith.constant 4 : index
      %c0_169 = arith.constant 0 : index
      %c0_170 = arith.constant 0 : index
      %257 = vector.load %arg8[%c4_168, %c0_169, %c0_170] : memref<6x8x1xf32, #tpu.memory_space<vmem>>, vector<1x8x1xf32>
      %258 = vector.shape_cast %257 : vector<1x8x1xf32> to vector<8x1xf32>
      %cst_171 = arith.constant dense<0xFF800000> : vector<8xf32>
      %259 = vector.multi_reduction <maximumf>, %256, %cst_171 [1] : vector<8x8xf32> to vector<8xf32>
      %260 = vector.shape_cast %259 : vector<8xf32> to vector<8x1xf32>
      %261 = arith.maximumf %258, %260 : vector<8x1xf32>
      %262 = arith.subf %258, %261 : vector<8x1xf32>
      %263 = math.exp %262 : vector<8x1xf32>
      %264 = vector.broadcast %261 : vector<8x1xf32> to vector<8x8xf32>
      %265 = arith.subf %256, %264 : vector<8x8xf32>
      %266 = math.exp %265 : vector<8x8xf32>
      %c4_172 = arith.constant 4 : index
      %c0_173 = arith.constant 0 : index
      %c0_174 = arith.constant 0 : index
      %267 = vector.load %arg9[%c4_172, %c0_173, %c0_174] : memref<6x8x1xf32, #tpu.memory_space<vmem>>, vector<1x8x1xf32>
      %268 = vector.shape_cast %267 : vector<1x8x1xf32> to vector<8x1xf32>
      %269 = arith.mulf %263, %268 : vector<8x1xf32>
      %cst_175 = arith.constant dense<0.000000e+00> : vector<8xf32>
      %270 = vector.multi_reduction <add>, %266, %cst_175 [1] : vector<8x8xf32> to vector<8xf32>
      %271 = vector.shape_cast %270 : vector<8xf32> to vector<8x1xf32>
      %272 = arith.addf %269, %271 : vector<8x1xf32>
      %c4_176 = arith.constant 4 : index
      %c0_177 = arith.constant 0 : index
      %c0_178 = arith.constant 0 : index
      %273 = vector.load %arg9[%c4_176, %c0_177, %c0_178] : memref<6x8x1xf32, #tpu.memory_space<vmem>>, vector<1x8x1xf32>
      %274 = vector.shape_cast %273 : vector<1x8x1xf32> to vector<8x1xf32>
      %275 = vector.shape_cast %272 : vector<8x1xf32> to vector<1x8x1xf32>
      tpu.vector_store %arg9[%c4_176, %c0_177, %c0_178], %275 {strides = array<i32>} : memref<6x8x1xf32, #tpu.memory_space<vmem>>, vector<1x8x1xf32>,
      %c4_179 = arith.constant 4 : index
      %c0_180 = arith.constant 0 : index
      %c0_181 = arith.constant 0 : index
      %276 = vector.load %arg10[%c4_179, %c0_180, %c0_181] : memref<6x8x64xf32, #tpu.memory_space<vmem>>, vector<1x8x64xf32>
      %277 = vector.shape_cast %276 : vector<1x8x64xf32> to vector<8x64xf32>
      %278 = vector.broadcast %263 : vector<8x1xf32> to vector<8x64xf32>
      %279 = arith.mulf %278, %277 : vector<8x64xf32>
      %280 = arith.truncf %266 : vector<8x8xf32> to vector<8x8xbf16>
      %cst_182 = arith.constant dense<0.000000e+00> : vector<8x64xf32>
      %281 = tpu.matmul %280, %252, %cst_182 {dimension_numbers = #tpu.dot_dimension_numbers<[1], [0], [0], [1], [0, 0, 1, 1], [], []>} : vector<8x8xbf16>, vector<8x64xbf16>, vector<8x64xf32> -> vector<8x64xf32>
      %282 = arith.addf %279, %281 : vector<8x64xf32>
      %c4_183 = arith.constant 4 : index
      %c0_184 = arith.constant 0 : index
      %c0_185 = arith.constant 0 : index
      %283 = vector.load %arg10[%c4_183, %c0_184, %c0_185] : memref<6x8x64xf32, #tpu.memory_space<vmem>>, vector<1x8x64xf32>
      %284 = vector.shape_cast %283 : vector<1x8x64xf32> to vector<8x64xf32>
      %285 = vector.shape_cast %282 : vector<8x64xf32> to vector<1x8x64xf32>
      tpu.vector_store %arg10[%c4_183, %c0_184, %c0_185], %285 {strides = array<i32>} : memref<6x8x64xf32, #tpu.memory_space<vmem>>, vector<1x8x64xf32>,
      %c4_186 = arith.constant 4 : index
      %c0_187 = arith.constant 0 : index
      %c0_188 = arith.constant 0 : index
      %286 = vector.load %arg8[%c4_186, %c0_187, %c0_188] : memref<6x8x1xf32, #tpu.memory_space<vmem>>, vector<1x8x1xf32>
      %287 = vector.shape_cast %286 : vector<1x8x1xf32> to vector<8x1xf32>
      %288 = vector.shape_cast %261 : vector<8x1xf32> to vector<1x8x1xf32>
      tpu.vector_store %arg8[%c4_186, %c0_187, %c0_188], %288 {strides = array<i32>} : memref<6x8x1xf32, #tpu.memory_space<vmem>>, vector<1x8x1xf32>,
      %289 = vector.extract_strided_slice %93 {offsets = [0, 320], sizes = [8, 64], strides = [1, 1]} : vector<8x768xbf16> to vector<8x64xbf16>
      %290 = vector.extract_strided_slice %93 {offsets = [0, 704], sizes = [8, 64], strides = [1, 1]} : vector<8x768xbf16> to vector<8x64xbf16>
      %291 = vector.extract_strided_slice %9 {offsets = [0, 320], sizes = [8, 64], strides = [1, 1]} : vector<8x384xbf16> to vector<8x64xbf16>
      %cst_189 = arith.constant dense<0.000000e+00> : vector<8x8xf32>
      %292 = tpu.matmul %291, %289, %cst_189 {dimension_numbers = #tpu.dot_dimension_numbers<[1], [1], [0], [0], [0, 0, 1, 0], [], []>} : vector<8x64xbf16>, vector<8x64xbf16>, vector<8x8xf32> -> vector<8x8xf32>
      %cst_190 = arith.constant -1.000000e+30 : f32
      %293 = vector.broadcast %cst_190 : f32 to vector<8x8xf32>
      %294 = arith.select %98, %292, %293 : vector<8x8xi1>, vector<8x8xf32>
      %c5_191 = arith.constant 5 : index
      %c0_192 = arith.constant 0 : index
      %c0_193 = arith.constant 0 : index
      %295 = vector.load %arg8[%c5_191, %c0_192, %c0_193] : memref<6x8x1xf32, #tpu.memory_space<vmem>>, vector<1x8x1xf32>
      %296 = vector.shape_cast %295 : vector<1x8x1xf32> to vector<8x1xf32>
      %cst_194 = arith.constant dense<0xFF800000> : vector<8xf32>
      %297 = vector.multi_reduction <maximumf>, %294, %cst_194 [1] : vector<8x8xf32> to vector<8xf32>
      %298 = vector.shape_cast %297 : vector<8xf32> to vector<8x1xf32>
      %299 = arith.maximumf %296, %298 : vector<8x1xf32>
      %300 = arith.subf %296, %299 : vector<8x1xf32>
      %301 = math.exp %300 : vector<8x1xf32>
      %302 = vector.broadcast %299 : vector<8x1xf32> to vector<8x8xf32>
      %303 = arith.subf %294, %302 : vector<8x8xf32>
      %304 = math.exp %303 : vector<8x8xf32>
      %c5_195 = arith.constant 5 : index
      %c0_196 = arith.constant 0 : index
      %c0_197 = arith.constant 0 : index
      %305 = vector.load %arg9[%c5_195, %c0_196, %c0_197] : memref<6x8x1xf32, #tpu.memory_space<vmem>>, vector<1x8x1xf32>
      %306 = vector.shape_cast %305 : vector<1x8x1xf32> to vector<8x1xf32>
      %307 = arith.mulf %301, %306 : vector<8x1xf32>
      %cst_198 = arith.constant dense<0.000000e+00> : vector<8xf32>
      %308 = vector.multi_reduction <add>, %304, %cst_198 [1] : vector<8x8xf32> to vector<8xf32>
      %309 = vector.shape_cast %308 : vector<8xf32> to vector<8x1xf32>
      %310 = arith.addf %307, %309 : vector<8x1xf32>
      %c5_199 = arith.constant 5 : index
      %c0_200 = arith.constant 0 : index
      %c0_201 = arith.constant 0 : index
      %311 = vector.load %arg9[%c5_199, %c0_200, %c0_201] : memref<6x8x1xf32, #tpu.memory_space<vmem>>, vector<1x8x1xf32>
      %312 = vector.shape_cast %311 : vector<1x8x1xf32> to vector<8x1xf32>
      %313 = vector.shape_cast %310 : vector<8x1xf32> to vector<1x8x1xf32>
      tpu.vector_store %arg9[%c5_199, %c0_200, %c0_201], %313 {strides = array<i32>} : memref<6x8x1xf32, #tpu.memory_space<vmem>>, vector<1x8x1xf32>,
      %c5_202 = arith.constant 5 : index
      %c0_203 = arith.constant 0 : index
      %c0_204 = arith.constant 0 : index
      %314 = vector.load %arg10[%c5_202, %c0_203, %c0_204] : memref<6x8x64xf32, #tpu.memory_space<vmem>>, vector<1x8x64xf32>
      %315 = vector.shape_cast %314 : vector<1x8x64xf32> to vector<8x64xf32>
      %316 = vector.broadcast %301 : vector<8x1xf32> to vector<8x64xf32>
      %317 = arith.mulf %316, %315 : vector<8x64xf32>
      %318 = arith.truncf %304 : vector<8x8xf32> to vector<8x8xbf16>
      %cst_205 = arith.constant dense<0.000000e+00> : vector<8x64xf32>
      %319 = tpu.matmul %318, %290, %cst_205 {dimension_numbers = #tpu.dot_dimension_numbers<[1], [0], [0], [1], [0, 0, 1, 1], [], []>} : vector<8x8xbf16>, vector<8x64xbf16>, vector<8x64xf32> -> vector<8x64xf32>
      %320 = arith.addf %317, %319 : vector<8x64xf32>
      %c5_206 = arith.constant 5 : index
      %c0_207 = arith.constant 0 : index
      %c0_208 = arith.constant 0 : index
      %321 = vector.load %arg10[%c5_206, %c0_207, %c0_208] : memref<6x8x64xf32, #tpu.memory_space<vmem>>, vector<1x8x64xf32>
      %322 = vector.shape_cast %321 : vector<1x8x64xf32> to vector<8x64xf32>
      %323 = vector.shape_cast %320 : vector<8x64xf32> to vector<1x8x64xf32>
      tpu.vector_store %arg10[%c5_206, %c0_207, %c0_208], %323 {strides = array<i32>} : memref<6x8x64xf32, #tpu.memory_space<vmem>>, vector<1x8x64xf32>,
      %c5_209 = arith.constant 5 : index
      %c0_210 = arith.constant 0 : index
      %c0_211 = arith.constant 0 : index
      %324 = vector.load %arg8[%c5_209, %c0_210, %c0_211] : memref<6x8x1xf32, #tpu.memory_space<vmem>>, vector<1x8x1xf32>
      %325 = vector.shape_cast %324 : vector<1x8x1xf32> to vector<8x1xf32>
      %326 = vector.shape_cast %299 : vector<8x1xf32> to vector<1x8x1xf32>
      tpu.vector_store %arg8[%c5_209, %c0_210, %c0_211], %326 {strides = array<i32>} : memref<6x8x1xf32, #tpu.memory_space<vmem>>, vector<1x8x1xf32>,
    }
    %c0_19 = arith.constant 0 : index
    %c0_20 = arith.constant 0 : index
    %c0_21 = arith.constant 0 : index
    %23 = vector.load %arg9[%c0_19, %c0_20, %c0_21] : memref<6x8x1xf32, #tpu.memory_space<vmem>>, vector<1x8x1xf32>
    %24 = vector.shape_cast %23 : vector<1x8x1xf32> to vector<8x1xf32>
    %25 = tpu.reciprocal %24 {approx = true} : vector<8x1xf32> -> vector<8x1xf32>
    %c0_22 = arith.constant 0 : index
    %c0_23 = arith.constant 0 : index
    %c0_24 = arith.constant 0 : index
    %26 = vector.load %arg10[%c0_22, %c0_23, %c0_24] : memref<6x8x64xf32, #tpu.memory_space<vmem>>, vector<1x8x64xf32>
    %27 = vector.shape_cast %26 : vector<1x8x64xf32> to vector<8x64xf32>
    %28 = vector.broadcast %25 : vector<8x1xf32> to vector<8x64xf32>
    %29 = arith.mulf %27, %28 : vector<8x64xf32>
    %30 = arith.truncf %29 : vector<8x64xf32> to vector<8x64xbf16>
    %c0_25 = arith.constant 0 : index
    %c0_26 = arith.constant 0 : index
    %31 = vector.load %arg11[%c0_25, %c0_26] : memref<8x384xbf16, #tpu.memory_space<vmem>>, vector<8x64xbf16>
    tpu.vector_store %arg11[%c0_25, %c0_26], %30 {strides = array<i32>} : memref<8x384xbf16, #tpu.memory_space<vmem>>, vector<8x64xbf16>,
    %c1 = arith.constant 1 : index
    %c0_27 = arith.constant 0 : index
    %c0_28 = arith.constant 0 : index
    %32 = vector.load %arg9[%c1, %c0_27, %c0_28] : memref<6x8x1xf32, #tpu.memory_space<vmem>>, vector<1x8x1xf32>
    %33 = vector.shape_cast %32 : vector<1x8x1xf32> to vector<8x1xf32>
    %34 = tpu.reciprocal %33 {approx = true} : vector<8x1xf32> -> vector<8x1xf32>
    %c1_29 = arith.constant 1 : index
    %c0_30 = arith.constant 0 : index
    %c0_31 = arith.constant 0 : index
    %35 = vector.load %arg10[%c1_29, %c0_30, %c0_31] : memref<6x8x64xf32, #tpu.memory_space<vmem>>, vector<1x8x64xf32>
    %36 = vector.shape_cast %35 : vector<1x8x64xf32> to vector<8x64xf32>
    %37 = vector.broadcast %34 : vector<8x1xf32> to vector<8x64xf32>
    %38 = arith.mulf %36, %37 : vector<8x64xf32>
    %39 = arith.truncf %38 : vector<8x64xf32> to vector<8x64xbf16>
    %c0_32 = arith.constant 0 : index
    %c64 = arith.constant 64 : index
    %40 = vector.load %arg11[%c0_32, %c64] : memref<8x384xbf16, #tpu.memory_space<vmem>>, vector<8x64xbf16>
    tpu.vector_store %arg11[%c0_32, %c64], %39 {strides = array<i32>} : memref<8x384xbf16, #tpu.memory_space<vmem>>, vector<8x64xbf16>,
    %c2 = arith.constant 2 : index
    %c0_33 = arith.constant 0 : index
    %c0_34 = arith.constant 0 : index
    %41 = vector.load %arg9[%c2, %c0_33, %c0_34] : memref<6x8x1xf32, #tpu.memory_space<vmem>>, vector<1x8x1xf32>
    %42 = vector.shape_cast %41 : vector<1x8x1xf32> to vector<8x1xf32>
    %43 = tpu.reciprocal %42 {approx = true} : vector<8x1xf32> -> vector<8x1xf32>
    %c2_35 = arith.constant 2 : index
    %c0_36 = arith.constant 0 : index
    %c0_37 = arith.constant 0 : index
    %44 = vector.load %arg10[%c2_35, %c0_36, %c0_37] : memref<6x8x64xf32, #tpu.memory_space<vmem>>, vector<1x8x64xf32>
    %45 = vector.shape_cast %44 : vector<1x8x64xf32> to vector<8x64xf32>
    %46 = vector.broadcast %43 : vector<8x1xf32> to vector<8x64xf32>
    %47 = arith.mulf %45, %46 : vector<8x64xf32>
    %48 = arith.truncf %47 : vector<8x64xf32> to vector<8x64xbf16>
    %c0_38 = arith.constant 0 : index
    %c128 = arith.constant 128 : index
    %49 = vector.load %arg11[%c0_38, %c128] : memref<8x384xbf16, #tpu.memory_space<vmem>>, vector<8x64xbf16>
    tpu.vector_store %arg11[%c0_38, %c128], %48 {strides = array<i32>} : memref<8x384xbf16, #tpu.memory_space<vmem>>, vector<8x64xbf16>,
    %c3 = arith.constant 3 : index
    %c0_39 = arith.constant 0 : index
    %c0_40 = arith.constant 0 : index
    %50 = vector.load %arg9[%c3, %c0_39, %c0_40] : memref<6x8x1xf32, #tpu.memory_space<vmem>>, vector<1x8x1xf32>
    %51 = vector.shape_cast %50 : vector<1x8x1xf32> to vector<8x1xf32>
    %52 = tpu.reciprocal %51 {approx = true} : vector<8x1xf32> -> vector<8x1xf32>
    %c3_41 = arith.constant 3 : index
    %c0_42 = arith.constant 0 : index
    %c0_43 = arith.constant 0 : index
    %53 = vector.load %arg10[%c3_41, %c0_42, %c0_43] : memref<6x8x64xf32, #tpu.memory_space<vmem>>, vector<1x8x64xf32>
    %54 = vector.shape_cast %53 : vector<1x8x64xf32> to vector<8x64xf32>
    %55 = vector.broadcast %52 : vector<8x1xf32> to vector<8x64xf32>
    %56 = arith.mulf %54, %55 : vector<8x64xf32>
    %57 = arith.truncf %56 : vector<8x64xf32> to vector<8x64xbf16>
    %c0_44 = arith.constant 0 : index
    %c192 = arith.constant 192 : index
    %58 = vector.load %arg11[%c0_44, %c192] : memref<8x384xbf16, #tpu.memory_space<vmem>>, vector<8x64xbf16>
    tpu.vector_store %arg11[%c0_44, %c192], %57 {strides = array<i32>} : memref<8x384xbf16, #tpu.memory_space<vmem>>, vector<8x64xbf16>,
    %c4 = arith.constant 4 : index
    %c0_45 = arith.constant 0 : index
    %c0_46 = arith.constant 0 : index
    %59 = vector.load %arg9[%c4, %c0_45, %c0_46] : memref<6x8x1xf32, #tpu.memory_space<vmem>>, vector<1x8x1xf32>
    %60 = vector.shape_cast %59 : vector<1x8x1xf32> to vector<8x1xf32>
    %61 = tpu.reciprocal %60 {approx = true} : vector<8x1xf32> -> vector<8x1xf32>
    %c4_47 = arith.constant 4 : index
    %c0_48 = arith.constant 0 : index
    %c0_49 = arith.constant 0 : index
    %62 = vector.load %arg10[%c4_47, %c0_48, %c0_49] : memref<6x8x64xf32, #tpu.memory_space<vmem>>, vector<1x8x64xf32>
    %63 = vector.shape_cast %62 : vector<1x8x64xf32> to vector<8x64xf32>
    %64 = vector.broadcast %61 : vector<8x1xf32> to vector<8x64xf32>
    %65 = arith.mulf %63, %64 : vector<8x64xf32>
    %66 = arith.truncf %65 : vector<8x64xf32> to vector<8x64xbf16>
    %c0_50 = arith.constant 0 : index
    %c256 = arith.constant 256 : index
    %67 = vector.load %arg11[%c0_50, %c256] : memref<8x384xbf16, #tpu.memory_space<vmem>>, vector<8x64xbf16>
    tpu.vector_store %arg11[%c0_50, %c256], %66 {strides = array<i32>} : memref<8x384xbf16, #tpu.memory_space<vmem>>, vector<8x64xbf16>,
    %c5 = arith.constant 5 : index
    %c0_51 = arith.constant 0 : index
    %c0_52 = arith.constant 0 : index
    %68 = vector.load %arg9[%c5, %c0_51, %c0_52] : memref<6x8x1xf32, #tpu.memory_space<vmem>>, vector<1x8x1xf32>
    %69 = vector.shape_cast %68 : vector<1x8x1xf32> to vector<8x1xf32>
    %70 = tpu.reciprocal %69 {approx = true} : vector<8x1xf32> -> vector<8x1xf32>
    %c5_53 = arith.constant 5 : index
    %c0_54 = arith.constant 0 : index
    %c0_55 = arith.constant 0 : index
    %71 = vector.load %arg10[%c5_53, %c0_54, %c0_55] : memref<6x8x64xf32, #tpu.memory_space<vmem>>, vector<1x8x64xf32>
    %72 = vector.shape_cast %71 : vector<1x8x64xf32> to vector<8x64xf32>
    %73 = vector.broadcast %70 : vector<8x1xf32> to vector<8x64xf32>
    %74 = arith.mulf %72, %73 : vector<8x64xf32>
    %75 = arith.truncf %74 : vector<8x64xf32> to vector<8x64xbf16>
    %c0_56 = arith.constant 0 : index
    %c320 = arith.constant 320 : index
    %76 = vector.load %arg11[%c0_56, %c320] : memref<8x384xbf16, #tpu.memory_space<vmem>>, vector<8x64xbf16>
    tpu.vector_store %arg11[%c0_56, %c320], %75 {strides = array<i32>} : memref<8x384xbf16, #tpu.memory_space<vmem>>, vector<8x64xbf16>,
    %c0_57 = arith.constant 0 : index
    %c0_58 = arith.constant 0 : index
    %77 = vector.load %arg11[%c0_57, %c0_58] : memref<8x384xbf16, #tpu.memory_space<vmem>>, vector<8x384xbf16>
    %c0_59 = arith.constant 0 : index
    %c0_60 = arith.constant 0 : index
    %78 = vector.load %arg5[%c0_59, %c0_60] : memref<384x384xbf16, #tpu.memory_space<vmem>>, vector<384x384xbf16>
    %cst_61 = arith.constant dense<0.000000e+00> : vector<8x384xf32>
    %79 = tpu.matmul %77, %78, %cst_61 {dimension_numbers = #tpu.dot_dimension_numbers<[1], [0], [0], [1], [0, 0, 1, 1], [], []>} : vector<8x384xbf16>, vector<384x384xbf16>, vector<8x384xf32> -> vector<8x384xf32>
    %c0_62 = arith.constant 0 : index
    %c0_63 = arith.constant 0 : index
    %80 = vector.load %arg6[%c0_62, %c0_63] : memref<1x384xf32, #tpu.memory_space<vmem>>, vector<1x384xf32>
    %81 = vector.broadcast %80 : vector<1x384xf32> to vector<8x384xf32>
    %82 = arith.addf %79, %81 : vector<8x384xf32>
    %c0_64 = arith.constant 0 : index
    %c0_65 = arith.constant 0 : index
    %c0_66 = arith.constant 0 : index
    %83 = vector.load %arg7[%c0_64, %c0_65, %c0_66] : memref<1x8x384xf32, #tpu.memory_space<vmem>>, vector<1x8x384xf32>
    %84 = vector.shape_cast %83 : vector<1x8x384xf32> to vector<8x384xf32>
    %85 = vector.shape_cast %82 : vector<8x384xf32> to vector<1x8x384xf32>
    tpu.vector_store %arg7[%c0_64, %c0_65, %c0_66], %85 {strides = array<i32>} : memref<1x8x384xf32, #tpu.memory_space<vmem>>, vector<1x8x384xf32>,
    return
  }
  func.func @transform_0(%arg0: i32, %arg1: i32) -> (i32, i32, i32) {
    %c0_i32 = arith.constant 0 : i32
    %c0_i32_0 = arith.constant 0 : i32
    %c0_i32_1 = arith.constant 0 : i32
    return %arg0, %c0_i32, %c0_i32_0 : i32, i32, i32
  }
  func.func @transform_1(%arg0: i32, %arg1: i32) -> (i32, i32) {
    %c0_i32 = arith.constant 0 : i32
    %c0_i32_0 = arith.constant 0 : i32
    %c0_i32_1 = arith.constant 0 : i32
    return %c0_i32, %c0_i32_0 : i32, i32
  }
  func.func @transform_2(%arg0: i32, %arg1: i32) -> (i32, i32) {
    %c0_i32 = arith.constant 0 : i32
    %c0_i32_0 = arith.constant 0 : i32
    %c0_i32_1 = arith.constant 0 : i32
    return %c0_i32, %c0_i32_0 : i32, i32
  }
  func.func @transform_3(%arg0: i32, %arg1: i32) -> (i32, i32) {
    %c0_i32 = arith.constant 0 : i32
    %c0_i32_0 = arith.constant 0 : i32
    %c0_i32_1 = arith.constant 0 : i32
    return %c0_i32, %c0_i32_0 : i32, i32
  }
  func.func @transform_4(%arg0: i32, %arg1: i32) -> (i32, i32) {
    %c0_i32 = arith.constant 0 : i32
    %c0_i32_0 = arith.constant 0 : i32
    %c0_i32_1 = arith.constant 0 : i32
    return %c0_i32, %c0_i32_0 : i32, i32
  }
  func.func @transform_5(%arg0: i32, %arg1: i32) -> (i32, i32, i32) {
    %c0_i32 = arith.constant 0 : i32
    %c0_i32_0 = arith.constant 0 : i32
    return %arg0, %arg1, %c0_i32 : i32, i32, i32
  }
}

</mosaic_0001>

<llo_original>
// kernel: tpu_custom_call.1
$region0: #{tpu_custom_call.1}
  #allocation0 [shape = 'u32[]', space=smem, size = 0x4, offset = 0x4, fixed_abs, tag = 'smem constant byte address 0x4 - core index']
  #allocation1 [shape = 'u32[144,128]{1,0:T(1,128)}', space=vmem, size = 0x12000, scoped, tag = 'internal scratch']
  #allocation2 [shape = 'f32[6,8,1]{2,1,0:T(8,128)}', space=vmem, size = 0x6000, scoped, tag = 'scratch operand']
  #allocation3 [shape = 'f32[6,8,1]{2,1,0:T(8,128)}', space=vmem, size = 0x6000, scoped, tag = 'scratch operand']
  #allocation4 [shape = 'f32[6,8,64]{2,1,0:T(8,128)}', space=vmem, size = 0x6000, scoped, tag = 'scratch operand']
  #allocation5 [shape = 'bf16[8,384]{1,0:T(8,128)(2,1)}', space=vmem, size = 0x1800, scoped, tag = 'scratch operand']
  %s0 = inlined_call_operand.hbm [shape: bf16[2,8,384], index: 0, kind: input, shape index: {}]
  %s1 = inlined_call_operand.hbm [shape: bf16[384,384], index: 1, kind: input, shape index: {}]
  %s2 = inlined_call_operand.hbm [shape: bf16[384,768], index: 2, kind: input, shape index: {}]
  %s3 = inlined_call_operand.hbm [shape: bf16[384,384], index: 3, kind: input, shape index: {}]
  %s4 = inlined_call_operand.vmem [shape: f32[1,384], index: 4, kind: input, shape index: {}]
  %s5 = inlined_call_operand.hbm [shape: f32[2,8,384], index: 5, kind: output, shape index: {}]
  %s6 = sld [smem:[#allocation0]]
  $region76: #{tpu_custom_call.1} parent=0
    _
  %s8 = ssub.s32 1, %s6
  %s9 = scalar_select 0, %s8, %s6
  $region1: #{tpu_custom_call.1} parent=0
    #allocation6 [shape = 'u8[12288]{0}', space=vmem, size = 0x3000, scoped, tag = 'input window, operand 0']
    #allocation7 [shape = 's32[2]{0}', space=sflag, size = 0x8, scoped, tag = 'scoped memory for tpu_custom_call.1']
    #allocation8 [shape = 's32[2]{0}', space=sflag, size = 0x8, scoped, tag = 'scoped memory for tpu_custom_call.1']
    #allocation9 [shape = 'u8[294912]{0}', space=vmem, size = 0x48000, scoped, tag = 'input window, operand 1, single buffered']
    #allocation10 [shape = 's32[1]{0}', space=sflag, size = 0x4, scoped, tag = 'scoped memory for tpu_custom_call.1']
    #allocation11 [shape = 'u8[589824]{0}', space=vmem, size = 0x90000, scoped, tag = 'input window, operand 2, single buffered']
    #allocation12 [shape = 'u8[294912]{0}', space=vmem, size = 0x48000, scoped, tag = 'input window, operand 3, single buffered']
    #allocation13 [shape = 's32[1]{0}', space=sflag, size = 0x4, scoped, tag = 'scoped memory for tpu_custom_call.1']
    #allocation14 [shape = 'u8[24576]{0}', space=vmem, size = 0x6000, scoped, tag = 'output window, operand 0']
    %10 = vsyncpa [#allocation7], 0
    %s11 = scalar_lea.sflag [#allocation7], 1
    %12 = vsyncpa %s11, 0
    %13 = vsyncpa [#allocation10], 0
    %14 = vsyncpa [#allocation13], 0
    %15 = vsyncpa [#allocation8], 0
    %s16 = scalar_lea.sflag [#allocation8], 1
    %17 = vsyncpa %s16, 0
    loop: start=0, step=1, limit=4
    $region2: #{tpu_custom_call.1} parent=1 // loop_pre_header
      _
    $region3: #{tpu_custom_call.1} parent=1 // loop_header
      %s19 = sphi 0, %s23
      %p20 = scmp.ge.s32.totalorder %s19, 4
      %s26 = sphi 0, %s38
      %s27 = sphi 0, %s34
      %s28 = sphi 0, %s26
      %s29 = sphi 0, %s27
      %s30 = sphi 0, %s28
      %s31 = sphi 0, %s29
      %s41 = sphi 0, %s43
      %s44 = sphi 0, %s41
      %s45 = sphi 0, %s44
      %s61 = sphi 0, %s45
      %s65 = sphi 0, %s65
      %s67 = sphi 0, %s65
      %s68 = sphi 0, %s67
      %s82 = sphi 0, %s68
      %s86 = sphi 0, %s86
      %s88 = sphi 0, %s86
      %s89 = sphi 0, %s88
      %s103 = sphi 0, %s89
      %s107 = sphi 0, %s107
      %s109 = sphi 0, %s107
      %s110 = sphi 0, %s109
      %s124 = sphi 0, %s110
      %s128 = sphi 0, %s128
      %s130 = sphi 0, %s128
      %s131 = sphi 0, %s130
      %s145 = sphi 0, %s131
      %s153 = sphi 0, %s155
      %s156 = sphi 0, %s153
      %s157 = sphi 0, %s156
      %s173 = sphi 0, %s157
    $region4: #{tpu_custom_call.1} parent=1 // loop_header_branch
      %22 = sbr.rel (%p20) target = $region8
    $region5: #{tpu_custom_call.1} parent=1 // loop_body
      %s24 = ssub.s32 %s19, 1
      %s25 = ssub.s32 %s19, 2
      %s32 = sadd.s32 1, %s27
      %p33 = scmp.ge.s32.totalorder %s32, 1
      %s34 = scalar_select %p33, 0, %s32
      %s35 = sadd.s32 1, %s26
      %s36 = scalar_select %p33, %s35, %s26
      %p37 = scmp.ge.s32.totalorder %s36, 2
      %s38 = scalar_select %p37, 0, %s36
      %s39 = ssub.s32 %s26, %s38
      %p40 = scmp.eq.s32.totalorder %s39, 0
      %s42 = sadd.s32 %s41, 1
      %s43 = scalar_select %p40, %s41, %s42
      %p46 = pneg %p40
      %p47 = scmp.eq.s32.totalorder %s19, 1
      %p48 = por %p46, %p47
      %p49 = scmp.ne.s32.totalorder %s41, %s44
      %p50 = scmp.eq.s32.totalorder %s19, 0
      %p51 = por %p49, %p50
      %p52 = scmp.ne.s32.totalorder %s41, %s44
      %p53 = scmp.eq.s32.totalorder %s24, 1
      %p54 = por %p52, %p53
      %p55 = scmp.ne.s32.totalorder %s44, %s45
      %p56 = scmp.eq.s32.totalorder %s24, 0
      %p57 = por %p55, %p56
      %p58 = scmp.ne.s32.totalorder %s44, %s45
      %p59 = scmp.eq.s32.totalorder %s25, 1
      %p60 = por %p58, %p59
      %p62 = scmp.ne.s32.totalorder %s45, %s61
      %p63 = scmp.eq.s32.totalorder %s25, 0
      %p64 = por %p62, %p63
      %s66 = sadd.s32 %s65, 1
      %p69 = scmp.eq.s32.totalorder %s19, 1
      %p70 = scmp.ne.s32.totalorder %s65, %s67
      %p71 = scmp.eq.s32.totalorder %s19, 0
      %p72 = por %p70, %p71
      %p73 = scmp.ne.s32.totalorder %s65, %s67
      %p74 = scmp.eq.s32.totalorder %s24, 1
      %p75 = por %p73, %p74
      %p76 = scmp.ne.s32.totalorder %s67, %s68
      %p77 = scmp.eq.s32.totalorder %s24, 0
      %p78 = por %p76, %p77
      %p79 = scmp.ne.s32.totalorder %s67, %s68
      %p80 = scmp.eq.s32.totalorder %s25, 1
      %p81 = por %p79, %p80
      %p83 = scmp.ne.s32.totalorder %s68, %s82
      %p84 = scmp.eq.s32.totalorder %s25, 0
      %p85 = por %p83, %p84
      %s87 = sadd.s32 %s86, 1
      %p90 = scmp.eq.s32.totalorder %s19, 1
      %p91 = scmp.ne.s32.totalorder %s86, %s88
      %p92 = scmp.eq.s32.totalorder %s19, 0
      %p93 = por %p91, %p92
      %p94 = scmp.ne.s32.totalorder %s86, %s88
      %p95 = scmp.eq.s32.totalorder %s24, 1
      %p96 = por %p94, %p95
      %p97 = scmp.ne.s32.totalorder %s88, %s89
      %p98 = scmp.eq.s32.totalorder %s24, 0
      %p99 = por %p97, %p98
      %p100 = scmp.ne.s32.totalorder %s88, %s89
      %p101 = scmp.eq.s32.totalorder %s25, 1
      %p102 = por %p100, %p101
      %p104 = scmp.ne.s32.totalorder %s89, %s103
      %p105 = scmp.eq.s32.totalorder %s25, 0
      %p106 = por %p104, %p105
      %s108 = sadd.s32 %s107, 1
      %p111 = scmp.eq.s32.totalorder %s19, 1
      %p112 = scmp.ne.s32.totalorder %s107, %s109
      %p113 = scmp.eq.s32.totalorder %s19, 0
      %p114 = por %p112, %p113
      %p115 = scmp.ne.s32.totalorder %s107, %s109
      %p116 = scmp.eq.s32.totalorder %s24, 1
      %p117 = por %p115, %p116
      %p118 = scmp.ne.s32.totalorder %s109, %s110
      %p119 = scmp.eq.s32.totalorder %s24, 0
      %p120 = por %p118, %p119
      %p121 = scmp.ne.s32.totalorder %s109, %s110
      %p122 = scmp.eq.s32.totalorder %s25, 1
      %p123 = por %p121, %p122
      %p125 = scmp.ne.s32.totalorder %s110, %s124
      %p126 = scmp.eq.s32.totalorder %s25, 0
      %p127 = por %p125, %p126
      %s129 = sadd.s32 %s128, 1
      %p132 = scmp.eq.s32.totalorder %s19, 1
      %p133 = scmp.ne.s32.totalorder %s128, %s130
      %p134 = scmp.eq.s32.totalorder %s19, 0
      %p135 = por %p133, %p134
      %p136 = scmp.ne.s32.totalorder %s128, %s130
      %p137 = scmp.eq.s32.totalorder %s24, 1
      %p138 = por %p136, %p137
      %p139 = scmp.ne.s32.totalorder %s130, %s131
      %p140 = scmp.eq.s32.totalorder %s24, 0
      %p141 = por %p139, %p140
      %p142 = scmp.ne.s32.totalorder %s130, %s131
      %p143 = scmp.eq.s32.totalorder %s25, 1
      %p144 = por %p142, %p143
      %p146 = scmp.ne.s32.totalorder %s131, %s145
      %p147 = scmp.eq.s32.totalorder %s25, 0
      %p148 = por %p146, %p147
      %s149 = ssub.s32 %s26, %s38
      %s150 = ssub.s32 %s27, %s34
      %s151 = sor.u32 %s149, %s150
      %p152 = scmp.eq.s32.totalorder %s151, 0
      %s154 = sadd.s32 %s153, 1
      %s155 = scalar_select %p152, %s153, %s154
      %p158 = pneg %p152
      %p159 = scmp.eq.s32.totalorder %s19, 1
      %p160 = por %p158, %p159
      %p161 = scmp.ne.s32.totalorder %s153, %s156
      %p162 = scmp.eq.s32.totalorder %s19, 0
      %p163 = por %p161, %p162
      %p164 = scmp.ne.s32.totalorder %s153, %s156
      %p165 = scmp.eq.s32.totalorder %s24, 1
      %p166 = por %p164, %p165
      %p167 = scmp.ne.s32.totalorder %s156, %s157
      %p168 = scmp.eq.s32.totalorder %s24, 0
      %p169 = por %p167, %p168
      %p170 = scmp.ne.s32.totalorder %s156, %s157
      %p171 = scmp.eq.s32.totalorder %s25, 1
      %p172 = por %p170, %p171
      %p174 = scmp.ne.s32.totalorder %s157, %s173
      %p175 = scmp.eq.s32.totalorder %s25, 0
      %p176 = por %p174, %p175
      %p177 = scmp.le.s32.totalorder 1, %s19
      %p178 = scmp.lt.s32.totalorder %s19, 3
      %p179 = pnand %p177, %p178
      %p180 = pneg %p179
      // Predicated region
      $region9: #{tpu_custom_call.1} parent=5 // pred_check
        _
      $region10: #{tpu_custom_call.1} parent=5 // pred_check_branch
        %182 = sbr.rel (%p179) target = $region12
      $region11: #{tpu_custom_call.1} parent=5 // pred_region
        %s183 = ssub.s32 %s19, 1
        // Predicated region
        $region13: #{tpu_custom_call.1} parent=11 // pred_check
          %p184 = pneg %p78
        $region14: #{tpu_custom_call.1} parent=11 // pred_check_branch
          %186 = sbr.rel (%p184) target = $region16
        $region15: #{tpu_custom_call.1} parent=11 // pred_region
          %s188 = ssub.s32 9216, 9216
          %189 = vsyncadd [#allocation10], %s188
          %s190 = sshll.u32 [#allocation9], 4
          %s191 = int_to_ptr.vmem [resolvable:$true] %s190
          %196 = dma.hbm_to_vmem [thread:$0]  %s1, 9216, %s191, [#allocation10], 192, 192, 12
        $region16: #{tpu_custom_call.1} parent=11 // pred_fallthru
          _
        // Predicated region
        $region17: #{tpu_custom_call.1} parent=11 // pred_check
          %p197 = pneg %p99
        $region18: #{tpu_custom_call.1} parent=11 // pred_check_branch
          %199 = sbr.rel (%p197) target = $region20
        $region19: #{tpu_custom_call.1} parent=11 // pred_region
          %s201 = ssub.s32 18432, 18432
          %202 = vsyncadd [#allocation10], %s201
          %s203 = sshll.u32 [#allocation11], 4
          %s204 = int_to_ptr.vmem [resolvable:$true] %s203
          %209 = dma.hbm_to_vmem [thread:$0]  %s2, 18432, %s204, [#allocation10], 384, 384, 24
        $region20: #{tpu_custom_call.1} parent=11 // pred_fallthru
          _
        // Predicated region
        $region21: #{tpu_custom_call.1} parent=11 // pred_check
          %p210 = pneg %p120
        $region22: #{tpu_custom_call.1} parent=11 // pred_check_branch
          %212 = sbr.rel (%p210) target = $region24
        $region23: #{tpu_custom_call.1} parent=11 // pred_region
          %s214 = ssub.s32 9216, 9216
          %215 = vsyncadd [#allocation13], %s214
          %s216 = sshll.u32 [#allocation12], 4
          %s217 = int_to_ptr.vmem [resolvable:$true] %s216
          %222 = dma.hbm_to_vmem [thread:$0]  %s3, 9216, %s217, [#allocation13], 192, 192, 12
        $region24: #{tpu_custom_call.1} parent=11 // pred_fallthru
          _
        // Predicated region
        $region25: #{tpu_custom_call.1} parent=11 // pred_check
          %p223 = pneg %p141
        $region26: #{tpu_custom_call.1} parent=11 // pred_check_branch
          %225 = sbr.rel (%p223) target = $region28
        $region27: #{tpu_custom_call.1} parent=11 // pred_region
          _
        $region28: #{tpu_custom_call.1} parent=11 // pred_fallthru
          _
      $region12: #{tpu_custom_call.1} parent=5 // pred_fallthru
        _
      %p226 = scmp.lt.s32.totalorder %s19, 2
      // Predicated region
      $region29: #{tpu_custom_call.1} parent=5 // pred_check
        %p227 = pneg %p226
      $region30: #{tpu_custom_call.1} parent=5 // pred_check_branch
        %229 = sbr.rel (%p227) target = $region32
      $region31: #{tpu_custom_call.1} parent=5 // pred_region
        // Predicated region
        $region33: #{tpu_custom_call.1} parent=31 // pred_check
          %p230 = pneg %p51
        $region34: #{tpu_custom_call.1} parent=31 // pred_check_branch
          %232 = sbr.rel (%p230) target = $region36
        $region35: #{tpu_custom_call.1} parent=31 // pred_region
          %s233 = sand.u32 %s41, 1
          %s234 = scalar_lea.sflag [#allocation7], %s233
          %s235 = sand.u32 %s41, 1
          %s236 = smul.addr %s235, 12
          %s237 = scalar_lea.vmem [#allocation6], %s236
          %s239 = ssub.s32 192, 192
          %240 = vsyncadd %s234, %s239
          %s241 = smul.addr %s26, 3
          %s242 = smul.addr %s241, 64
          %s243 = scalar_lea.hbm %s0, %s242
          %s245 = sshll.u32 %s237, 4
          %s246 = int_to_ptr.vmem [resolvable:$true] %s245
          %248 = dma.hbm_to_vmem [thread:$0]  %s243, 192, %s246, %s234
        $region36: #{tpu_custom_call.1} parent=31 // pred_fallthru
          _
      $region32: #{tpu_custom_call.1} parent=5 // pred_fallthru
        _
      %p249 = scmp.le.s32.totalorder 1, %s19
      %p250 = scmp.lt.s32.totalorder %s19, 3
      %p251 = pnand %p249, %p250
      %p252 = pneg %p251
      // Predicated region
      $region37: #{tpu_custom_call.1} parent=5 // pred_check
        _
      $region38: #{tpu_custom_call.1} parent=5 // pred_check_branch
        %254 = sbr.rel (%p251) target = $region40
      $region39: #{tpu_custom_call.1} parent=5 // pred_region
        %s255 = ssub.s32 %s19, 1
        %s256 = sand.u32 %s44, 1
        %s257 = scalar_lea.sflag [#allocation7], %s256
        %s258 = sand.u32 %s44, 1
        %s259 = smul.addr %s258, 12
        %s260 = scalar_lea.vmem [#allocation6], %s259
        // Predicated region
        $region41: #{tpu_custom_call.1} parent=39 // pred_check
          %p261 = pneg %p57
        $region42: #{tpu_custom_call.1} parent=39 // pred_check_branch
          %263 = sbr.rel (%p261) target = $region44
        $region43: #{tpu_custom_call.1} parent=39 // pred_region
          %264 = dma.done %s257, 192
        $region44: #{tpu_custom_call.1} parent=39 // pred_fallthru
          _
        // Predicated region
        $region45: #{tpu_custom_call.1} parent=39 // pred_check
          %p265 = pneg %p78
        $region46: #{tpu_custom_call.1} parent=39 // pred_check_branch
          %267 = sbr.rel (%p265) target = $region48
        $region47: #{tpu_custom_call.1} parent=39 // pred_region
          %268 = dma.done [#allocation10], 9216
        $region48: #{tpu_custom_call.1} parent=39 // pred_fallthru
          _
        // Predicated region
        $region49: #{tpu_custom_call.1} parent=39 // pred_check
          %p269 = pneg %p99
        $region50: #{tpu_custom_call.1} parent=39 // pred_check_branch
          %271 = sbr.rel (%p269) target = $region52
        $region51: #{tpu_custom_call.1} parent=39 // pred_region
          %272 = dma.done [#allocation10], 18432
        $region52: #{tpu_custom_call.1} parent=39 // pred_fallthru
          _
        // Predicated region
        $region53: #{tpu_custom_call.1} parent=39 // pred_check
          %p273 = pneg %p120
        $region54: #{tpu_custom_call.1} parent=39 // pred_check_branch
          %275 = sbr.rel (%p273) target = $region56
        $region55: #{tpu_custom_call.1} parent=39 // pred_region
          %276 = dma.done [#allocation13], 9216
        $region56: #{tpu_custom_call.1} parent=39 // pred_fallthru
          _
        %s277 = sand.u32 %s44, 1
        %s278 = scalar_lea.sflag [#allocation7], %s277
        %s279 = sand.u32 %s44, 1
        %s280 = smul.addr %s279, 12
        %s281 = scalar_lea.vmem [#allocation6], %s280
        %p282 = pneg %p57
        %p283 = pneg %p54
        %p284 = pneg %p78
        %p285 = pneg %p75
        %p286 = pneg %p99
        %p287 = pneg %p96
        %p288 = pneg %p120
        %p289 = pneg %p117
        %p290 = pneg %p141
        %p291 = pneg %p138
        %p292 = pneg %p169
        %p293 = pneg %p166
        %s294 = sand.u32 %s156, 1
        %s295 = scalar_lea.sflag [#allocation8], %s294
        %s296 = sand.u32 %s156, 1
        %s297 = smul.addr %s296, 24
        %s298 = scalar_lea.vmem [#allocation14], %s297
        %s300 = smul.u32 %s29, 8
        %s301 = sshra.s32 %s300, 3
        %s302 = sand.u32 %s300, 7
        %s303 = smul.u32 %s301, 3
        %s304 = smul.addr %s303, 4
        %s305 = scalar_lea.vmem %s260, %s304 [#allocation6]
        %v306 = vld [vmem:[%s305] sm:$0xff]
        %v307 = vld [vmem:[%s305 + $0x8] sm:$0xf]
        %v308 = vld [vmem:[#allocation9] sm:$0xff]
        %v309 = vld [vmem:[#allocation9 + $0x8] sm:$0xf]
        %v310 = vld [vmem:[#allocation9 + $0xc] sm:$0xff]
        %v311 = vld [vmem:[#allocation9 + $0x14] sm:$0xf]
        %v312 = vld [vmem:[#allocation9 + $0x18] sm:$0xff]
        %v313 = vld [vmem:[#allocation9 + $0x20] sm:$0xf]
        %v314 = vld [vmem:[#allocation9 + $0x24] sm:$0xff]
        %v315 = vld [vmem:[#allocation9 + $0x2c] sm:$0xf]
        %v316 = vld [vmem:[#allocation9 + $0x30] sm:$0xff]
        %v317 = vld [vmem:[#allocation9 + $0x38] sm:$0xf]
        %v318 = vld [vmem:[#allocation9 + $0x3c] sm:$0xff]
        %v319 = vld [vmem:[#allocation9 + $0x44] sm:$0xf]
        %v320 = vld [vmem:[#allocation9 + $0x48] sm:$0xff]
        %v321 = vld [vmem:[#allocation9 + $0x50] sm:$0xf]
        %v322 = vld [vmem:[#allocation9 + $0x54] sm:$0xff]
        %v323 = vld [vmem:[#allocation9 + $0x5c] sm:$0xf]
        %v324 = vld [vmem:[#allocation9 + $0x60] sm:$0xff]
        %v325 = vld [vmem:[#allocation9 + $0x68] sm:$0xf]
        %v326 = vld [vmem:[#allocation9 + $0x6c] sm:$0xff]
        %v327 = vld [vmem:[#allocation9 + $0x74] sm:$0xf]
        %v328 = vld [vmem:[#allocation9 + $0x78] sm:$0xff]
        %v329 = vld [vmem:[#allocation9 + $0x80] sm:$0xf]
        %v330 = vld [vmem:[#allocation9 + $0x84] sm:$0xff]
        %v331 = vld [vmem:[#allocation9 + $0x8c] sm:$0xf]
        %v332 = vld [vmem:[#allocation9 + $0x90] sm:$0xff]
        %v333 = vld [vmem:[#allocation9 + $0x98] sm:$0xf]
        %v334 = vld [vmem:[#allocation9 + $0x9c] sm:$0xff]
        %v335 = vld [vmem:[#allocation9 + $0xa4] sm:$0xf]
        %v336 = vld [vmem:[#allocation9 + $0xa8] sm:$0xff]
        %v337 = vld [vmem:[#allocation9 + $0xb0] sm:$0xf]
        %v338 = vld [vmem:[#allocation9 + $0xb4] sm:$0xff]
        %v339 = vld [vmem:[#allocation9 + $0xbc] sm:$0xf]
        %v340 = vld [vmem:[#allocation9 + $0xc0] sm:$0xff]
        %v341 = vld [vmem:[#allocation9 + $0xc8] sm:$0xf]
        %v342 = vld [vmem:[#allocation9 + $0xcc] sm:$0xff]
        %v343 = vld [vmem:[#allocation9 + $0xd4] sm:$0xf]
        %v344 = vld [vmem:[#allocation9 + $0xd8] sm:$0xff]
        %v345 = vld [vmem:[#allocation9 + $0xe0] sm:$0xf]
        %v346 = vld [vmem:[#allocation9 + $0xe4] sm:$0xff]
        %v347 = vld [vmem:[#allocation9 + $0xec] sm:$0xf]
        %v348 = vld [vmem:[#allocation9 + $0xf0] sm:$0xff]
        %v349 = vld [vmem:[#allocation9 + $0xf8] sm:$0xf]
        %v350 = vld [vmem:[#allocation9 + $0xfc] sm:$0xff]
        %v351 = vld [vmem:[#allocation9 + $0x104] sm:$0xf]
        %v352 = vld [vmem:[#allocation9 + $0x108] sm:$0xff]
        %v353 = vld [vmem:[#allocation9 + $0x110] sm:$0xf]
        %v354 = vld [vmem:[#allocation9 + $0x114] sm:$0xff]
        %v355 = vld [vmem:[#allocation9 + $0x11c] sm:$0xf]
        %v356 = vld [vmem:[#allocation9 + $0x120] sm:$0xff]
        %v357 = vld [vmem:[#allocation9 + $0x128] sm:$0xf]
        %v358 = vld [vmem:[#allocation9 + $0x12c] sm:$0xff]
        %v359 = vld [vmem:[#allocation9 + $0x134] sm:$0xf]
        %v360 = vld [vmem:[#allocation9 + $0x138] sm:$0xff]
        %v361 = vld [vmem:[#allocation9 + $0x140] sm:$0xf]
        %v362 = vld [vmem:[#allocation9 + $0x144] sm:$0xff]
        %v363 = vld [vmem:[#allocation9 + $0x14c] sm:$0xf]
        %v364 = vld [vmem:[#allocation9 + $0x150] sm:$0xff]
        %v365 = vld [vmem:[#allocation9 + $0x158] sm:$0xf]
        %v366 = vld [vmem:[#allocation9 + $0x15c] sm:$0xff]
        %v367 = vld [vmem:[#allocation9 + $0x164] sm:$0xf]
        %v368 = vld [vmem:[#allocation9 + $0x168] sm:$0xff]
        %v369 = vld [vmem:[#allocation9 + $0x170] sm:$0xf]
        %v370 = vld [vmem:[#allocation9 + $0x174] sm:$0xff]
        %v371 = vld [vmem:[#allocation9 + $0x17c] sm:$0xf]
        %v372 = vld [vmem:[#allocation9 + $0x180] sm:$0xff]
        %v373 = vld [vmem:[#allocation9 + $0x188] sm:$0xf]
        %v374 = vld [vmem:[#allocation9 + $0x18c] sm:$0xff]
        %v375 = vld [vmem:[#allocation9 + $0x194] sm:$0xf]
        %v376 = vld [vmem:[#allocation9 + $0x198] sm:$0xff]
        %v377 = vld [vmem:[#allocation9 + $0x1a0] sm:$0xf]
        %v378 = vld [vmem:[#allocation9 + $0x1a4] sm:$0xff]
        %v379 = vld [vmem:[#allocation9 + $0x1ac] sm:$0xf]
        %v380 = vld [vmem:[#allocation9 + $0x1b0] sm:$0xff]
        %v381 = vld [vmem:[#allocation9 + $0x1b8] sm:$0xf]
        %v382 = vld [vmem:[#allocation9 + $0x1bc] sm:$0xff]
        %v383 = vld [vmem:[#allocation9 + $0x1c4] sm:$0xf]
        %v384 = vld [vmem:[#allocation9 + $0x1c8] sm:$0xff]
        %v385 = vld [vmem:[#allocation9 + $0x1d0] sm:$0xf]
        %v386 = vld [vmem:[#allocation9 + $0x1d4] sm:$0xff]
        %v387 = vld [vmem:[#allocation9 + $0x1dc] sm:$0xf]
        %v388 = vld [vmem:[#allocation9 + $0x1e0] sm:$0xff]
        %v389 = vld [vmem:[#allocation9 + $0x1e8] sm:$0xf]
        %v390 = vld [vmem:[#allocation9 + $0x1ec] sm:$0xff]
        %v391 = vld [vmem:[#allocation9 + $0x1f4] sm:$0xf]
        %v392 = vld [vmem:[#allocation9 + $0x1f8] sm:$0xff]
        %v393 = vld [vmem:[#allocation9 + $0x200] sm:$0xf]
        %v394 = vld [vmem:[#allocation9 + $0x204] sm:$0xff]
        %v395 = vld [vmem:[#allocation9 + $0x20c] sm:$0xf]
        %v396 = vld [vmem:[#allocation9 + $0x210] sm:$0xff]
        %v397 = vld [vmem:[#allocation9 + $0x218] sm:$0xf]
        %v398 = vld [vmem:[#allocation9 + $0x21c] sm:$0xff]
        %v399 = vld [vmem:[#allocation9 + $0x224] sm:$0xf]
        %v400 = vld [vmem:[#allocation9 + $0x228] sm:$0xff]
        %v401 = vld [vmem:[#allocation9 + $0x230] sm:$0xf]
        %v402 = vld [vmem:[#allocation9 + $0x234] sm:$0xff]
        %v403 = vld [vmem:[#allocation9 + $0x23c] sm:$0xf]
        %v406 = vunpack.c.l.b16 %v306
        %v407 = vunpack.c.h.b16 %v306
        %v408 = vunpack.c.l.b16 %v307
        %v409 = vpack.c.b16 %v406, %v406
        %v410 = vpack.c.b16 %v407, %v407
        %v411 = vpack.c.b16 %v408, %v408
        %v511 = vunpack.c.l.b16 %v308
        %v512 = vunpack.c.h.b16 %v308
        %v513 = vunpack.c.l.b16 %v309
        %v514 = vunpack.c.l.b16 %v310
        %v515 = vunpack.c.h.b16 %v310
        %v516 = vunpack.c.l.b16 %v311
        %v517 = vunpack.c.l.b16 %v312
        %v518 = vunpack.c.h.b16 %v312
        %v519 = vunpack.c.l.b16 %v313
        %v520 = vunpack.c.l.b16 %v314
        %v521 = vunpack.c.h.b16 %v314
        %v522 = vunpack.c.l.b16 %v315
        %v523 = vunpack.c.l.b16 %v316
        %v524 = vunpack.c.h.b16 %v316
        %v525 = vunpack.c.l.b16 %v317
        %v526 = vunpack.c.l.b16 %v318
        %v527 = vunpack.c.h.b16 %v318
        %v528 = vunpack.c.l.b16 %v319
        %v529 = vunpack.c.l.b16 %v320
        %v530 = vunpack.c.h.b16 %v320
        %v531 = vunpack.c.l.b16 %v321
        %v532 = vunpack.c.l.b16 %v322
        %v533 = vunpack.c.h.b16 %v322
        %v534 = vunpack.c.l.b16 %v323
        %v535 = vunpack.c.l.b16 %v324
        %v536 = vunpack.c.h.b16 %v324
        %v537 = vunpack.c.l.b16 %v325
        %v538 = vunpack.c.l.b16 %v326
        %v539 = vunpack.c.h.b16 %v326
        %v540 = vunpack.c.l.b16 %v327
        %v541 = vunpack.c.l.b16 %v328
        %v542 = vunpack.c.h.b16 %v328
        %v543 = vunpack.c.l.b16 %v329
        %v544 = vunpack.c.l.b16 %v330
        %v545 = vunpack.c.h.b16 %v330
        %v546 = vunpack.c.l.b16 %v331
        %v547 = vunpack.c.l.b16 %v332
        %v548 = vunpack.c.h.b16 %v332
        %v549 = vunpack.c.l.b16 %v333
        %v550 = vunpack.c.l.b16 %v334
        %v551 = vunpack.c.h.b16 %v334
        %v552 = vunpack.c.l.b16 %v335
        %v553 = vunpack.c.l.b16 %v336
        %v554 = vunpack.c.h.b16 %v336
        %v555 = vunpack.c.l.b16 %v337
        %v556 = vunpack.c.l.b16 %v338
        %v557 = vunpack.c.h.b16 %v338
        %v558 = vunpack.c.l.b16 %v339
        %v559 = vunpack.c.l.b16 %v340
        %v560 = vunpack.c.h.b16 %v340
        %v561 = vunpack.c.l.b16 %v341
        %v562 = vunpack.c.l.b16 %v342
        %v563 = vunpack.c.h.b16 %v342
        %v564 = vunpack.c.l.b16 %v343
        %v565 = vunpack.c.l.b16 %v344
        %v566 = vunpack.c.h.b16 %v344
        %v567 = vunpack.c.l.b16 %v345
        %v568 = vunpack.c.l.b16 %v346
        %v569 = vunpack.c.h.b16 %v346
        %v570 = vunpack.c.l.b16 %v347
        %v571 = vunpack.c.l.b16 %v348
        %v572 = vunpack.c.h.b16 %v348
        %v573 = vunpack.c.l.b16 %v349
        %v574 = vunpack.c.l.b16 %v350
        %v575 = vunpack.c.h.b16 %v350
        %v576 = vunpack.c.l.b16 %v351
        %v577 = vunpack.c.l.b16 %v352
        %v578 = vunpack.c.h.b16 %v352
        %v579 = vunpack.c.l.b16 %v353
        %v580 = vunpack.c.l.b16 %v354
        %v581 = vunpack.c.h.b16 %v354
        %v582 = vunpack.c.l.b16 %v355
        %v583 = vunpack.c.l.b16 %v356
        %v584 = vunpack.c.h.b16 %v356
        %v585 = vunpack.c.l.b16 %v357
        %v586 = vunpack.c.l.b16 %v358
        %v587 = vunpack.c.h.b16 %v358
        %v588 = vunpack.c.l.b16 %v359
        %v589 = vunpack.c.l.b16 %v360
        %v590 = vunpack.c.h.b16 %v360
        %v591 = vunpack.c.l.b16 %v361
        %v592 = vunpack.c.l.b16 %v362
        %v593 = vunpack.c.h.b16 %v362
        %v594 = vunpack.c.l.b16 %v363
        %v595 = vunpack.c.l.b16 %v364
        %v596 = vunpack.c.h.b16 %v364
        %v597 = vunpack.c.l.b16 %v365
        %v598 = vunpack.c.l.b16 %v366
        %v599 = vunpack.c.h.b16 %v366
        %v600 = vunpack.c.l.b16 %v367
        %v601 = vunpack.c.l.b16 %v368
        %v602 = vunpack.c.h.b16 %v368
        %v603 = vunpack.c.l.b16 %v369
        %v604 = vunpack.c.l.b16 %v370
        %v605 = vunpack.c.h.b16 %v370
        %v606 = vunpack.c.l.b16 %v371
        %v607 = vunpack.c.l.b16 %v372
        %v608 = vunpack.c.h.b16 %v372
        %v609 = vunpack.c.l.b16 %v373
        %v610 = vunpack.c.l.b16 %v374
        %v611 = vunpack.c.h.b16 %v374
        %v612 = vunpack.c.l.b16 %v375
        %v613 = vunpack.c.l.b16 %v376
        %v614 = vunpack.c.h.b16 %v376
        %v615 = vunpack.c.l.b16 %v377
        %v616 = vunpack.c.l.b16 %v378
        %v617 = vunpack.c.h.b16 %v378
        %v618 = vunpack.c.l.b16 %v379
        %v619 = vunpack.c.l.b16 %v380
        %v620 = vunpack.c.h.b16 %v380
        %v621 = vunpack.c.l.b16 %v381
        %v622 = vunpack.c.l.b16 %v382
        %v623 = vunpack.c.h.b16 %v382
        %v624 = vunpack.c.l.b16 %v383
        %v625 = vunpack.c.l.b16 %v384
        %v626 = vunpack.c.h.b16 %v384
        %v627 = vunpack.c.l.b16 %v385
        %v628 = vunpack.c.l.b16 %v386
        %v629 = vunpack.c.h.b16 %v386
        %v630 = vunpack.c.l.b16 %v387
        %v631 = vunpack.c.l.b16 %v388
        %v632 = vunpack.c.h.b16 %v388
        %v633 = vunpack.c.l.b16 %v389
        %v634 = vunpack.c.l.b16 %v390
        %v635 = vunpack.c.h.b16 %v390
        %v636 = vunpack.c.l.b16 %v391
        %v637 = vunpack.c.l.b16 %v392
        %v638 = vunpack.c.h.b16 %v392
        %v639 = vunpack.c.l.b16 %v393
        %v640 = vunpack.c.l.b16 %v394
        %v641 = vunpack.c.h.b16 %v394
        %v642 = vunpack.c.l.b16 %v395
        %v643 = vunpack.c.l.b16 %v396
        %v644 = vunpack.c.h.b16 %v396
        %v645 = vunpack.c.l.b16 %v397
        %v646 = vunpack.c.l.b16 %v398
        %v647 = vunpack.c.h.b16 %v398
        %v648 = vunpack.c.l.b16 %v399
        %v649 = vunpack.c.l.b16 %v400
        %v650 = vunpack.c.h.b16 %v400
        %v651 = vunpack.c.l.b16 %v401
        %v652 = vunpack.c.l.b16 %v402
        %v653 = vunpack.c.h.b16 %v402
        %v654 = vunpack.c.l.b16 %v403
        %v655 = vpack.c.b16 %v514, %v511
        %v656 = vpack.c.b16 %v515, %v512
        %v657 = vpack.c.b16 %v516, %v513
        %v658 = vpack.c.b16 %v520, %v517
        %v659 = vpack.c.b16 %v521, %v518
        %v660 = vpack.c.b16 %v522, %v519
        %v661 = vpack.c.b16 %v526, %v523
        %v662 = vpack.c.b16 %v527, %v524
        %v663 = vpack.c.b16 %v528, %v525
        %v664 = vpack.c.b16 %v532, %v529
        %v665 = vpack.c.b16 %v533, %v530
        %v666 = vpack.c.b16 %v534, %v531
        %v667 = vpack.c.b16 %v538, %v535
        %v668 = vpack.c.b16 %v539, %v536
        %v669 = vpack.c.b16 %v540, %v537
        %v670 = vpack.c.b16 %v544, %v541
        %v671 = vpack.c.b16 %v545, %v542
        %v672 = vpack.c.b16 %v546, %v543
        %v673 = vpack.c.b16 %v550, %v547
        %v674 = vpack.c.b16 %v551, %v548
        %v675 = vpack.c.b16 %v552, %v549
        %v676 = vpack.c.b16 %v556, %v553
        %v677 = vpack.c.b16 %v557, %v554
        %v678 = vpack.c.b16 %v558, %v555
        %v679 = vpack.c.b16 %v562, %v559
        %v680 = vpack.c.b16 %v563, %v560
        %v681 = vpack.c.b16 %v564, %v561
        %v682 = vpack.c.b16 %v568, %v565
        %v683 = vpack.c.b16 %v569, %v566
        %v684 = vpack.c.b16 %v570, %v567
        %v685 = vpack.c.b16 %v574, %v571
        %v686 = vpack.c.b16 %v575, %v572
        %v687 = vpack.c.b16 %v576, %v573
        %v688 = vpack.c.b16 %v580, %v577
        %v689 = vpack.c.b16 %v581, %v578
        %v690 = vpack.c.b16 %v582, %v579
        %v691 = vpack.c.b16 %v586, %v583
        %v692 = vpack.c.b16 %v587, %v584
        %v693 = vpack.c.b16 %v588, %v585
        %v694 = vpack.c.b16 %v592, %v589
        %v695 = vpack.c.b16 %v593, %v590
        %v696 = vpack.c.b16 %v594, %v591
        %v697 = vpack.c.b16 %v598, %v595
        %v698 = vpack.c.b16 %v599, %v596
        %v699 = vpack.c.b16 %v600, %v597
        %v700 = vpack.c.b16 %v604, %v601
        %v701 = vpack.c.b16 %v605, %v602
        %v702 = vpack.c.b16 %v606, %v603
        %v703 = vpack.c.b16 %v610, %v607
        %v704 = vpack.c.b16 %v611, %v608
        %v705 = vpack.c.b16 %v612, %v609
        %v706 = vpack.c.b16 %v616, %v613
        %v707 = vpack.c.b16 %v617, %v614
        %v708 = vpack.c.b16 %v618, %v615
        %v709 = vpack.c.b16 %v622, %v619
        %v710 = vpack.c.b16 %v623, %v620
        %v711 = vpack.c.b16 %v624, %v621
        %v712 = vpack.c.b16 %v628, %v625
        %v713 = vpack.c.b16 %v629, %v626
        %v714 = vpack.c.b16 %v630, %v627
        %v715 = vpack.c.b16 %v634, %v631
        %v716 = vpack.c.b16 %v635, %v632
        %v717 = vpack.c.b16 %v636, %v633
        %v718 = vpack.c.b16 %v640, %v637
        %v719 = vpack.c.b16 %v641, %v638
        %v720 = vpack.c.b16 %v642, %v639
        %v721 = vpack.c.b16 %v646, %v643
        %v722 = vpack.c.b16 %v647, %v644
        %v723 = vpack.c.b16 %v648, %v645
        %v724 = vpack.c.b16 %v652, %v649
        %v725 = vpack.c.b16 %v653, %v650
        %v726 = vpack.c.b16 %v654, %v651
        %799 = vmatprep.subr.bf16.mxu0 %v656
        %800 = vmatpush1.bf16.msra.mxu0 %v655
        %801 = vmatprep.subr.bf16.mxu0 %v659
        %802 = vmatpush1.bf16.msra.mxu0 %v658
        %803 = vmatprep.subr.bf16.mxu0 %v662
        %804 = vmatpush1.bf16.msra.mxu0 %v661
        %805 = vmatprep.subr.bf16.mxu0 %v665
        %806 = vmatpush1.bf16.msra.mxu0 %v664
        %807 = vmatprep.subr.bf16.mxu0 %v668
        %808 = vmatpush1.bf16.msra.mxu0 %v667
        %809 = vmatprep.subr.bf16.mxu0 %v671
        %810 = vmatpush1.bf16.msra.mxu0 %v670
        %811 = vmatprep.subr.bf16.mxu0 %v674
        %812 = vmatpush1.bf16.msra.mxu0 %v673
        %813 = vmatprep.subr.bf16.mxu0 %v677
        %814 = vmatpush1.bf16.msra.mxu0 %v676
        %815 = vmatprep.subr.bf16.mxu0 %v680
        %816 = vmatpush1.bf16.msra.mxu0 %v679
        %817 = vmatprep.subr.bf16.mxu0 %v683
        %818 = vmatpush1.bf16.msra.mxu0 %v682
        %819 = vmatprep.subr.bf16.mxu0 %v686
        %820 = vmatpush1.bf16.msra.mxu0 %v685
        %821 = vmatprep.subr.bf16.mxu0 %v689
        %822 = vmatpush1.bf16.msra.mxu0 %v688
        %823 = vmatprep.subr.bf16.mxu0 %v692
        %824 = vmatpush1.bf16.msra.mxu0 %v691
        %825 = vmatprep.subr.bf16.mxu0 %v695
        %826 = vmatpush1.bf16.msra.mxu0 %v694
        %827 = vmatprep.subr.bf16.mxu0 %v698
        %828 = vmatpush1.bf16.msra.mxu0 %v697
        %829 = vmatprep.subr.bf16.mxu0 %v701
        %830 = vmatpush1.bf16.msra.mxu0 %v700
        %831 = vmatprep.mubr.bf16.mxu0 %v410
        %832 = vmatmul.mubr.bf16.gmra.mrb[0].mxu0 %v409
        %v833 = vpop.f32.mrb[0].mxu0
        %v834 = vadd.f32 0.0, %v833
        %v835 = vpop.f32.mrb[0].mxu0
        %v836 = vadd.f32 0.0, %v835
        %v837 = vpop.f32.mrb[0].mxu0
        %v838 = vpop.f32.mrb[0].mxu0
        %839 = vdwg.mxu0
        %840 = vmatprep.subr.bf16.mxu0 %v704
        %841 = vmatpush1.bf16.msra.mxu0 %v703
        %842 = vmatprep.subr.bf16.mxu0 %v707
        %843 = vmatpush1.bf16.msra.mxu0 %v706
        %844 = vmatprep.subr.bf16.mxu0 %v710
        %845 = vmatpush1.bf16.msra.mxu0 %v709
        %846 = vmatprep.subr.bf16.mxu0 %v713
        %847 = vmatpush1.bf16.msra.mxu0 %v712
        %848 = vmatprep.subr.bf16.mxu0 %v716
        %849 = vmatpush1.bf16.msra.mxu0 %v715
        %850 = vmatprep.subr.bf16.mxu0 %v719
        %851 = vmatpush1.bf16.msra.mxu0 %v718
        %852 = vmatprep.subr.bf16.mxu0 %v722
        %853 = vmatpush1.bf16.msra.mxu0 %v721
        %854 = vmatprep.subr.bf16.mxu0 %v725
        %855 = vmatpush1.bf16.msra.mxu0 %v724
        %856 = vmatprep.subr.bf16.mxu0 0
        %857 = vmatpush1.bf16.msra.mxu0 0
        %858 = vmatprep.subr.bf16.mxu0 0
        %859 = vmatpush1.bf16.msra.mxu0 0
        %860 = vmatprep.subr.bf16.mxu0 0
        %861 = vmatpush1.bf16.msra.mxu0 0
        %862 = vmatprep.subr.bf16.mxu0 0
        %863 = vmatpush1.bf16.msra.mxu0 0
        %864 = vmatprep.subr.bf16.mxu0 0
        %865 = vmatpush1.bf16.msra.mxu0 0
        %866 = vmatprep.subr.bf16.mxu0 0
        %867 = vmatpush1.bf16.msra.mxu0 0
        %868 = vmatprep.subr.bf16.mxu0 0
        %869 = vmatpush1.bf16.msra.mxu0 0
        %870 = vmatprep.subr.bf16.mxu0 0
        %871 = vmatpush1.bf16.msra.mxu0 0
        %872 = vmatprep.mubr.bf16.mxu0 0
        %873 = vmatmul.mubr.bf16.gmra.mrb[0].mxu0 %v411
        %v874 = vpop.f32.mrb[0].mxu0
        %v875 = vadd.f32 %v834, %v874
        %v876 = vpop.f32.mrb[0].mxu0
        %v877 = vadd.f32 %v836, %v876
        %v878 = vpop.f32.mrb[0].mxu0
        %v879 = vpop.f32.mrb[0].mxu0
        %880 = vdwg.mxu0
        %881 = vmatprep.subr.bf16.mxu0 0
        %882 = vmatpush1.bf16.msra.mxu0 %v657
        %883 = vmatprep.subr.bf16.mxu0 0
        %884 = vmatpush1.bf16.msra.mxu0 %v660
        %885 = vmatprep.subr.bf16.mxu0 0
        %886 = vmatpush1.bf16.msra.mxu0 %v663
        %887 = vmatprep.subr.bf16.mxu0 0
        %888 = vmatpush1.bf16.msra.mxu0 %v666
        %889 = vmatprep.subr.bf16.mxu0 0
        %890 = vmatpush1.bf16.msra.mxu0 %v669
        %891 = vmatprep.subr.bf16.mxu0 0
        %892 = vmatpush1.bf16.msra.mxu0 %v672
        %893 = vmatprep.subr.bf16.mxu0 0
        %894 = vmatpush1.bf16.msra.mxu0 %v675
        %895 = vmatprep.subr.bf16.mxu0 0
        %896 = vmatpush1.bf16.msra.mxu0 %v678
        %897 = vmatprep.subr.bf16.mxu0 0
        %898 = vmatpush1.bf16.msra.mxu0 %v681
        %899 = vmatprep.subr.bf16.mxu0 0
        %900 = vmatpush1.bf16.msra.mxu0 %v684
        %901 = vmatprep.subr.bf16.mxu0 0
        %902 = vmatpush1.bf16.msra.mxu0 %v687
        %903 = vmatprep.subr.bf16.mxu0 0
        %904 = vmatpush1.bf16.msra.mxu0 %v690
        %905 = vmatprep.subr.bf16.mxu0 0
        %906 = vmatpush1.bf16.msra.mxu0 %v693
        %907 = vmatprep.subr.bf16.mxu0 0
        %908 = vmatpush1.bf16.msra.mxu0 %v696
        %909 = vmatprep.subr.bf16.mxu0 0
        %910 = vmatpush1.bf16.msra.mxu0 %v699
        %911 = vmatprep.subr.bf16.mxu0 0
        %912 = vmatpush1.bf16.msra.mxu0 %v702
        %913 = vmatprep.mubr.bf16.mxu0 %v410
        %914 = vmatmul.mubr.bf16.gmra.mrb[0].mxu0 %v409
        %v915 = vpop.f32.mrb[0].mxu0
        %v916 = vadd.f32 0.0, %v915
        %v917 = vpop.f32.mrb[0].mxu0
        %v918 = vpop.f32.mrb[0].mxu0
        %v919 = vpop.f32.mrb[0].mxu0
        %920 = vdwg.mxu0
        %921 = vmatprep.subr.bf16.mxu0 0
        %922 = vmatpush1.bf16.msra.mxu0 %v705
        %923 = vmatprep.subr.bf16.mxu0 0
        %924 = vmatpush1.bf16.msra.mxu0 %v708
        %925 = vmatprep.subr.bf16.mxu0 0
        %926 = vmatpush1.bf16.msra.mxu0 %v711
        %927 = vmatprep.subr.bf16.mxu0 0
        %928 = vmatpush1.bf16.msra.mxu0 %v714
        %929 = vmatprep.subr.bf16.mxu0 0
        %930 = vmatpush1.bf16.msra.mxu0 %v717
        %931 = vmatprep.subr.bf16.mxu0 0
        %932 = vmatpush1.bf16.msra.mxu0 %v720
        %933 = vmatprep.subr.bf16.mxu0 0
        %934 = vmatpush1.bf16.msra.mxu0 %v723
        %935 = vmatprep.subr.bf16.mxu0 0
        %936 = vmatpush1.bf16.msra.mxu0 %v726
        %937 = vmatprep.subr.bf16.mxu0 0
        %938 = vmatpush1.bf16.msra.mxu0 0
        %939 = vmatprep.subr.bf16.mxu0 0
        %940 = vmatpush1.bf16.msra.mxu0 0
        %941 = vmatprep.subr.bf16.mxu0 0
        %942 = vmatpush1.bf16.msra.mxu0 0
        %943 = vmatprep.subr.bf16.mxu0 0
        %944 = vmatpush1.bf16.msra.mxu0 0
        %945 = vmatprep.subr.bf16.mxu0 0
        %946 = vmatpush1.bf16.msra.mxu0 0
        %947 = vmatprep.subr.bf16.mxu0 0
        %948 = vmatpush1.bf16.msra.mxu0 0
        %949 = vmatprep.subr.bf16.mxu0 0
        %950 = vmatpush1.bf16.msra.mxu0 0
        %951 = vmatprep.subr.bf16.mxu0 0
        %952 = vmatpush1.bf16.msra.mxu0 0
        %953 = vmatprep.mubr.bf16.mxu0 0
        %954 = vmatmul.mubr.bf16.gmra.mrb[0].mxu0 %v411
        %v955 = vpop.f32.mrb[0].mxu0
        %v956 = vadd.f32 %v916, %v955
        %v957 = vpop.f32.mrb[0].mxu0
        %v958 = vpop.f32.mrb[0].mxu0
        %v959 = vpop.f32.mrb[0].mxu0
        %960 = vdwg.mxu0
        %v961 = vmul.f32 %v875, 0.125
        %v962 = vmul.f32 %v877, 0.125
        %v963 = vmul.f32 %v956, 0.125
        %v964 = vpack.c.bf16 %v961, %v961
        %v965 = vpack.c.bf16 %v962, %v962
        %v966 = vpack.c.bf16 %v963, %v963
        %vm967 = vcmask 7168
        %968 = vst.msk [vmem:[#allocation2] sm:$0xff] %vm967, -inf
        %969 = vst.msk [vmem:[#allocation2 + $0x8] sm:$0xff] %vm967, -inf
        %970 = vst.msk [vmem:[#allocation2 + $0x10] sm:$0xff] %vm967, -inf
        %971 = vst.msk [vmem:[#allocation2 + $0x18] sm:$0xff] %vm967, -inf
        %972 = vst.msk [vmem:[#allocation2 + $0x20] sm:$0xff] %vm967, -inf
        %973 = vst.msk [vmem:[#allocation2 + $0x28] sm:$0xff] %vm967, -inf
        %974 = vst.msk [vmem:[#allocation3] sm:$0xff] %vm967, 0.0
        %975 = vst.msk [vmem:[#allocation3 + $0x8] sm:$0xff] %vm967, 0.0
        %976 = vst.msk [vmem:[#allocation3 + $0x10] sm:$0xff] %vm967, 0.0
        %977 = vst.msk [vmem:[#allocation3 + $0x18] sm:$0xff] %vm967, 0.0
        %978 = vst.msk [vmem:[#allocation3 + $0x20] sm:$0xff] %vm967, 0.0
        %979 = vst.msk [vmem:[#allocation3 + $0x28] sm:$0xff] %vm967, 0.0
        %vm980 = vcmask 523264
        %981 = vst.msk [vmem:[#allocation4] sm:$0xff] %vm980, 0.0
        %982 = vst.msk [vmem:[#allocation4 + $0x8] sm:$0xff] %vm980, 0.0
        %983 = vst.msk [vmem:[#allocation4 + $0x10] sm:$0xff] %vm980, 0.0
        %984 = vst.msk [vmem:[#allocation4 + $0x18] sm:$0xff] %vm980, 0.0
        %985 = vst.msk [vmem:[#allocation4 + $0x20] sm:$0xff] %vm980, 0.0
        %986 = vst.msk [vmem:[#allocation4 + $0x28] sm:$0xff] %vm980, 0.0
        %v987 = vlaneseq
        %v988 = vshrl.u32 %v987, 7
        %v989 = vstv %s300
        %v990 = vadd.s32 %v989, %v988
        %s991 = sadd.s32 %s29, 1
        // While loop
        $region57: #{tpu_custom_call.1} parent=39 // loop_pre_header
          _
        $region58: #{tpu_custom_call.1} parent=39 // loop_header
          %s993 = sphi 0, %s995
          %p994 = scmp.ge.s32.totalorder %s993, %s991
        $region59: #{tpu_custom_call.1} parent=39 // loop_header_branch
          %997 = sbr.rel (%p994) target = $region63
        $region60: #{tpu_custom_call.1} parent=39 // loop_body
          %s998 = smul.u32 %s993, 8
          %s999 = sshra.s32 %s998, 3
          %s1000 = sand.u32 %s998, 7
          %s1001 = smul.u32 %s999, 3
          %s1002 = smul.addr %s1001, 4
          %s1003 = scalar_lea.vmem %s260, %s1002 [#allocation6]
          %v1004 = vld [vmem:[%s1003] sm:$0xff]
          %v1005 = vld [vmem:[%s1003 + $0x8] sm:$0xf]
          %v1006 = vld [vmem:[#allocation11] sm:$0xff]
          %v1007 = vld [vmem:[#allocation11 + $0x8] sm:$0xff]
          %v1008 = vld [vmem:[#allocation11 + $0x10] sm:$0xff]
          %v1009 = vld [vmem:[#allocation11 + $0x18] sm:$0xff]
          %v1010 = vld [vmem:[#allocation11 + $0x20] sm:$0xff]
          %v1011 = vld [vmem:[#allocation11 + $0x28] sm:$0xff]
          %v1012 = vld [vmem:[#allocation11 + $0x30] sm:$0xff]
          %v1013 = vld [vmem:[#allocation11 + $0x38] sm:$0xff]
          %v1014 = vld [vmem:[#allocation11 + $0x40] sm:$0xff]
          %v1015 = vld [vmem:[#allocation11 + $0x48] sm:$0xff]
          %v1016 = vld [vmem:[#allocation11 + $0x50] sm:$0xff]
          %v1017 = vld [vmem:[#allocation11 + $0x58] sm:$0xff]
          %v1018 = vld [vmem:[#allocation11 + $0x60] sm:$0xff]
          %v1019 = vld [vmem:[#allocation11 + $0x68] sm:$0xff]
          %v1020 = vld [vmem:[#allocation11 + $0x70] sm:$0xff]
          %v1021 = vld [vmem:[#allocation11 + $0x78] sm:$0xff]
          %v1022 = vld [vmem:[#allocation11 + $0x80] sm:$0xff]
          %v1023 = vld [vmem:[#allocation11 + $0x88] sm:$0xff]
          %v1024 = vld [vmem:[#allocation11 + $0x90] sm:$0xff]
          %v1025 = vld [vmem:[#allocation11 + $0x98] sm:$0xff]
          %v1026 = vld [vmem:[#allocation11 + $0xa0] sm:$0xff]
          %v1027 = vld [vmem:[#allocation11 + $0xa8] sm:$0xff]
          %v1028 = vld [vmem:[#allocation11 + $0xb0] sm:$0xff]
          %v1029 = vld [vmem:[#allocation11 + $0xb8] sm:$0xff]
          %v1030 = vld [vmem:[#allocation11 + $0xc0] sm:$0xff]
          %v1031 = vld [vmem:[#allocation11 + $0xc8] sm:$0xff]
          %v1032 = vld [vmem:[#allocation11 + $0xd0] sm:$0xff]
          %v1033 = vld [vmem:[#allocation11 + $0xd8] sm:$0xff]
          %v1034 = vld [vmem:[#allocation11 + $0xe0] sm:$0xff]
          %v1035 = vld [vmem:[#allocation11 + $0xe8] sm:$0xff]
          %v1036 = vld [vmem:[#allocation11 + $0xf0] sm:$0xff]
          %v1037 = vld [vmem:[#allocation11 + $0xf8] sm:$0xff]
          %v1038 = vld [vmem:[#allocation11 + $0x100] sm:$0xff]
          %v1039 = vld [vmem:[#allocation11 + $0x108] sm:$0xff]
          %v1040 = vld [vmem:[#allocation11 + $0x110] sm:$0xff]
          %v1041 = vld [vmem:[#allocation11 + $0x118] sm:$0xff]
          %v1042 = vld [vmem:[#allocation11 + $0x120] sm:$0xff]
          %v1043 = vld [vmem:[#allocation11 + $0x128] sm:$0xff]
          %v1044 = vld [vmem:[#allocation11 + $0x130] sm:$0xff]
          %v1045 = vld [vmem:[#allocation11 + $0x138] sm:$0xff]
          %v1046 = vld [vmem:[#allocation11 + $0x140] sm:$0xff]
          %v1047 = vld [vmem:[#allocation11 + $0x148] sm:$0xff]
          %v1048 = vld [vmem:[#allocation11 + $0x150] sm:$0xff]
          %v1049 = vld [vmem:[#allocation11 + $0x158] sm:$0xff]
          %v1050 = vld [vmem:[#allocation11 + $0x160] sm:$0xff]
          %v1051 = vld [vmem:[#allocation11 + $0x168] sm:$0xff]
          %v1052 = vld [vmem:[#allocation11 + $0x170] sm:$0xff]
          %v1053 = vld [vmem:[#allocation11 + $0x178] sm:$0xff]
          %v1054 = vld [vmem:[#allocation11 + $0x180] sm:$0xff]
          %v1055 = vld [vmem:[#allocation11 + $0x188] sm:$0xff]
          %v1056 = vld [vmem:[#allocation11 + $0x190] sm:$0xff]
          %v1057 = vld [vmem:[#allocation11 + $0x198] sm:$0xff]
          %v1058 = vld [vmem:[#allocation11 + $0x1a0] sm:$0xff]
          %v1059 = vld [vmem:[#allocation11 + $0x1a8] sm:$0xff]
          %v1060 = vld [vmem:[#allocation11 + $0x1b0] sm:$0xff]
          %v1061 = vld [vmem:[#allocation11 + $0x1b8] sm:$0xff]
          %v1062 = vld [vmem:[#allocation11 + $0x1c0] sm:$0xff]
          %v1063 = vld [vmem:[#allocation11 + $0x1c8] sm:$0xff]
          %v1064 = vld [vmem:[#allocation11 + $0x1d0] sm:$0xff]
          %v1065 = vld [vmem:[#allocation11 + $0x1d8] sm:$0xff]
          %v1066 = vld [vmem:[#allocation11 + $0x1e0] sm:$0xff]
          %v1067 = vld [vmem:[#allocation11 + $0x1e8] sm:$0xff]
          %v1068 = vld [vmem:[#allocation11 + $0x1f0] sm:$0xff]
          %v1069 = vld [vmem:[#allocation11 + $0x1f8] sm:$0xff]
          %v1070 = vld [vmem:[#allocation11 + $0x200] sm:$0xff]
          %v1071 = vld [vmem:[#allocation11 + $0x208] sm:$0xff]
          %v1072 = vld [vmem:[#allocation11 + $0x210] sm:$0xff]
          %v1073 = vld [vmem:[#allocation11 + $0x218] sm:$0xff]
          %v1074 = vld [vmem:[#allocation11 + $0x220] sm:$0xff]
          %v1075 = vld [vmem:[#allocation11 + $0x228] sm:$0xff]
          %v1076 = vld [vmem:[#allocation11 + $0x230] sm:$0xff]
          %v1077 = vld [vmem:[#allocation11 + $0x238] sm:$0xff]
          %v1078 = vld [vmem:[#allocation11 + $0x240] sm:$0xff]
          %v1079 = vld [vmem:[#allocation11 + $0x248] sm:$0xff]
          %v1080 = vld [vmem:[#allocation11 + $0x250] sm:$0xff]
          %v1081 = vld [vmem:[#allocation11 + $0x258] sm:$0xff]
          %v1082 = vld [vmem:[#allocation11 + $0x260] sm:$0xff]
          %v1083 = vld [vmem:[#allocation11 + $0x268] sm:$0xff]
          %v1084 = vld [vmem:[#allocation11 + $0x270] sm:$0xff]
          %v1085 = vld [vmem:[#allocation11 + $0x278] sm:$0xff]
          %v1086 = vld [vmem:[#allocation11 + $0x280] sm:$0xff]
          %v1087 = vld [vmem:[#allocation11 + $0x288] sm:$0xff]
          %v1088 = vld [vmem:[#allocation11 + $0x290] sm:$0xff]
          %v1089 = vld [vmem:[#allocation11 + $0x298] sm:$0xff]
          %v1090 = vld [vmem:[#allocation11 + $0x2a0] sm:$0xff]
          %v1091 = vld [vmem:[#allocation11 + $0x2a8] sm:$0xff]
          %v1092 = vld [vmem:[#allocation11 + $0x2b0] sm:$0xff]
          %v1093 = vld [vmem:[#allocation11 + $0x2b8] sm:$0xff]
          %v1094 = vld [vmem:[#allocation11 + $0x2c0] sm:$0xff]
          %v1095 = vld [vmem:[#allocation11 + $0x2c8] sm:$0xff]
          %v1096 = vld [vmem:[#allocation11 + $0x2d0] sm:$0xff]
          %v1097 = vld [vmem:[#allocation11 + $0x2d8] sm:$0xff]
          %v1098 = vld [vmem:[#allocation11 + $0x2e0] sm:$0xff]
          %v1099 = vld [vmem:[#allocation11 + $0x2e8] sm:$0xff]
          %v1100 = vld [vmem:[#allocation11 + $0x2f0] sm:$0xff]
          %v1101 = vld [vmem:[#allocation11 + $0x2f8] sm:$0xff]
          %v1102 = vld [vmem:[#allocation11 + $0x300] sm:$0xff]
          %v1103 = vld [vmem:[#allocation11 + $0x308] sm:$0xff]
          %v1104 = vld [vmem:[#allocation11 + $0x310] sm:$0xff]
          %v1105 = vld [vmem:[#allocation11 + $0x318] sm:$0xff]
          %v1106 = vld [vmem:[#allocation11 + $0x320] sm:$0xff]
          %v1107 = vld [vmem:[#allocation11 + $0x328] sm:$0xff]
          %v1108 = vld [vmem:[#allocation11 + $0x330] sm:$0xff]
          %v1109 = vld [vmem:[#allocation11 + $0x338] sm:$0xff]
          %v1110 = vld [vmem:[#allocation11 + $0x340] sm:$0xff]
          %v1111 = vld [vmem:[#allocation11 + $0x348] sm:$0xff]
          %v1112 = vld [vmem:[#allocation11 + $0x350] sm:$0xff]
          %v1113 = vld [vmem:[#allocation11 + $0x358] sm:$0xff]
          %v1114 = vld [vmem:[#allocation11 + $0x360] sm:$0xff]
          %v1115 = vld [vmem:[#allocation11 + $0x368] sm:$0xff]
          %v1116 = vld [vmem:[#allocation11 + $0x370] sm:$0xff]
          %v1117 = vld [vmem:[#allocation11 + $0x378] sm:$0xff]
          %v1118 = vld [vmem:[#allocation11 + $0x380] sm:$0xff]
          %v1119 = vld [vmem:[#allocation11 + $0x388] sm:$0xff]
          %v1120 = vld [vmem:[#allocation11 + $0x390] sm:$0xff]
          %v1121 = vld [vmem:[#allocation11 + $0x398] sm:$0xff]
          %v1122 = vld [vmem:[#allocation11 + $0x3a0] sm:$0xff]
          %v1123 = vld [vmem:[#allocation11 + $0x3a8] sm:$0xff]
          %v1124 = vld [vmem:[#allocation11 + $0x3b0] sm:$0xff]
          %v1125 = vld [vmem:[#allocation11 + $0x3b8] sm:$0xff]
          %v1126 = vld [vmem:[#allocation11 + $0x3c0] sm:$0xff]
          %v1127 = vld [vmem:[#allocation11 + $0x3c8] sm:$0xff]
          %v1128 = vld [vmem:[#allocation11 + $0x3d0] sm:$0xff]
          %v1129 = vld [vmem:[#allocation11 + $0x3d8] sm:$0xff]
          %v1130 = vld [vmem:[#allocation11 + $0x3e0] sm:$0xff]
          %v1131 = vld [vmem:[#allocation11 + $0x3e8] sm:$0xff]
          %v1132 = vld [vmem:[#allocation11 + $0x3f0] sm:$0xff]
          %v1133 = vld [vmem:[#allocation11 + $0x3f8] sm:$0xff]
          %v1134 = vld [vmem:[#allocation11 + $0x400] sm:$0xff]
          %v1135 = vld [vmem:[#allocation11 + $0x408] sm:$0xff]
          %v1136 = vld [vmem:[#allocation11 + $0x410] sm:$0xff]
          %v1137 = vld [vmem:[#allocation11 + $0x418] sm:$0xff]
          %v1138 = vld [vmem:[#allocation11 + $0x420] sm:$0xff]
          %v1139 = vld [vmem:[#allocation11 + $0x428] sm:$0xff]
          %v1140 = vld [vmem:[#allocation11 + $0x430] sm:$0xff]
          %v1141 = vld [vmem:[#allocation11 + $0x438] sm:$0xff]
          %v1142 = vld [vmem:[#allocation11 + $0x440] sm:$0xff]
          %v1143 = vld [vmem:[#allocation11 + $0x448] sm:$0xff]
          %v1144 = vld [vmem:[#allocation11 + $0x450] sm:$0xff]
          %v1145 = vld [vmem:[#allocation11 + $0x458] sm:$0xff]
          %v1146 = vld [vmem:[#allocation11 + $0x460] sm:$0xff]
          %v1147 = vld [vmem:[#allocation11 + $0x468] sm:$0xff]
          %v1148 = vld [vmem:[#allocation11 + $0x470] sm:$0xff]
          %v1149 = vld [vmem:[#allocation11 + $0x478] sm:$0xff]
          %v1152 = vunpack.c.l.b16 %v1004
          %v1153 = vunpack.c.h.b16 %v1004
          %v1154 = vunpack.c.l.b16 %v1005
          %v1155 = vpack.c.b16 %v1152, %v1152
          %v1156 = vpack.c.b16 %v1153, %v1153
          %v1157 = vpack.c.b16 %v1154, %v1154
          %v1305 = vunpack.c.l.b16 %v1006
          %v1306 = vunpack.c.h.b16 %v1006
          %v1307 = vunpack.c.l.b16 %v1007
          %v1308 = vunpack.c.h.b16 %v1007
          %v1309 = vunpack.c.l.b16 %v1008
          %v1310 = vunpack.c.h.b16 %v1008
          %v1311 = vunpack.c.l.b16 %v1009
          %v1312 = vunpack.c.h.b16 %v1009
          %v1313 = vunpack.c.l.b16 %v1010
          %v1314 = vunpack.c.h.b16 %v1010
          %v1315 = vunpack.c.l.b16 %v1011
          %v1316 = vunpack.c.h.b16 %v1011
          %v1317 = vunpack.c.l.b16 %v1012
          %v1318 = vunpack.c.h.b16 %v1012
          %v1319 = vunpack.c.l.b16 %v1013
          %v1320 = vunpack.c.h.b16 %v1013
          %v1321 = vunpack.c.l.b16 %v1014
          %v1322 = vunpack.c.h.b16 %v1014
          %v1323 = vunpack.c.l.b16 %v1015
          %v1324 = vunpack.c.h.b16 %v1015
          %v1325 = vunpack.c.l.b16 %v1016
          %v1326 = vunpack.c.h.b16 %v1016
          %v1327 = vunpack.c.l.b16 %v1017
          %v1328 = vunpack.c.h.b16 %v1017
          %v1329 = vunpack.c.l.b16 %v1018
          %v1330 = vunpack.c.h.b16 %v1018
          %v1331 = vunpack.c.l.b16 %v1019
          %v1332 = vunpack.c.h.b16 %v1019
          %v1333 = vunpack.c.l.b16 %v1020
          %v1334 = vunpack.c.h.b16 %v1020
          %v1335 = vunpack.c.l.b16 %v1021
          %v1336 = vunpack.c.h.b16 %v1021
          %v1337 = vunpack.c.l.b16 %v1022
          %v1338 = vunpack.c.h.b16 %v1022
          %v1339 = vunpack.c.l.b16 %v1023
          %v1340 = vunpack.c.h.b16 %v1023
          %v1341 = vunpack.c.l.b16 %v1024
          %v1342 = vunpack.c.h.b16 %v1024
          %v1343 = vunpack.c.l.b16 %v1025
          %v1344 = vunpack.c.h.b16 %v1025
          %v1345 = vunpack.c.l.b16 %v1026
          %v1346 = vunpack.c.h.b16 %v1026
          %v1347 = vunpack.c.l.b16 %v1027
          %v1348 = vunpack.c.h.b16 %v1027
          %v1349 = vunpack.c.l.b16 %v1028
          %v1350 = vunpack.c.h.b16 %v1028
          %v1351 = vunpack.c.l.b16 %v1029
          %v1352 = vunpack.c.h.b16 %v1029
          %v1353 = vunpack.c.l.b16 %v1030
          %v1354 = vunpack.c.h.b16 %v1030
          %v1355 = vunpack.c.l.b16 %v1031
          %v1356 = vunpack.c.h.b16 %v1031
          %v1357 = vunpack.c.l.b16 %v1032
          %v1358 = vunpack.c.h.b16 %v1032
          %v1359 = vunpack.c.l.b16 %v1033
          %v1360 = vunpack.c.h.b16 %v1033
          %v1361 = vunpack.c.l.b16 %v1034
          %v1362 = vunpack.c.h.b16 %v1034
          %v1363 = vunpack.c.l.b16 %v1035
          %v1364 = vunpack.c.h.b16 %v1035
          %v1365 = vunpack.c.l.b16 %v1036
          %v1366 = vunpack.c.h.b16 %v1036
          %v1367 = vunpack.c.l.b16 %v1037
          %v1368 = vunpack.c.h.b16 %v1037
          %v1369 = vunpack.c.l.b16 %v1038
          %v1370 = vunpack.c.h.b16 %v1038
          %v1371 = vunpack.c.l.b16 %v1039
          %v1372 = vunpack.c.h.b16 %v1039
          %v1373 = vunpack.c.l.b16 %v1040
          %v1374 = vunpack.c.h.b16 %v1040
          %v1375 = vunpack.c.l.b16 %v1041
          %v1376 = vunpack.c.h.b16 %v1041
          %v1377 = vunpack.c.l.b16 %v1042
          %v1378 = vunpack.c.h.b16 %v1042
          %v1379 = vunpack.c.l.b16 %v1043
          %v1380 = vunpack.c.h.b16 %v1043
          %v1381 = vunpack.c.l.b16 %v1044
          %v1382 = vunpack.c.h.b16 %v1044
          %v1383 = vunpack.c.l.b16 %v1045
          %v1384 = vunpack.c.h.b16 %v1045
          %v1385 = vunpack.c.l.b16 %v1046
          %v1386 = vunpack.c.h.b16 %v1046
          %v1387 = vunpack.c.l.b16 %v1047
          %v1388 = vunpack.c.h.b16 %v1047
          %v1389 = vunpack.c.l.b16 %v1048
          %v1390 = vunpack.c.h.b16 %v1048
          %v1391 = vunpack.c.l.b16 %v1049
          %v1392 = vunpack.c.h.b16 %v1049
          %v1393 = vunpack.c.l.b16 %v1050
          %v1394 = vunpack.c.h.b16 %v1050
          %v1395 = vunpack.c.l.b16 %v1051
          %v1396 = vunpack.c.h.b16 %v1051
          %v1397 = vunpack.c.l.b16 %v1052
          %v1398 = vunpack.c.h.b16 %v1052
          %v1399 = vunpack.c.l.b16 %v1053
          %v1400 = vunpack.c.h.b16 %v1053
          %v1401 = vunpack.c.l.b16 %v1054
          %v1402 = vunpack.c.h.b16 %v1054
          %v1403 = vunpack.c.l.b16 %v1055
          %v1404 = vunpack.c.h.b16 %v1055
          %v1405 = vunpack.c.l.b16 %v1056
          %v1406 = vunpack.c.h.b16 %v1056
          %v1407 = vunpack.c.l.b16 %v1057
          %v1408 = vunpack.c.h.b16 %v1057
          %v1409 = vunpack.c.l.b16 %v1058
          %v1410 = vunpack.c.h.b16 %v1058
          %v1411 = vunpack.c.l.b16 %v1059
          %v1412 = vunpack.c.h.b16 %v1059
          %v1413 = vunpack.c.l.b16 %v1060
          %v1414 = vunpack.c.h.b16 %v1060
          %v1415 = vunpack.c.l.b16 %v1061
          %v1416 = vunpack.c.h.b16 %v1061
          %v1417 = vunpack.c.l.b16 %v1062
          %v1418 = vunpack.c.h.b16 %v1062
          %v1419 = vunpack.c.l.b16 %v1063
          %v1420 = vunpack.c.h.b16 %v1063
          %v1421 = vunpack.c.l.b16 %v1064
          %v1422 = vunpack.c.h.b16 %v1064
          %v1423 = vunpack.c.l.b16 %v1065
          %v1424 = vunpack.c.h.b16 %v1065
          %v1425 = vunpack.c.l.b16 %v1066
          %v1426 = vunpack.c.h.b16 %v1066
          %v1427 = vunpack.c.l.b16 %v1067
          %v1428 = vunpack.c.h.b16 %v1067
          %v1429 = vunpack.c.l.b16 %v1068
          %v1430 = vunpack.c.h.b16 %v1068
          %v1431 = vunpack.c.l.b16 %v1069
          %v1432 = vunpack.c.h.b16 %v1069
          %v1433 = vunpack.c.l.b16 %v1070
          %v1434 = vunpack.c.h.b16 %v1070
          %v1435 = vunpack.c.l.b16 %v1071
          %v1436 = vunpack.c.h.b16 %v1071
          %v1437 = vunpack.c.l.b16 %v1072
          %v1438 = vunpack.c.h.b16 %v1072
          %v1439 = vunpack.c.l.b16 %v1073
          %v1440 = vunpack.c.h.b16 %v1073
          %v1441 = vunpack.c.l.b16 %v1074
          %v1442 = vunpack.c.h.b16 %v1074
          %v1443 = vunpack.c.l.b16 %v1075
          %v1444 = vunpack.c.h.b16 %v1075
          %v1445 = vunpack.c.l.b16 %v1076
          %v1446 = vunpack.c.h.b16 %v1076
          %v1447 = vunpack.c.l.b16 %v1077
          %v1448 = vunpack.c.h.b16 %v1077
          %v1449 = vunpack.c.l.b16 %v1078
          %v1450 = vunpack.c.h.b16 %v1078
          %v1451 = vunpack.c.l.b16 %v1079
          %v1452 = vunpack.c.h.b16 %v1079
          %v1453 = vunpack.c.l.b16 %v1080
          %v1454 = vunpack.c.h.b16 %v1080
          %v1455 = vunpack.c.l.b16 %v1081
          %v1456 = vunpack.c.h.b16 %v1081
          %v1457 = vunpack.c.l.b16 %v1082
          %v1458 = vunpack.c.h.b16 %v1082
          %v1459 = vunpack.c.l.b16 %v1083
          %v1460 = vunpack.c.h.b16 %v1083
          %v1461 = vunpack.c.l.b16 %v1084
          %v1462 = vunpack.c.h.b16 %v1084
          %v1463 = vunpack.c.l.b16 %v1085
          %v1464 = vunpack.c.h.b16 %v1085
          %v1465 = vunpack.c.l.b16 %v1086
          %v1466 = vunpack.c.h.b16 %v1086
          %v1467 = vunpack.c.l.b16 %v1087
          %v1468 = vunpack.c.h.b16 %v1087
          %v1469 = vunpack.c.l.b16 %v1088
          %v1470 = vunpack.c.h.b16 %v1088
          %v1471 = vunpack.c.l.b16 %v1089
          %v1472 = vunpack.c.h.b16 %v1089
          %v1473 = vunpack.c.l.b16 %v1090
          %v1474 = vunpack.c.h.b16 %v1090
          %v1475 = vunpack.c.l.b16 %v1091
          %v1476 = vunpack.c.h.b16 %v1091
          %v1477 = vunpack.c.l.b16 %v1092
          %v1478 = vunpack.c.h.b16 %v1092
          %v1479 = vunpack.c.l.b16 %v1093
          %v1480 = vunpack.c.h.b16 %v1093
          %v1481 = vunpack.c.l.b16 %v1094
          %v1482 = vunpack.c.h.b16 %v1094
          %v1483 = vunpack.c.l.b16 %v1095
          %v1484 = vunpack.c.h.b16 %v1095
          %v1485 = vunpack.c.l.b16 %v1096
          %v1486 = vunpack.c.h.b16 %v1096
          %v1487 = vunpack.c.l.b16 %v1097
          %v1488 = vunpack.c.h.b16 %v1097
          %v1489 = vunpack.c.l.b16 %v1098
          %v1490 = vunpack.c.h.b16 %v1098
          %v1491 = vunpack.c.l.b16 %v1099
          %v1492 = vunpack.c.h.b16 %v1099
          %v1493 = vunpack.c.l.b16 %v1100
          %v1494 = vunpack.c.h.b16 %v1100
          %v1495 = vunpack.c.l.b16 %v1101
          %v1496 = vunpack.c.h.b16 %v1101
          %v1497 = vunpack.c.l.b16 %v1102
          %v1498 = vunpack.c.h.b16 %v1102
          %v1499 = vunpack.c.l.b16 %v1103
          %v1500 = vunpack.c.h.b16 %v1103
          %v1501 = vunpack.c.l.b16 %v1104
          %v1502 = vunpack.c.h.b16 %v1104
          %v1503 = vunpack.c.l.b16 %v1105
          %v1504 = vunpack.c.h.b16 %v1105
          %v1505 = vunpack.c.l.b16 %v1106
          %v1506 = vunpack.c.h.b16 %v1106
          %v1507 = vunpack.c.l.b16 %v1107
          %v1508 = vunpack.c.h.b16 %v1107
          %v1509 = vunpack.c.l.b16 %v1108
          %v1510 = vunpack.c.h.b16 %v1108
          %v1511 = vunpack.c.l.b16 %v1109
          %v1512 = vunpack.c.h.b16 %v1109
          %v1513 = vunpack.c.l.b16 %v1110
          %v1514 = vunpack.c.h.b16 %v1110
          %v1515 = vunpack.c.l.b16 %v1111
          %v1516 = vunpack.c.h.b16 %v1111
          %v1517 = vunpack.c.l.b16 %v1112
          %v1518 = vunpack.c.h.b16 %v1112
          %v1519 = vunpack.c.l.b16 %v1113
          %v1520 = vunpack.c.h.b16 %v1113
          %v1521 = vunpack.c.l.b16 %v1114
          %v1522 = vunpack.c.h.b16 %v1114
          %v1523 = vunpack.c.l.b16 %v1115
          %v1524 = vunpack.c.h.b16 %v1115
          %v1525 = vunpack.c.l.b16 %v1116
          %v1526 = vunpack.c.h.b16 %v1116
          %v1527 = vunpack.c.l.b16 %v1117
          %v1528 = vunpack.c.h.b16 %v1117
          %v1529 = vunpack.c.l.b16 %v1118
          %v1530 = vunpack.c.h.b16 %v1118
          %v1531 = vunpack.c.l.b16 %v1119
          %v1532 = vunpack.c.h.b16 %v1119
          %v1533 = vunpack.c.l.b16 %v1120
          %v1534 = vunpack.c.h.b16 %v1120
          %v1535 = vunpack.c.l.b16 %v1121
          %v1536 = vunpack.c.h.b16 %v1121
          %v1537 = vunpack.c.l.b16 %v1122
          %v1538 = vunpack.c.h.b16 %v1122
          %v1539 = vunpack.c.l.b16 %v1123
          %v1540 = vunpack.c.h.b16 %v1123
          %v1541 = vunpack.c.l.b16 %v1124
          %v1542 = vunpack.c.h.b16 %v1124
          %v1543 = vunpack.c.l.b16 %v1125
          %v1544 = vunpack.c.h.b16 %v1125
          %v1545 = vunpack.c.l.b16 %v1126
          %v1546 = vunpack.c.h.b16 %v1126
          %v1547 = vunpack.c.l.b16 %v1127
          %v1548 = vunpack.c.h.b16 %v1127
          %v1549 = vunpack.c.l.b16 %v1128
          %v1550 = vunpack.c.h.b16 %v1128
          %v1551 = vunpack.c.l.b16 %v1129
          %v1552 = vunpack.c.h.b16 %v1129
          %v1553 = vunpack.c.l.b16 %v1130
          %v1554 = vunpack.c.h.b16 %v1130
          %v1555 = vunpack.c.l.b16 %v1131
          %v1556 = vunpack.c.h.b16 %v1131
          %v1557 = vunpack.c.l.b16 %v1132
          %v1558 = vunpack.c.h.b16 %v1132
          %v1559 = vunpack.c.l.b16 %v1133
          %v1560 = vunpack.c.h.b16 %v1133
          %v1561 = vunpack.c.l.b16 %v1134
          %v1562 = vunpack.c.h.b16 %v1134
          %v1563 = vunpack.c.l.b16 %v1135
          %v1564 = vunpack.c.h.b16 %v1135
          %v1565 = vunpack.c.l.b16 %v1136
          %v1566 = vunpack.c.h.b16 %v1136
          %v1567 = vunpack.c.l.b16 %v1137
          %v1568 = vunpack.c.h.b16 %v1137
          %v1569 = vunpack.c.l.b16 %v1138
          %v1570 = vunpack.c.h.b16 %v1138
          %v1571 = vunpack.c.l.b16 %v1139
          %v1572 = vunpack.c.h.b16 %v1139
          %v1573 = vunpack.c.l.b16 %v1140
          %v1574 = vunpack.c.h.b16 %v1140
          %v1575 = vunpack.c.l.b16 %v1141
          %v1576 = vunpack.c.h.b16 %v1141
          %v1577 = vunpack.c.l.b16 %v1142
          %v1578 = vunpack.c.h.b16 %v1142
          %v1579 = vunpack.c.l.b16 %v1143
          %v1580 = vunpack.c.h.b16 %v1143
          %v1581 = vunpack.c.l.b16 %v1144
          %v1582 = vunpack.c.h.b16 %v1144
          %v1583 = vunpack.c.l.b16 %v1145
          %v1584 = vunpack.c.h.b16 %v1145
          %v1585 = vunpack.c.l.b16 %v1146
          %v1586 = vunpack.c.h.b16 %v1146
          %v1587 = vunpack.c.l.b16 %v1147
          %v1588 = vunpack.c.h.b16 %v1147
          %v1589 = vunpack.c.l.b16 %v1148
          %v1590 = vunpack.c.h.b16 %v1148
          %v1591 = vunpack.c.l.b16 %v1149
          %v1592 = vunpack.c.h.b16 %v1149
          %v1593 = vpack.c.b16 %v1311, %v1305
          %v1594 = vpack.c.b16 %v1312, %v1306
          %v1595 = vpack.c.b16 %v1313, %v1307
          %v1596 = vpack.c.b16 %v1314, %v1308
          %v1597 = vpack.c.b16 %v1315, %v1309
          %v1598 = vpack.c.b16 %v1316, %v1310
          %v1599 = vpack.c.b16 %v1323, %v1317
          %v1600 = vpack.c.b16 %v1324, %v1318
          %v1601 = vpack.c.b16 %v1325, %v1319
          %v1602 = vpack.c.b16 %v1326, %v1320
          %v1603 = vpack.c.b16 %v1327, %v1321
          %v1604 = vpack.c.b16 %v1328, %v1322
          %v1605 = vpack.c.b16 %v1335, %v1329
          %v1606 = vpack.c.b16 %v1336, %v1330
          %v1607 = vpack.c.b16 %v1337, %v1331
          %v1608 = vpack.c.b16 %v1338, %v1332
          %v1609 = vpack.c.b16 %v1339, %v1333
          %v1610 = vpack.c.b16 %v1340, %v1334
          %v1611 = vpack.c.b16 %v1347, %v1341
          %v1612 = vpack.c.b16 %v1348, %v1342
          %v1613 = vpack.c.b16 %v1349, %v1343
          %v1614 = vpack.c.b16 %v1350, %v1344
          %v1615 = vpack.c.b16 %v1351, %v1345
          %v1616 = vpack.c.b16 %v1352, %v1346
          %v1617 = vpack.c.b16 %v1359, %v1353
          %v1618 = vpack.c.b16 %v1360, %v1354
          %v1619 = vpack.c.b16 %v1361, %v1355
          %v1620 = vpack.c.b16 %v1362, %v1356
          %v1621 = vpack.c.b16 %v1363, %v1357
          %v1622 = vpack.c.b16 %v1364, %v1358
          %v1623 = vpack.c.b16 %v1371, %v1365
          %v1624 = vpack.c.b16 %v1372, %v1366
          %v1625 = vpack.c.b16 %v1373, %v1367
          %v1626 = vpack.c.b16 %v1374, %v1368
          %v1627 = vpack.c.b16 %v1375, %v1369
          %v1628 = vpack.c.b16 %v1376, %v1370
          %v1629 = vpack.c.b16 %v1383, %v1377
          %v1630 = vpack.c.b16 %v1384, %v1378
          %v1631 = vpack.c.b16 %v1385, %v1379
          %v1632 = vpack.c.b16 %v1386, %v1380
          %v1633 = vpack.c.b16 %v1387, %v1381
          %v1634 = vpack.c.b16 %v1388, %v1382
          %v1635 = vpack.c.b16 %v1395, %v1389
          %v1636 = vpack.c.b16 %v1396, %v1390
          %v1637 = vpack.c.b16 %v1397, %v1391
          %v1638 = vpack.c.b16 %v1398, %v1392
          %v1639 = vpack.c.b16 %v1399, %v1393
          %v1640 = vpack.c.b16 %v1400, %v1394
          %v1641 = vpack.c.b16 %v1407, %v1401
          %v1642 = vpack.c.b16 %v1408, %v1402
          %v1643 = vpack.c.b16 %v1409, %v1403
          %v1644 = vpack.c.b16 %v1410, %v1404
          %v1645 = vpack.c.b16 %v1411, %v1405
          %v1646 = vpack.c.b16 %v1412, %v1406
          %v1647 = vpack.c.b16 %v1419, %v1413
          %v1648 = vpack.c.b16 %v1420, %v1414
          %v1649 = vpack.c.b16 %v1421, %v1415
          %v1650 = vpack.c.b16 %v1422, %v1416
          %v1651 = vpack.c.b16 %v1423, %v1417
          %v1652 = vpack.c.b16 %v1424, %v1418
          %v1653 = vpack.c.b16 %v1431, %v1425
          %v1654 = vpack.c.b16 %v1432, %v1426
          %v1655 = vpack.c.b16 %v1433, %v1427
          %v1656 = vpack.c.b16 %v1434, %v1428
          %v1657 = vpack.c.b16 %v1435, %v1429
          %v1658 = vpack.c.b16 %v1436, %v1430
          %v1659 = vpack.c.b16 %v1443, %v1437
          %v1660 = vpack.c.b16 %v1444, %v1438
          %v1661 = vpack.c.b16 %v1445, %v1439
          %v1662 = vpack.c.b16 %v1446, %v1440
          %v1663 = vpack.c.b16 %v1447, %v1441
          %v1664 = vpack.c.b16 %v1448, %v1442
          %v1665 = vpack.c.b16 %v1455, %v1449
          %v1666 = vpack.c.b16 %v1456, %v1450
          %v1667 = vpack.c.b16 %v1457, %v1451
          %v1668 = vpack.c.b16 %v1458, %v1452
          %v1669 = vpack.c.b16 %v1459, %v1453
          %v1670 = vpack.c.b16 %v1460, %v1454
          %v1671 = vpack.c.b16 %v1467, %v1461
          %v1672 = vpack.c.b16 %v1468, %v1462
          %v1673 = vpack.c.b16 %v1469, %v1463
          %v1674 = vpack.c.b16 %v1470, %v1464
          %v1675 = vpack.c.b16 %v1471, %v1465
          %v1676 = vpack.c.b16 %v1472, %v1466
          %v1677 = vpack.c.b16 %v1479, %v1473
          %v1678 = vpack.c.b16 %v1480, %v1474
          %v1679 = vpack.c.b16 %v1481, %v1475
          %v1680 = vpack.c.b16 %v1482, %v1476
          %v1681 = vpack.c.b16 %v1483, %v1477
          %v1682 = vpack.c.b16 %v1484, %v1478
          %v1683 = vpack.c.b16 %v1491, %v1485
          %v1684 = vpack.c.b16 %v1492, %v1486
          %v1685 = vpack.c.b16 %v1493, %v1487
          %v1686 = vpack.c.b16 %v1494, %v1488
          %v1687 = vpack.c.b16 %v1495, %v1489
          %v1688 = vpack.c.b16 %v1496, %v1490
          %v1689 = vpack.c.b16 %v1503, %v1497
          %v1690 = vpack.c.b16 %v1504, %v1498
          %v1691 = vpack.c.b16 %v1505, %v1499
          %v1692 = vpack.c.b16 %v1506, %v1500
          %v1693 = vpack.c.b16 %v1507, %v1501
          %v1694 = vpack.c.b16 %v1508, %v1502
          %v1695 = vpack.c.b16 %v1515, %v1509
          %v1696 = vpack.c.b16 %v1516, %v1510
          %v1697 = vpack.c.b16 %v1517, %v1511
          %v1698 = vpack.c.b16 %v1518, %v1512
          %v1699 = vpack.c.b16 %v1519, %v1513
          %v1700 = vpack.c.b16 %v1520, %v1514
          %v1701 = vpack.c.b16 %v1527, %v1521
          %v1702 = vpack.c.b16 %v1528, %v1522
          %v1703 = vpack.c.b16 %v1529, %v1523
          %v1704 = vpack.c.b16 %v1530, %v1524
          %v1705 = vpack.c.b16 %v1531, %v1525
          %v1706 = vpack.c.b16 %v1532, %v1526
          %v1707 = vpack.c.b16 %v1539, %v1533
          %v1708 = vpack.c.b16 %v1540, %v1534
          %v1709 = vpack.c.b16 %v1541, %v1535
          %v1710 = vpack.c.b16 %v1542, %v1536
          %v1711 = vpack.c.b16 %v1543, %v1537
          %v1712 = vpack.c.b16 %v1544, %v1538
          %v1713 = vpack.c.b16 %v1551, %v1545
          %v1714 = vpack.c.b16 %v1552, %v1546
          %v1715 = vpack.c.b16 %v1553, %v1547
          %v1716 = vpack.c.b16 %v1554, %v1548
          %v1717 = vpack.c.b16 %v1555, %v1549
          %v1718 = vpack.c.b16 %v1556, %v1550
          %v1719 = vpack.c.b16 %v1563, %v1557
          %v1720 = vpack.c.b16 %v1564, %v1558
          %v1721 = vpack.c.b16 %v1565, %v1559
          %v1722 = vpack.c.b16 %v1566, %v1560
          %v1723 = vpack.c.b16 %v1567, %v1561
          %v1724 = vpack.c.b16 %v1568, %v1562
          %v1725 = vpack.c.b16 %v1575, %v1569
          %v1726 = vpack.c.b16 %v1576, %v1570
          %v1727 = vpack.c.b16 %v1577, %v1571
          %v1728 = vpack.c.b16 %v1578, %v1572
          %v1729 = vpack.c.b16 %v1579, %v1573
          %v1730 = vpack.c.b16 %v1580, %v1574
          %v1731 = vpack.c.b16 %v1587, %v1581
          %v1732 = vpack.c.b16 %v1588, %v1582
          %v1733 = vpack.c.b16 %v1589, %v1583
          %v1734 = vpack.c.b16 %v1590, %v1584
          %v1735 = vpack.c.b16 %v1591, %v1585
          %v1736 = vpack.c.b16 %v1592, %v1586
          %1881 = vmatprep.subr.bf16.mxu0 %v1594
          %1882 = vmatpush1.bf16.msra.mxu0 %v1593
          %1883 = vmatprep.subr.bf16.mxu0 %v1600
          %1884 = vmatpush1.bf16.msra.mxu0 %v1599
          %1885 = vmatprep.subr.bf16.mxu0 %v1606
          %1886 = vmatpush1.bf16.msra.mxu0 %v1605
          %1887 = vmatprep.subr.bf16.mxu0 %v1612
          %1888 = vmatpush1.bf16.msra.mxu0 %v1611
          %1889 = vmatprep.subr.bf16.mxu0 %v1618
          %1890 = vmatpush1.bf16.msra.mxu0 %v1617
          %1891 = vmatprep.subr.bf16.mxu0 %v1624
          %1892 = vmatpush1.bf16.msra.mxu0 %v1623
          %1893 = vmatprep.subr.bf16.mxu0 %v1630
          %1894 = vmatpush1.bf16.msra.mxu0 %v1629
          %1895 = vmatprep.subr.bf16.mxu0 %v1636
          %1896 = vmatpush1.bf16.msra.mxu0 %v1635
          %1897 = vmatprep.subr.bf16.mxu0 %v1642
          %1898 = vmatpush1.bf16.msra.mxu0 %v1641
          %1899 = vmatprep.subr.bf16.mxu0 %v1648
          %1900 = vmatpush1.bf16.msra.mxu0 %v1647
          %1901 = vmatprep.subr.bf16.mxu0 %v1654
          %1902 = vmatpush1.bf16.msra.mxu0 %v1653
          %1903 = vmatprep.subr.bf16.mxu0 %v1660
          %1904 = vmatpush1.bf16.msra.mxu0 %v1659
          %1905 = vmatprep.subr.bf16.mxu0 %v1666
          %1906 = vmatpush1.bf16.msra.mxu0 %v1665
          %1907 = vmatprep.subr.bf16.mxu0 %v1672
          %1908 = vmatpush1.bf16.msra.mxu0 %v1671
          %1909 = vmatprep.subr.bf16.mxu0 %v1678
          %1910 = vmatpush1.bf16.msra.mxu0 %v1677
          %1911 = vmatprep.subr.bf16.mxu0 %v1684
          %1912 = vmatpush1.bf16.msra.mxu0 %v1683
          %1913 = vmatprep.mubr.bf16.mxu0 %v1156
          %1914 = vmatmul.mubr.bf16.gmra.mrb[0].mxu0 %v1155
          %v1915 = vpop.f32.mrb[0].mxu0
          %v1916 = vadd.f32 0.0, %v1915
          %v1917 = vpop.f32.mrb[0].mxu0
          %v1918 = vadd.f32 0.0, %v1917
          %v1919 = vpop.f32.mrb[0].mxu0
          %v1920 = vpop.f32.mrb[0].mxu0
          %1921 = vdwg.mxu0
          %1922 = vmatprep.subr.bf16.mxu0 %v1690
          %1923 = vmatpush1.bf16.msra.mxu0 %v1689
          %1924 = vmatprep.subr.bf16.mxu0 %v1696
          %1925 = vmatpush1.bf16.msra.mxu0 %v1695
          %1926 = vmatprep.subr.bf16.mxu0 %v1702
          %1927 = vmatpush1.bf16.msra.mxu0 %v1701
          %1928 = vmatprep.subr.bf16.mxu0 %v1708
          %1929 = vmatpush1.bf16.msra.mxu0 %v1707
          %1930 = vmatprep.subr.bf16.mxu0 %v1714
          %1931 = vmatpush1.bf16.msra.mxu0 %v1713
          %1932 = vmatprep.subr.bf16.mxu0 %v1720
          %1933 = vmatpush1.bf16.msra.mxu0 %v1719
          %1934 = vmatprep.subr.bf16.mxu0 %v1726
          %1935 = vmatpush1.bf16.msra.mxu0 %v1725
          %1936 = vmatprep.subr.bf16.mxu0 %v1732
          %1937 = vmatpush1.bf16.msra.mxu0 %v1731
          %1938 = vmatprep.subr.bf16.mxu0 0
          %1939 = vmatpush1.bf16.msra.mxu0 0
          %1940 = vmatprep.subr.bf16.mxu0 0
          %1941 = vmatpush1.bf16.msra.mxu0 0
          %1942 = vmatprep.subr.bf16.mxu0 0
          %1943 = vmatpush1.bf16.msra.mxu0 0
          %1944 = vmatprep.subr.bf16.mxu0 0
          %1945 = vmatpush1.bf16.msra.mxu0 0
          %1946 = vmatprep.subr.bf16.mxu0 0
          %1947 = vmatpush1.bf16.msra.mxu0 0
          %1948 = vmatprep.subr.bf16.mxu0 0
          %1949 = vmatpush1.bf16.msra.mxu0 0
          %1950 = vmatprep.subr.bf16.mxu0 0
          %1951 = vmatpush1.bf16.msra.mxu0 0
          %1952 = vmatprep.subr.bf16.mxu0 0
          %1953 = vmatpush1.bf16.msra.mxu0 0
          %1954 = vmatprep.mubr.bf16.mxu0 0
          %1955 = vmatmul.mubr.bf16.gmra.mrb[0].mxu0 %v1157
          %v1956 = vpop.f32.mrb[0].mxu0
          %v1957 = vadd.f32 %v1916, %v1956
          %v1958 = vpop.f32.mrb[0].mxu0
          %v1959 = vadd.f32 %v1918, %v1958
          %v1960 = vpop.f32.mrb[0].mxu0
          %v1961 = vpop.f32.mrb[0].mxu0
          %1962 = vdwg.mxu0
          %1963 = vmatprep.subr.bf16.mxu0 %v1596
          %1964 = vmatpush1.bf16.msra.mxu0 %v1595
          %1965 = vmatprep.subr.bf16.mxu0 %v1602
          %1966 = vmatpush1.bf16.msra.mxu0 %v1601
          %1967 = vmatprep.subr.bf16.mxu0 %v1608
          %1968 = vmatpush1.bf16.msra.mxu0 %v1607
          %1969 = vmatprep.subr.bf16.mxu0 %v1614
          %1970 = vmatpush1.bf16.msra.mxu0 %v1613
          %1971 = vmatprep.subr.bf16.mxu0 %v1620
          %1972 = vmatpush1.bf16.msra.mxu0 %v1619
          %1973 = vmatprep.subr.bf16.mxu0 %v1626
          %1974 = vmatpush1.bf16.msra.mxu0 %v1625
          %1975 = vmatprep.subr.bf16.mxu0 %v1632
          %1976 = vmatpush1.bf16.msra.mxu0 %v1631
          %1977 = vmatprep.subr.bf16.mxu0 %v1638
          %1978 = vmatpush1.bf16.msra.mxu0 %v1637
          %1979 = vmatprep.subr.bf16.mxu0 %v1644
          %1980 = vmatpush1.bf16.msra.mxu0 %v1643
          %1981 = vmatprep.subr.bf16.mxu0 %v1650
          %1982 = vmatpush1.bf16.msra.mxu0 %v1649
          %1983 = vmatprep.subr.bf16.mxu0 %v1656
          %1984 = vmatpush1.bf16.msra.mxu0 %v1655
          %1985 = vmatprep.subr.bf16.mxu0 %v1662
          %1986 = vmatpush1.bf16.msra.mxu0 %v1661
          %1987 = vmatprep.subr.bf16.mxu0 %v1668
          %1988 = vmatpush1.bf16.msra.mxu0 %v1667
          %1989 = vmatprep.subr.bf16.mxu0 %v1674
          %1990 = vmatpush1.bf16.msra.mxu0 %v1673
          %1991 = vmatprep.subr.bf16.mxu0 %v1680
          %1992 = vmatpush1.bf16.msra.mxu0 %v1679
          %1993 = vmatprep.subr.bf16.mxu0 %v1686
          %1994 = vmatpush1.bf16.msra.mxu0 %v1685
          %1995 = vmatprep.mubr.bf16.mxu0 %v1156
          %1996 = vmatmul.mubr.bf16.gmra.mrb[0].mxu0 %v1155
          %v1997 = vpop.f32.mrb[0].mxu0
          %v1998 = vadd.f32 0.0, %v1997
          %v1999 = vpop.f32.mrb[0].mxu0
          %v2000 = vadd.f32 0.0, %v1999
          %v2001 = vpop.f32.mrb[0].mxu0
          %v2002 = vpop.f32.mrb[0].mxu0
          %2003 = vdwg.mxu0
          %2004 = vmatprep.subr.bf16.mxu0 %v1692
          %2005 = vmatpush1.bf16.msra.mxu0 %v1691
          %2006 = vmatprep.subr.bf16.mxu0 %v1698
          %2007 = vmatpush1.bf16.msra.mxu0 %v1697
          %2008 = vmatprep.subr.bf16.mxu0 %v1704
          %2009 = vmatpush1.bf16.msra.mxu0 %v1703
          %2010 = vmatprep.subr.bf16.mxu0 %v1710
          %2011 = vmatpush1.bf16.msra.mxu0 %v1709
          %2012 = vmatprep.subr.bf16.mxu0 %v1716
          %2013 = vmatpush1.bf16.msra.mxu0 %v1715
          %2014 = vmatprep.subr.bf16.mxu0 %v1722
          %2015 = vmatpush1.bf16.msra.mxu0 %v1721
          %2016 = vmatprep.subr.bf16.mxu0 %v1728
          %2017 = vmatpush1.bf16.msra.mxu0 %v1727
          %2018 = vmatprep.subr.bf16.mxu0 %v1734
          %2019 = vmatpush1.bf16.msra.mxu0 %v1733
          %2020 = vmatprep.subr.bf16.mxu0 0
          %2021 = vmatpush1.bf16.msra.mxu0 0
          %2022 = vmatprep.subr.bf16.mxu0 0
          %2023 = vmatpush1.bf16.msra.mxu0 0
          %2024 = vmatprep.subr.bf16.mxu0 0
          %2025 = vmatpush1.bf16.msra.mxu0 0
          %2026 = vmatprep.subr.bf16.mxu0 0
          %2027 = vmatpush1.bf16.msra.mxu0 0
          %2028 = vmatprep.subr.bf16.mxu0 0
          %2029 = vmatpush1.bf16.msra.mxu0 0
          %2030 = vmatprep.subr.bf16.mxu0 0
          %2031 = vmatpush1.bf16.msra.mxu0 0
          %2032 = vmatprep.subr.bf16.mxu0 0
          %2033 = vmatpush1.bf16.msra.mxu0 0
          %2034 = vmatprep.subr.bf16.mxu0 0
          %2035 = vmatpush1.bf16.msra.mxu0 0
          %2036 = vmatprep.mubr.bf16.mxu0 0
          %2037 = vmatmul.mubr.bf16.gmra.mrb[0].mxu0 %v1157
          %v2038 = vpop.f32.mrb[0].mxu0
          %v2039 = vadd.f32 %v1998, %v2038
          %v2040 = vpop.f32.mrb[0].mxu0
          %v2041 = vadd.f32 %v2000, %v2040
          %v2042 = vpop.f32.mrb[0].mxu0
          %v2043 = vpop.f32.mrb[0].mxu0
          %2044 = vdwg.mxu0
          %2045 = vmatprep.subr.bf16.mxu0 %v1598
          %2046 = vmatpush1.bf16.msra.mxu0 %v1597
          %2047 = vmatprep.subr.bf16.mxu0 %v1604
          %2048 = vmatpush1.bf16.msra.mxu0 %v1603
          %2049 = vmatprep.subr.bf16.mxu0 %v1610
          %2050 = vmatpush1.bf16.msra.mxu0 %v1609
          %2051 = vmatprep.subr.bf16.mxu0 %v1616
          %2052 = vmatpush1.bf16.msra.mxu0 %v1615
          %2053 = vmatprep.subr.bf16.mxu0 %v1622
          %2054 = vmatpush1.bf16.msra.mxu0 %v1621
          %2055 = vmatprep.subr.bf16.mxu0 %v1628
          %2056 = vmatpush1.bf16.msra.mxu0 %v1627
          %2057 = vmatprep.subr.bf16.mxu0 %v1634
          %2058 = vmatpush1.bf16.msra.mxu0 %v1633
          %2059 = vmatprep.subr.bf16.mxu0 %v1640
          %2060 = vmatpush1.bf16.msra.mxu0 %v1639
          %2061 = vmatprep.subr.bf16.mxu0 %v1646
          %2062 = vmatpush1.bf16.msra.mxu0 %v1645
          %2063 = vmatprep.subr.bf16.mxu0 %v1652
          %2064 = vmatpush1.bf16.msra.mxu0 %v1651
          %2065 = vmatprep.subr.bf16.mxu0 %v1658
          %2066 = vmatpush1.bf16.msra.mxu0 %v1657
          %2067 = vmatprep.subr.bf16.mxu0 %v1664
          %2068 = vmatpush1.bf16.msra.mxu0 %v1663
          %2069 = vmatprep.subr.bf16.mxu0 %v1670
          %2070 = vmatpush1.bf16.msra.mxu0 %v1669
          %2071 = vmatprep.subr.bf16.mxu0 %v1676
          %2072 = vmatpush1.bf16.msra.mxu0 %v1675
          %2073 = vmatprep.subr.bf16.mxu0 %v1682
          %2074 = vmatpush1.bf16.msra.mxu0 %v1681
          %2075 = vmatprep.subr.bf16.mxu0 %v1688
          %2076 = vmatpush1.bf16.msra.mxu0 %v1687
          %2077 = vmatprep.mubr.bf16.mxu0 %v1156
          %2078 = vmatmul.mubr.bf16.gmra.mrb[0].mxu0 %v1155
          %v2079 = vpop.f32.mrb[0].mxu0
          %v2080 = vadd.f32 0.0, %v2079
          %v2081 = vpop.f32.mrb[0].mxu0
          %v2082 = vadd.f32 0.0, %v2081
          %v2083 = vpop.f32.mrb[0].mxu0
          %v2084 = vpop.f32.mrb[0].mxu0
          %2085 = vdwg.mxu0
          %2086 = vmatprep.subr.bf16.mxu0 %v1694
          %2087 = vmatpush1.bf16.msra.mxu0 %v1693
          %2088 = vmatprep.subr.bf16.mxu0 %v1700
          %2089 = vmatpush1.bf16.msra.mxu0 %v1699
          %2090 = vmatprep.subr.bf16.mxu0 %v1706
          %2091 = vmatpush1.bf16.msra.mxu0 %v1705
          %2092 = vmatprep.subr.bf16.mxu0 %v1712
          %2093 = vmatpush1.bf16.msra.mxu0 %v1711
          %2094 = vmatprep.subr.bf16.mxu0 %v1718
          %2095 = vmatpush1.bf16.msra.mxu0 %v1717
          %2096 = vmatprep.subr.bf16.mxu0 %v1724
          %2097 = vmatpush1.bf16.msra.mxu0 %v1723
          %2098 = vmatprep.subr.bf16.mxu0 %v1730
          %2099 = vmatpush1.bf16.msra.mxu0 %v1729
          %2100 = vmatprep.subr.bf16.mxu0 %v1736
          %2101 = vmatpush1.bf16.msra.mxu0 %v1735
          %2102 = vmatprep.subr.bf16.mxu0 0
          %2103 = vmatpush1.bf16.msra.mxu0 0
          %2104 = vmatprep.subr.bf16.mxu0 0
          %2105 = vmatpush1.bf16.msra.mxu0 0
          %2106 = vmatprep.subr.bf16.mxu0 0
          %2107 = vmatpush1.bf16.msra.mxu0 0
          %2108 = vmatprep.subr.bf16.mxu0 0
          %2109 = vmatpush1.bf16.msra.mxu0 0
          %2110 = vmatprep.subr.bf16.mxu0 0
          %2111 = vmatpush1.bf16.msra.mxu0 0
          %2112 = vmatprep.subr.bf16.mxu0 0
          %2113 = vmatpush1.bf16.msra.mxu0 0
          %2114 = vmatprep.subr.bf16.mxu0 0
          %2115 = vmatpush1.bf16.msra.mxu0 0
          %2116 = vmatprep.subr.bf16.mxu0 0
          %2117 = vmatpush1.bf16.msra.mxu0 0
          %2118 = vmatprep.mubr.bf16.mxu0 0
          %2119 = vmatmul.mubr.bf16.gmra.mrb[0].mxu0 %v1157
          %v2120 = vpop.f32.mrb[0].mxu0
          %v2121 = vadd.f32 %v2080, %v2120
          %v2122 = vpop.f32.mrb[0].mxu0
          %v2123 = vadd.f32 %v2082, %v2122
          %v2124 = vpop.f32.mrb[0].mxu0
          %v2125 = vpop.f32.mrb[0].mxu0
          %2126 = vdwg.mxu0
          %v2127 = vpack.c.bf16 %v1957, %v1957
          %v2128 = vpack.c.bf16 %v1959, %v1959
          %v2129 = vpack.c.bf16 %v2039, %v2039
          %v2130 = vpack.c.bf16 %v2041, %v2041
          %v2131 = vpack.c.bf16 %v2121, %v2121
          %v2132 = vpack.c.bf16 %v2123, %v2123
          %v2133 = vlaneseq
          %v2134 = vand.u32 %v2133, 127
          %v2135 = vstv %s998
          %v2136 = vadd.s32 %v2135, %v2134
          %vm2137 = vcmp.le.s32.totalorder %v2136, %v990
          %v2139 = vsel %vm980, %v964, 0
          %v2142 = vsel %vm980, %v2127, 0
          %2144 = vmatprep.subr.bf16.mxu0 0
          %2145 = vmatpush1.bf16.xpose.msra.mxu0 %v2142
          %2146 = vmatprep.subr.bf16.mxu0 0
          %2147 = vmatpush1.bf16.xpose.msra.mxu0 0
          %2148 = vmatprep.subr.bf16.mxu0 0
          %2149 = vmatpush1.bf16.xpose.msra.mxu0 0
          %2150 = vmatprep.subr.bf16.mxu0 0
          %2151 = vmatpush1.bf16.xpose.msra.mxu0 0
          %2152 = vmatprep.subr.bf16.mxu0 0
          %2153 = vmatpush1.bf16.xpose.msra.mxu0 0
          %2154 = vmatprep.subr.bf16.mxu0 0
          %2155 = vmatpush1.bf16.xpose.msra.mxu0 0
          %2156 = vmatprep.subr.bf16.mxu0 0
          %2157 = vmatpush1.bf16.xpose.msra.mxu0 0
          %2158 = vmatprep.subr.bf16.mxu0 0
          %2159 = vmatpush1.bf16.xpose.msra.mxu0 0
          %2160 = vmatprep.subr.bf16.mxu0 0
          %2161 = vmatpush1.bf16.xpose.msra.mxu0 0
          %2162 = vmatprep.subr.bf16.mxu0 0
          %2163 = vmatpush1.bf16.xpose.msra.mxu0 0
          %2164 = vmatprep.subr.bf16.mxu0 0
          %2165 = vmatpush1.bf16.xpose.msra.mxu0 0
          %2166 = vmatprep.subr.bf16.mxu0 0
          %2167 = vmatpush1.bf16.xpose.msra.mxu0 0
          %2168 = vmatprep.subr.bf16.mxu0 0
          %2169 = vmatpush1.bf16.xpose.msra.mxu0 0
          %2170 = vmatprep.subr.bf16.mxu0 0
          %2171 = vmatpush1.bf16.xpose.msra.mxu0 0
          %2172 = vmatprep.subr.bf16.mxu0 0
          %2173 = vmatpush1.bf16.xpose.msra.mxu0 0
          %2174 = vmatprep.subr.bf16.mxu0 0
          %2175 = vmatpush1.bf16.xpose.msra.mxu0 0
          %2176 = vmatprep.mubr.bf16.mxu0 0
          %2177 = vmatmul.mubr.bf16.gmra.mrb[0].mxu0 %v2139
          %v2178 = vpop.f32.mrb[0].mxu0
          %v2179 = vadd.f32 0.0, %v2178
          %v2180 = vpop.f32.mrb[0].mxu0
          %v2181 = vpop.f32.mrb[0].mxu0
          %v2182 = vpop.f32.mrb[0].mxu0
          %2183 = vdwg.mxu0
          %v2184 = vsel %vm2137, %v2179, -1e+30
          %v2185 = vld [vmem:[#allocation2] sm:$0xff]
          %vm2186 = vcmask 64512
          %v2187 = vsel %vm2186, %v2184, -inf
          %2188 = vmax.xlane.f32.xlu0 %v2187
          %v2189 = vpop.xlane.xlu0 %2188
          %v2190 = vmax.f32 %v2185, %v2189
          %v2191 = vsub.f32 %v2185, %v2190
          %v2192 = vmul.f32 %v2191, 1.442695
          %v2193 = vpow.pop %v2192
          %2195 = vset.pattern.permute.xlu0 0
          %2196 = vperm.xlu0 %2195, %v2190
          %v2197 = vpop.permute.xlu0 %2196
          %v2199 = vsub.f32 %v2184, %v2197
          %v2200 = vmul.f32 %v2199, 1.442695
          %v2201 = vpow.pop %v2200
          %v2202 = vld [vmem:[#allocation3] sm:$0xff]
          %v2203 = vmul.f32 %v2193, %v2202
          %v2204 = vsel %vm2186, %v2201, 0.0
          %2205 = vadd.xlane.f32.xlu0 %v2204
          %v2206 = vpop.xlane.xlu0 %2205
          %v2207 = vadd.f32 %v2203, %v2206
          %2208 = vst.msk [vmem:[#allocation3] sm:$0xff] %vm967, %v2207
          %v2209 = vld [vmem:[#allocation4] sm:$0xff]
          %2211 = vset.pattern.permute.xlu0 0
          %2212 = vperm.xlu0 %2211, %v2193
          %v2213 = vpop.permute.xlu0 %2212
          %v2215 = vmul.f32 %v2213, %v2209
          %v2216 = vpack.c.bf16 %v2201, %v2201
          %v2218 = vsel %vm2186, %v2216, 0
          %vm2220 = vcmask 1043456
          %v2222 = vsel %vm2220, %v2130, 0
          %2224 = vmatprep.subr.bf16.mxu0 0
          %2225 = vmatpush1.bf16.msra.mxu0 %v2222
          %2226 = vmatprep.subr.bf16.mxu0 0
          %2227 = vmatpush1.bf16.msra.mxu0 0
          %2228 = vmatprep.subr.bf16.mxu0 0
          %2229 = vmatpush1.bf16.msra.mxu0 0
          %2230 = vmatprep.subr.bf16.mxu0 0
          %2231 = vmatpush1.bf16.msra.mxu0 0
          %2232 = vmatprep.subr.bf16.mxu0 0
          %2233 = vmatpush1.bf16.msra.mxu0 0
          %2234 = vmatprep.subr.bf16.mxu0 0
          %2235 = vmatpush1.bf16.msra.mxu0 0
          %2236 = vmatprep.subr.bf16.mxu0 0
          %2237 = vmatpush1.bf16.msra.mxu0 0
          %2238 = vmatprep.subr.bf16.mxu0 0
          %2239 = vmatpush1.bf16.msra.mxu0 0
          %2240 = vmatprep.subr.bf16.mxu0 0
          %2241 = vmatpush1.bf16.msra.mxu0 0
          %2242 = vmatprep.subr.bf16.mxu0 0
          %2243 = vmatpush1.bf16.msra.mxu0 0
          %2244 = vmatprep.subr.bf16.mxu0 0
          %2245 = vmatpush1.bf16.msra.mxu0 0
          %2246 = vmatprep.subr.bf16.mxu0 0
          %2247 = vmatpush1.bf16.msra.mxu0 0
          %2248 = vmatprep.subr.bf16.mxu0 0
          %2249 = vmatpush1.bf16.msra.mxu0 0
          %2250 = vmatprep.subr.bf16.mxu0 0
          %2251 = vmatpush1.bf16.msra.mxu0 0
          %2252 = vmatprep.subr.bf16.mxu0 0
          %2253 = vmatpush1.bf16.msra.mxu0 0
          %2254 = vmatprep.subr.bf16.mxu0 0
          %2255 = vmatpush1.bf16.msra.mxu0 0
          %2256 = vmatprep.mubr.bf16.mxu0 0
          %2257 = vmatmul.mubr.bf16.gmra.mrb[0].mxu0 %v2218
          %v2258 = vpop.f32.mrb[0].mxu0
          %v2259 = vadd.f32 0.0, %v2258
          %v2260 = vpop.f32.mrb[0].mxu0
          %v2261 = vpop.f32.mrb[0].mxu0
          %v2262 = vpop.f32.mrb[0].mxu0
          %2263 = vdwg.mxu0
          %v2264 = vadd.f32 %v2215, %v2259
          %2265 = vst.msk [vmem:[#allocation4] sm:$0xff] %vm980, %v2264
          %2266 = vst.msk [vmem:[#allocation2] sm:$0xff] %vm967, %v2190
          %2268 = vrot.lane.b32.xlu0 %v964, 64
          %v2269 = vpop.permute.xlu0 %2268
          %2271 = vrot.lane.b32.xlu0 %v2127, 64
          %v2272 = vpop.permute.xlu0 %2271
          %v2274 = vsel %vm980, %v2269, 0
          %v2277 = vsel %vm980, %v2272, 0
          %2279 = vmatprep.subr.bf16.mxu0 0
          %2280 = vmatpush1.bf16.xpose.msra.mxu0 %v2277
          %2281 = vmatprep.subr.bf16.mxu0 0
          %2282 = vmatpush1.bf16.xpose.msra.mxu0 0
          %2283 = vmatprep.subr.bf16.mxu0 0
          %2284 = vmatpush1.bf16.xpose.msra.mxu0 0
          %2285 = vmatprep.subr.bf16.mxu0 0
          %2286 = vmatpush1.bf16.xpose.msra.mxu0 0
          %2287 = vmatprep.subr.bf16.mxu0 0
          %2288 = vmatpush1.bf16.xpose.msra.mxu0 0
          %2289 = vmatprep.subr.bf16.mxu0 0
          %2290 = vmatpush1.bf16.xpose.msra.mxu0 0
          %2291 = vmatprep.subr.bf16.mxu0 0
          %2292 = vmatpush1.bf16.xpose.msra.mxu0 0
          %2293 = vmatprep.subr.bf16.mxu0 0
          %2294 = vmatpush1.bf16.xpose.msra.mxu0 0
          %2295 = vmatprep.subr.bf16.mxu0 0
          %2296 = vmatpush1.bf16.xpose.msra.mxu0 0
          %2297 = vmatprep.subr.bf16.mxu0 0
          %2298 = vmatpush1.bf16.xpose.msra.mxu0 0
          %2299 = vmatprep.subr.bf16.mxu0 0
          %2300 = vmatpush1.bf16.xpose.msra.mxu0 0
          %2301 = vmatprep.subr.bf16.mxu0 0
          %2302 = vmatpush1.bf16.xpose.msra.mxu0 0
          %2303 = vmatprep.subr.bf16.mxu0 0
          %2304 = vmatpush1.bf16.xpose.msra.mxu0 0
          %2305 = vmatprep.subr.bf16.mxu0 0
          %2306 = vmatpush1.bf16.xpose.msra.mxu0 0
          %2307 = vmatprep.subr.bf16.mxu0 0
          %2308 = vmatpush1.bf16.xpose.msra.mxu0 0
          %2309 = vmatprep.subr.bf16.mxu0 0
          %2310 = vmatpush1.bf16.xpose.msra.mxu0 0
          %2311 = vmatprep.mubr.bf16.mxu0 0
          %2312 = vmatmul.mubr.bf16.gmra.mrb[0].mxu0 %v2274
          %v2313 = vpop.f32.mrb[0].mxu0
          %v2314 = vadd.f32 0.0, %v2313
          %v2315 = vpop.f32.mrb[0].mxu0
          %v2316 = vpop.f32.mrb[0].mxu0
          %v2317 = vpop.f32.mrb[0].mxu0
          %2318 = vdwg.mxu0
          %v2319 = vsel %vm2137, %v2314, -1e+30
          %s2320 = scalar_lea.vmem [#allocation2], 8
          %v2321 = vld [vmem:[%s2320] sm:$0xff]
          %v2322 = vsel %vm2186, %v2319, -inf
          %2323 = vmax.xlane.f32.xlu0 %v2322
          %v2324 = vpop.xlane.xlu0 %2323
          %v2325 = vmax.f32 %v2321, %v2324
          %v2326 = vsub.f32 %v2321, %v2325
          %v2327 = vmul.f32 %v2326, 1.442695
          %v2328 = vpow.pop %v2327
          %2330 = vset.pattern.permute.xlu0 0
          %2331 = vperm.xlu0 %2330, %v2325
          %v2332 = vpop.permute.xlu0 %2331
          %v2334 = vsub.f32 %v2319, %v2332
          %v2335 = vmul.f32 %v2334, 1.442695
          %v2336 = vpow.pop %v2335
          %s2337 = scalar_lea.vmem [#allocation3], 8
          %v2338 = vld [vmem:[%s2337] sm:$0xff]
          %v2339 = vmul.f32 %v2328, %v2338
          %v2340 = vsel %vm2186, %v2336, 0.0
          %2341 = vadd.xlane.f32.xlu0 %v2340
          %v2342 = vpop.xlane.xlu0 %2341
          %v2343 = vadd.f32 %v2339, %v2342
          %2344 = vst.msk [vmem:[%s2337] sm:$0xff] %vm967, %v2343
          %s2345 = scalar_lea.vmem [#allocation4], 8
          %v2346 = vld [vmem:[%s2345] sm:$0xff]
          %2348 = vset.pattern.permute.xlu0 0
          %2349 = vperm.xlu0 %2348, %v2328
          %v2350 = vpop.permute.xlu0 %2349
          %v2352 = vmul.f32 %v2350, %v2346
          %v2353 = vpack.c.bf16 %v2336, %v2336
          %2355 = vrot.lane.b32.xlu0 %v2130, 64
          %v2356 = vpop.permute.xlu0 %2355
          %v2358 = vsel %vm2186, %v2353, 0
          %v2361 = vsel %vm2220, %v2356, 0
          %2363 = vmatprep.subr.bf16.mxu0 0
          %2364 = vmatpush1.bf16.msra.mxu0 %v2361
          %2365 = vmatprep.subr.bf16.mxu0 0
          %2366 = vmatpush1.bf16.msra.mxu0 0
          %2367 = vmatprep.subr.bf16.mxu0 0
          %2368 = vmatpush1.bf16.msra.mxu0 0
          %2369 = vmatprep.subr.bf16.mxu0 0
          %2370 = vmatpush1.bf16.msra.mxu0 0
          %2371 = vmatprep.subr.bf16.mxu0 0
          %2372 = vmatpush1.bf16.msra.mxu0 0
          %2373 = vmatprep.subr.bf16.mxu0 0
          %2374 = vmatpush1.bf16.msra.mxu0 0
          %2375 = vmatprep.subr.bf16.mxu0 0
          %2376 = vmatpush1.bf16.msra.mxu0 0
          %2377 = vmatprep.subr.bf16.mxu0 0
          %2378 = vmatpush1.bf16.msra.mxu0 0
          %2379 = vmatprep.subr.bf16.mxu0 0
          %2380 = vmatpush1.bf16.msra.mxu0 0
          %2381 = vmatprep.subr.bf16.mxu0 0
          %2382 = vmatpush1.bf16.msra.mxu0 0
          %2383 = vmatprep.subr.bf16.mxu0 0
          %2384 = vmatpush1.bf16.msra.mxu0 0
          %2385 = vmatprep.subr.bf16.mxu0 0
          %2386 = vmatpush1.bf16.msra.mxu0 0
          %2387 = vmatprep.subr.bf16.mxu0 0
          %2388 = vmatpush1.bf16.msra.mxu0 0
          %2389 = vmatprep.subr.bf16.mxu0 0
          %2390 = vmatpush1.bf16.msra.mxu0 0
          %2391 = vmatprep.subr.bf16.mxu0 0
          %2392 = vmatpush1.bf16.msra.mxu0 0
          %2393 = vmatprep.subr.bf16.mxu0 0
          %2394 = vmatpush1.bf16.msra.mxu0 0
          %2395 = vmatprep.mubr.bf16.mxu0 0
          %2396 = vmatmul.mubr.bf16.gmra.mrb[0].mxu0 %v2358
          %v2397 = vpop.f32.mrb[0].mxu0
          %v2398 = vadd.f32 0.0, %v2397
          %v2399 = vpop.f32.mrb[0].mxu0
          %v2400 = vpop.f32.mrb[0].mxu0
          %v2401 = vpop.f32.mrb[0].mxu0
          %2402 = vdwg.mxu0
          %v2403 = vadd.f32 %v2352, %v2398
          %2404 = vst.msk [vmem:[%s2345] sm:$0xff] %vm980, %v2403
          %2405 = vst.msk [vmem:[%s2320] sm:$0xff] %vm967, %v2325
          %v2407 = vsel %vm980, %v965, 0
          %v2410 = vsel %vm980, %v2128, 0
          %2412 = vmatprep.subr.bf16.mxu0 0
          %2413 = vmatpush1.bf16.xpose.msra.mxu0 %v2410
          %2414 = vmatprep.subr.bf16.mxu0 0
          %2415 = vmatpush1.bf16.xpose.msra.mxu0 0
          %2416 = vmatprep.subr.bf16.mxu0 0
          %2417 = vmatpush1.bf16.xpose.msra.mxu0 0
          %2418 = vmatprep.subr.bf16.mxu0 0
          %2419 = vmatpush1.bf16.xpose.msra.mxu0 0
          %2420 = vmatprep.subr.bf16.mxu0 0
          %2421 = vmatpush1.bf16.xpose.msra.mxu0 0
          %2422 = vmatprep.subr.bf16.mxu0 0
          %2423 = vmatpush1.bf16.xpose.msra.mxu0 0
          %2424 = vmatprep.subr.bf16.mxu0 0
          %2425 = vmatpush1.bf16.xpose.msra.mxu0 0
          %2426 = vmatprep.subr.bf16.mxu0 0
          %2427 = vmatpush1.bf16.xpose.msra.mxu0 0
          %2428 = vmatprep.subr.bf16.mxu0 0
          %2429 = vmatpush1.bf16.xpose.msra.mxu0 0
          %2430 = vmatprep.subr.bf16.mxu0 0
          %2431 = vmatpush1.bf16.xpose.msra.mxu0 0
          %2432 = vmatprep.subr.bf16.mxu0 0
          %2433 = vmatpush1.bf16.xpose.msra.mxu0 0
          %2434 = vmatprep.subr.bf16.mxu0 0
          %2435 = vmatpush1.bf16.xpose.msra.mxu0 0
          %2436 = vmatprep.subr.bf16.mxu0 0
          %2437 = vmatpush1.bf16.xpose.msra.mxu0 0
          %2438 = vmatprep.subr.bf16.mxu0 0
          %2439 = vmatpush1.bf16.xpose.msra.mxu0 0
          %2440 = vmatprep.subr.bf16.mxu0 0
          %2441 = vmatpush1.bf16.xpose.msra.mxu0 0
          %2442 = vmatprep.subr.bf16.mxu0 0
          %2443 = vmatpush1.bf16.xpose.msra.mxu0 0
          %2444 = vmatprep.mubr.bf16.mxu0 0
          %2445 = vmatmul.mubr.bf16.gmra.mrb[0].mxu0 %v2407
          %v2446 = vpop.f32.mrb[0].mxu0
          %v2447 = vadd.f32 0.0, %v2446
          %v2448 = vpop.f32.mrb[0].mxu0
          %v2449 = vpop.f32.mrb[0].mxu0
          %v2450 = vpop.f32.mrb[0].mxu0
          %2451 = vdwg.mxu0
          %v2452 = vsel %vm2137, %v2447, -1e+30
          %s2453 = scalar_lea.vmem [#allocation2], 16
          %v2454 = vld [vmem:[%s2453] sm:$0xff]
          %v2455 = vsel %vm2186, %v2452, -inf
          %2456 = vmax.xlane.f32.xlu0 %v2455
          %v2457 = vpop.xlane.xlu0 %2456
          %v2458 = vmax.f32 %v2454, %v2457
          %v2459 = vsub.f32 %v2454, %v2458
          %v2460 = vmul.f32 %v2459, 1.442695
          %v2461 = vpow.pop %v2460
          %2463 = vset.pattern.permute.xlu0 0
          %2464 = vperm.xlu0 %2463, %v2458
          %v2465 = vpop.permute.xlu0 %2464
          %v2467 = vsub.f32 %v2452, %v2465
          %v2468 = vmul.f32 %v2467, 1.442695
          %v2469 = vpow.pop %v2468
          %s2470 = scalar_lea.vmem [#allocation3], 16
          %v2471 = vld [vmem:[%s2470] sm:$0xff]
          %v2472 = vmul.f32 %v2461, %v2471
          %v2473 = vsel %vm2186, %v2469, 0.0
          %2474 = vadd.xlane.f32.xlu0 %v2473
          %v2475 = vpop.xlane.xlu0 %2474
          %v2476 = vadd.f32 %v2472, %v2475
          %2477 = vst.msk [vmem:[%s2470] sm:$0xff] %vm967, %v2476
          %s2478 = scalar_lea.vmem [#allocation4], 16
          %v2479 = vld [vmem:[%s2478] sm:$0xff]
          %2481 = vset.pattern.permute.xlu0 0
          %2482 = vperm.xlu0 %2481, %v2461
          %v2483 = vpop.permute.xlu0 %2482
          %v2485 = vmul.f32 %v2483, %v2479
          %v2486 = vpack.c.bf16 %v2469, %v2469
          %v2488 = vsel %vm2186, %v2486, 0
          %v2491 = vsel %vm2220, %v2131, 0
          %2493 = vmatprep.subr.bf16.mxu0 0
          %2494 = vmatpush1.bf16.msra.mxu0 %v2491
          %2495 = vmatprep.subr.bf16.mxu0 0
          %2496 = vmatpush1.bf16.msra.mxu0 0
          %2497 = vmatprep.subr.bf16.mxu0 0
          %2498 = vmatpush1.bf16.msra.mxu0 0
          %2499 = vmatprep.subr.bf16.mxu0 0
          %2500 = vmatpush1.bf16.msra.mxu0 0
          %2501 = vmatprep.subr.bf16.mxu0 0
          %2502 = vmatpush1.bf16.msra.mxu0 0
          %2503 = vmatprep.subr.bf16.mxu0 0
          %2504 = vmatpush1.bf16.msra.mxu0 0
          %2505 = vmatprep.subr.bf16.mxu0 0
          %2506 = vmatpush1.bf16.msra.mxu0 0
          %2507 = vmatprep.subr.bf16.mxu0 0
          %2508 = vmatpush1.bf16.msra.mxu0 0
          %2509 = vmatprep.subr.bf16.mxu0 0
          %2510 = vmatpush1.bf16.msra.mxu0 0
          %2511 = vmatprep.subr.bf16.mxu0 0
          %2512 = vmatpush1.bf16.msra.mxu0 0
          %2513 = vmatprep.subr.bf16.mxu0 0
          %2514 = vmatpush1.bf16.msra.mxu0 0
          %2515 = vmatprep.subr.bf16.mxu0 0
          %2516 = vmatpush1.bf16.msra.mxu0 0
          %2517 = vmatprep.subr.bf16.mxu0 0
          %2518 = vmatpush1.bf16.msra.mxu0 0
          %2519 = vmatprep.subr.bf16.mxu0 0
          %2520 = vmatpush1.bf16.msra.mxu0 0
          %2521 = vmatprep.subr.bf16.mxu0 0
          %2522 = vmatpush1.bf16.msra.mxu0 0
          %2523 = vmatprep.subr.bf16.mxu0 0
          %2524 = vmatpush1.bf16.msra.mxu0 0
          %2525 = vmatprep.mubr.bf16.mxu0 0
          %2526 = vmatmul.mubr.bf16.gmra.mrb[0].mxu0 %v2488
          %v2527 = vpop.f32.mrb[0].mxu0
          %v2528 = vadd.f32 0.0, %v2527
          %v2529 = vpop.f32.mrb[0].mxu0
          %v2530 = vpop.f32.mrb[0].mxu0
          %v2531 = vpop.f32.mrb[0].mxu0
          %2532 = vdwg.mxu0
          %v2533 = vadd.f32 %v2485, %v2528
          %2534 = vst.msk [vmem:[%s2478] sm:$0xff] %vm980, %v2533
          %2535 = vst.msk [vmem:[%s2453] sm:$0xff] %vm967, %v2458
          %2537 = vrot.lane.b32.xlu0 %v965, 64
          %v2538 = vpop.permute.xlu0 %2537
          %2540 = vrot.lane.b32.xlu0 %v2128, 64
          %v2541 = vpop.permute.xlu0 %2540
          %v2543 = vsel %vm980, %v2538, 0
          %v2546 = vsel %vm980, %v2541, 0
          %2548 = vmatprep.subr.bf16.mxu0 0
          %2549 = vmatpush1.bf16.xpose.msra.mxu0 %v2546
          %2550 = vmatprep.subr.bf16.mxu0 0
          %2551 = vmatpush1.bf16.xpose.msra.mxu0 0
          %2552 = vmatprep.subr.bf16.mxu0 0
          %2553 = vmatpush1.bf16.xpose.msra.mxu0 0
          %2554 = vmatprep.subr.bf16.mxu0 0
          %2555 = vmatpush1.bf16.xpose.msra.mxu0 0
          %2556 = vmatprep.subr.bf16.mxu0 0
          %2557 = vmatpush1.bf16.xpose.msra.mxu0 0
          %2558 = vmatprep.subr.bf16.mxu0 0
          %2559 = vmatpush1.bf16.xpose.msra.mxu0 0
          %2560 = vmatprep.subr.bf16.mxu0 0
          %2561 = vmatpush1.bf16.xpose.msra.mxu0 0
          %2562 = vmatprep.subr.bf16.mxu0 0
          %2563 = vmatpush1.bf16.xpose.msra.mxu0 0
          %2564 = vmatprep.subr.bf16.mxu0 0
          %2565 = vmatpush1.bf16.xpose.msra.mxu0 0
          %2566 = vmatprep.subr.bf16.mxu0 0
          %2567 = vmatpush1.bf16.xpose.msra.mxu0 0
          %2568 = vmatprep.subr.bf16.mxu0 0
          %2569 = vmatpush1.bf16.xpose.msra.mxu0 0
          %2570 = vmatprep.subr.bf16.mxu0 0
          %2571 = vmatpush1.bf16.xpose.msra.mxu0 0
          %2572 = vmatprep.subr.bf16.mxu0 0
          %2573 = vmatpush1.bf16.xpose.msra.mxu0 0
          %2574 = vmatprep.subr.bf16.mxu0 0
          %2575 = vmatpush1.bf16.xpose.msra.mxu0 0
          %2576 = vmatprep.subr.bf16.mxu0 0
          %2577 = vmatpush1.bf16.xpose.msra.mxu0 0
          %2578 = vmatprep.subr.bf16.mxu0 0
          %2579 = vmatpush1.bf16.xpose.msra.mxu0 0
          %2580 = vmatprep.mubr.bf16.mxu0 0
          %2581 = vmatmul.mubr.bf16.gmra.mrb[0].mxu0 %v2543
          %v2582 = vpop.f32.mrb[0].mxu0
          %v2583 = vadd.f32 0.0, %v2582
          %v2584 = vpop.f32.mrb[0].mxu0
          %v2585 = vpop.f32.mrb[0].mxu0
          %v2586 = vpop.f32.mrb[0].mxu0
          %2587 = vdwg.mxu0
          %v2588 = vsel %vm2137, %v2583, -1e+30
          %s2589 = scalar_lea.vmem [#allocation2], 24
          %v2590 = vld [vmem:[%s2589] sm:$0xff]
          %v2591 = vsel %vm2186, %v2588, -inf
          %2592 = vmax.xlane.f32.xlu0 %v2591
          %v2593 = vpop.xlane.xlu0 %2592
          %v2594 = vmax.f32 %v2590, %v2593
          %v2595 = vsub.f32 %v2590, %v2594
          %v2596 = vmul.f32 %v2595, 1.442695
          %v2597 = vpow.pop %v2596
          %2599 = vset.pattern.permute.xlu0 0
          %2600 = vperm.xlu0 %2599, %v2594
          %v2601 = vpop.permute.xlu0 %2600
          %v2603 = vsub.f32 %v2588, %v2601
          %v2604 = vmul.f32 %v2603, 1.442695
          %v2605 = vpow.pop %v2604
          %s2606 = scalar_lea.vmem [#allocation3], 24
          %v2607 = vld [vmem:[%s2606] sm:$0xff]
          %v2608 = vmul.f32 %v2597, %v2607
          %v2609 = vsel %vm2186, %v2605, 0.0
          %2610 = vadd.xlane.f32.xlu0 %v2609
          %v2611 = vpop.xlane.xlu0 %2610
          %v2612 = vadd.f32 %v2608, %v2611
          %2613 = vst.msk [vmem:[%s2606] sm:$0xff] %vm967, %v2612
          %s2614 = scalar_lea.vmem [#allocation4], 24
          %v2615 = vld [vmem:[%s2614] sm:$0xff]
          %2617 = vset.pattern.permute.xlu0 0
          %2618 = vperm.xlu0 %2617, %v2597
          %v2619 = vpop.permute.xlu0 %2618
          %v2621 = vmul.f32 %v2619, %v2615
          %v2622 = vpack.c.bf16 %v2605, %v2605
          %2624 = vrot.lane.b32.xlu0 %v2131, 64
          %v2625 = vpop.permute.xlu0 %2624
          %v2627 = vsel %vm2186, %v2622, 0
          %v2630 = vsel %vm2220, %v2625, 0
          %2632 = vmatprep.subr.bf16.mxu0 0
          %2633 = vmatpush1.bf16.msra.mxu0 %v2630
          %2634 = vmatprep.subr.bf16.mxu0 0
          %2635 = vmatpush1.bf16.msra.mxu0 0
          %2636 = vmatprep.subr.bf16.mxu0 0
          %2637 = vmatpush1.bf16.msra.mxu0 0
          %2638 = vmatprep.subr.bf16.mxu0 0
          %2639 = vmatpush1.bf16.msra.mxu0 0
          %2640 = vmatprep.subr.bf16.mxu0 0
          %2641 = vmatpush1.bf16.msra.mxu0 0
          %2642 = vmatprep.subr.bf16.mxu0 0
          %2643 = vmatpush1.bf16.msra.mxu0 0
          %2644 = vmatprep.subr.bf16.mxu0 0
          %2645 = vmatpush1.bf16.msra.mxu0 0
          %2646 = vmatprep.subr.bf16.mxu0 0
          %2647 = vmatpush1.bf16.msra.mxu0 0
          %2648 = vmatprep.subr.bf16.mxu0 0
          %2649 = vmatpush1.bf16.msra.mxu0 0
          %2650 = vmatprep.subr.bf16.mxu0 0
          %2651 = vmatpush1.bf16.msra.mxu0 0
          %2652 = vmatprep.subr.bf16.mxu0 0
          %2653 = vmatpush1.bf16.msra.mxu0 0
          %2654 = vmatprep.subr.bf16.mxu0 0
          %2655 = vmatpush1.bf16.msra.mxu0 0
          %2656 = vmatprep.subr.bf16.mxu0 0
          %2657 = vmatpush1.bf16.msra.mxu0 0
          %2658 = vmatprep.subr.bf16.mxu0 0
          %2659 = vmatpush1.bf16.msra.mxu0 0
          %2660 = vmatprep.subr.bf16.mxu0 0
          %2661 = vmatpush1.bf16.msra.mxu0 0
          %2662 = vmatprep.subr.bf16.mxu0 0
          %2663 = vmatpush1.bf16.msra.mxu0 0
          %2664 = vmatprep.mubr.bf16.mxu0 0
          %2665 = vmatmul.mubr.bf16.gmra.mrb[0].mxu0 %v2627
          %v2666 = vpop.f32.mrb[0].mxu0
          %v2667 = vadd.f32 0.0, %v2666
          %v2668 = vpop.f32.mrb[0].mxu0
          %v2669 = vpop.f32.mrb[0].mxu0
          %v2670 = vpop.f32.mrb[0].mxu0
          %2671 = vdwg.mxu0
          %v2672 = vadd.f32 %v2621, %v2667
          %2673 = vst.msk [vmem:[%s2614] sm:$0xff] %vm980, %v2672
          %2674 = vst.msk [vmem:[%s2589] sm:$0xff] %vm967, %v2594
          %v2676 = vsel %vm980, %v966, 0
          %v2679 = vsel %vm980, %v2129, 0
          %2681 = vmatprep.subr.bf16.mxu0 0
          %2682 = vmatpush1.bf16.xpose.msra.mxu0 %v2679
          %2683 = vmatprep.subr.bf16.mxu0 0
          %2684 = vmatpush1.bf16.xpose.msra.mxu0 0
          %2685 = vmatprep.subr.bf16.mxu0 0
          %2686 = vmatpush1.bf16.xpose.msra.mxu0 0
          %2687 = vmatprep.subr.bf16.mxu0 0
          %2688 = vmatpush1.bf16.xpose.msra.mxu0 0
          %2689 = vmatprep.subr.bf16.mxu0 0
          %2690 = vmatpush1.bf16.xpose.msra.mxu0 0
          %2691 = vmatprep.subr.bf16.mxu0 0
          %2692 = vmatpush1.bf16.xpose.msra.mxu0 0
          %2693 = vmatprep.subr.bf16.mxu0 0
          %2694 = vmatpush1.bf16.xpose.msra.mxu0 0
          %2695 = vmatprep.subr.bf16.mxu0 0
          %2696 = vmatpush1.bf16.xpose.msra.mxu0 0
          %2697 = vmatprep.subr.bf16.mxu0 0
          %2698 = vmatpush1.bf16.xpose.msra.mxu0 0
          %2699 = vmatprep.subr.bf16.mxu0 0
          %2700 = vmatpush1.bf16.xpose.msra.mxu0 0
          %2701 = vmatprep.subr.bf16.mxu0 0
          %2702 = vmatpush1.bf16.xpose.msra.mxu0 0
          %2703 = vmatprep.subr.bf16.mxu0 0
          %2704 = vmatpush1.bf16.xpose.msra.mxu0 0
          %2705 = vmatprep.subr.bf16.mxu0 0
          %2706 = vmatpush1.bf16.xpose.msra.mxu0 0
          %2707 = vmatprep.subr.bf16.mxu0 0
          %2708 = vmatpush1.bf16.xpose.msra.mxu0 0
          %2709 = vmatprep.subr.bf16.mxu0 0
          %2710 = vmatpush1.bf16.xpose.msra.mxu0 0
          %2711 = vmatprep.subr.bf16.mxu0 0
          %2712 = vmatpush1.bf16.xpose.msra.mxu0 0
          %2713 = vmatprep.mubr.bf16.mxu0 0
          %2714 = vmatmul.mubr.bf16.gmra.mrb[0].mxu0 %v2676
          %v2715 = vpop.f32.mrb[0].mxu0
          %v2716 = vadd.f32 0.0, %v2715
          %v2717 = vpop.f32.mrb[0].mxu0
          %v2718 = vpop.f32.mrb[0].mxu0
          %v2719 = vpop.f32.mrb[0].mxu0
          %2720 = vdwg.mxu0
          %v2721 = vsel %vm2137, %v2716, -1e+30
          %s2722 = scalar_lea.vmem [#allocation2], 32
          %v2723 = vld [vmem:[%s2722] sm:$0xff]
          %v2724 = vsel %vm2186, %v2721, -inf
          %2725 = vmax.xlane.f32.xlu0 %v2724
          %v2726 = vpop.xlane.xlu0 %2725
          %v2727 = vmax.f32 %v2723, %v2726
          %v2728 = vsub.f32 %v2723, %v2727
          %v2729 = vmul.f32 %v2728, 1.442695
          %v2730 = vpow.pop %v2729
          %2732 = vset.pattern.permute.xlu0 0
          %2733 = vperm.xlu0 %2732, %v2727
          %v2734 = vpop.permute.xlu0 %2733
          %v2736 = vsub.f32 %v2721, %v2734
          %v2737 = vmul.f32 %v2736, 1.442695
          %v2738 = vpow.pop %v2737
          %s2739 = scalar_lea.vmem [#allocation3], 32
          %v2740 = vld [vmem:[%s2739] sm:$0xff]
          %v2741 = vmul.f32 %v2730, %v2740
          %v2742 = vsel %vm2186, %v2738, 0.0
          %2743 = vadd.xlane.f32.xlu0 %v2742
          %v2744 = vpop.xlane.xlu0 %2743
          %v2745 = vadd.f32 %v2741, %v2744
          %2746 = vst.msk [vmem:[%s2739] sm:$0xff] %vm967, %v2745
          %s2747 = scalar_lea.vmem [#allocation4], 32
          %v2748 = vld [vmem:[%s2747] sm:$0xff]
          %2750 = vset.pattern.permute.xlu0 0
          %2751 = vperm.xlu0 %2750, %v2730
          %v2752 = vpop.permute.xlu0 %2751
          %v2754 = vmul.f32 %v2752, %v2748
          %v2755 = vpack.c.bf16 %v2738, %v2738
          %v2757 = vsel %vm2186, %v2755, 0
          %v2760 = vsel %vm2220, %v2132, 0
          %2762 = vmatprep.subr.bf16.mxu0 0
          %2763 = vmatpush1.bf16.msra.mxu0 %v2760
          %2764 = vmatprep.subr.bf16.mxu0 0
          %2765 = vmatpush1.bf16.msra.mxu0 0
          %2766 = vmatprep.subr.bf16.mxu0 0
          %2767 = vmatpush1.bf16.msra.mxu0 0
          %2768 = vmatprep.subr.bf16.mxu0 0
          %2769 = vmatpush1.bf16.msra.mxu0 0
          %2770 = vmatprep.subr.bf16.mxu0 0
          %2771 = vmatpush1.bf16.msra.mxu0 0
          %2772 = vmatprep.subr.bf16.mxu0 0
          %2773 = vmatpush1.bf16.msra.mxu0 0
          %2774 = vmatprep.subr.bf16.mxu0 0
          %2775 = vmatpush1.bf16.msra.mxu0 0
          %2776 = vmatprep.subr.bf16.mxu0 0
          %2777 = vmatpush1.bf16.msra.mxu0 0
          %2778 = vmatprep.subr.bf16.mxu0 0
          %2779 = vmatpush1.bf16.msra.mxu0 0
          %2780 = vmatprep.subr.bf16.mxu0 0
          %2781 = vmatpush1.bf16.msra.mxu0 0
          %2782 = vmatprep.subr.bf16.mxu0 0
          %2783 = vmatpush1.bf16.msra.mxu0 0
          %2784 = vmatprep.subr.bf16.mxu0 0
          %2785 = vmatpush1.bf16.msra.mxu0 0
          %2786 = vmatprep.subr.bf16.mxu0 0
          %2787 = vmatpush1.bf16.msra.mxu0 0
          %2788 = vmatprep.subr.bf16.mxu0 0
          %2789 = vmatpush1.bf16.msra.mxu0 0
          %2790 = vmatprep.subr.bf16.mxu0 0
          %2791 = vmatpush1.bf16.msra.mxu0 0
          %2792 = vmatprep.subr.bf16.mxu0 0
          %2793 = vmatpush1.bf16.msra.mxu0 0
          %2794 = vmatprep.mubr.bf16.mxu0 0
          %2795 = vmatmul.mubr.bf16.gmra.mrb[0].mxu0 %v2757
          %v2796 = vpop.f32.mrb[0].mxu0
          %v2797 = vadd.f32 0.0, %v2796
          %v2798 = vpop.f32.mrb[0].mxu0
          %v2799 = vpop.f32.mrb[0].mxu0
          %v2800 = vpop.f32.mrb[0].mxu0
          %2801 = vdwg.mxu0
          %v2802 = vadd.f32 %v2754, %v2797
          %2803 = vst.msk [vmem:[%s2747] sm:$0xff] %vm980, %v2802
          %2804 = vst.msk [vmem:[%s2722] sm:$0xff] %vm967, %v2727
          %2806 = vrot.lane.b32.xlu0 %v966, 64
          %v2807 = vpop.permute.xlu0 %2806
          %2809 = vrot.lane.b32.xlu0 %v2129, 64
          %v2810 = vpop.permute.xlu0 %2809
          %v2812 = vsel %vm980, %v2807, 0
          %v2815 = vsel %vm980, %v2810, 0
          %2817 = vmatprep.subr.bf16.mxu0 0
          %2818 = vmatpush1.bf16.xpose.msra.mxu0 %v2815
          %2819 = vmatprep.subr.bf16.mxu0 0
          %2820 = vmatpush1.bf16.xpose.msra.mxu0 0
          %2821 = vmatprep.subr.bf16.mxu0 0
          %2822 = vmatpush1.bf16.xpose.msra.mxu0 0
          %2823 = vmatprep.subr.bf16.mxu0 0
          %2824 = vmatpush1.bf16.xpose.msra.mxu0 0
          %2825 = vmatprep.subr.bf16.mxu0 0
          %2826 = vmatpush1.bf16.xpose.msra.mxu0 0
          %2827 = vmatprep.subr.bf16.mxu0 0
          %2828 = vmatpush1.bf16.xpose.msra.mxu0 0
          %2829 = vmatprep.subr.bf16.mxu0 0
          %2830 = vmatpush1.bf16.xpose.msra.mxu0 0
          %2831 = vmatprep.subr.bf16.mxu0 0
          %2832 = vmatpush1.bf16.xpose.msra.mxu0 0
          %2833 = vmatprep.subr.bf16.mxu0 0
          %2834 = vmatpush1.bf16.xpose.msra.mxu0 0
          %2835 = vmatprep.subr.bf16.mxu0 0
          %2836 = vmatpush1.bf16.xpose.msra.mxu0 0
          %2837 = vmatprep.subr.bf16.mxu0 0
          %2838 = vmatpush1.bf16.xpose.msra.mxu0 0
          %2839 = vmatprep.subr.bf16.mxu0 0
          %2840 = vmatpush1.bf16.xpose.msra.mxu0 0
          %2841 = vmatprep.subr.bf16.mxu0 0
          %2842 = vmatpush1.bf16.xpose.msra.mxu0 0
          %2843 = vmatprep.subr.bf16.mxu0 0
          %2844 = vmatpush1.bf16.xpose.msra.mxu0 0
          %2845 = vmatprep.subr.bf16.mxu0 0
          %2846 = vmatpush1.bf16.xpose.msra.mxu0 0
          %2847 = vmatprep.subr.bf16.mxu0 0
          %2848 = vmatpush1.bf16.xpose.msra.mxu0 0
          %2849 = vmatprep.mubr.bf16.mxu0 0
          %2850 = vmatmul.mubr.bf16.gmra.mrb[0].mxu0 %v2812
          %v2851 = vpop.f32.mrb[0].mxu0
          %v2852 = vadd.f32 0.0, %v2851
          %v2853 = vpop.f32.mrb[0].mxu0
          %v2854 = vpop.f32.mrb[0].mxu0
          %v2855 = vpop.f32.mrb[0].mxu0
          %2856 = vdwg.mxu0
          %v2857 = vsel %vm2137, %v2852, -1e+30
          %s2858 = scalar_lea.vmem [#allocation2], 40
          %v2859 = vld [vmem:[%s2858] sm:$0xff]
          %v2860 = vsel %vm2186, %v2857, -inf
          %2861 = vmax.xlane.f32.xlu0 %v2860
          %v2862 = vpop.xlane.xlu0 %2861
          %v2863 = vmax.f32 %v2859, %v2862
          %v2864 = vsub.f32 %v2859, %v2863
          %v2865 = vmul.f32 %v2864, 1.442695
          %v2866 = vpow.pop %v2865
          %2868 = vset.pattern.permute.xlu0 0
          %2869 = vperm.xlu0 %2868, %v2863
          %v2870 = vpop.permute.xlu0 %2869
          %v2872 = vsub.f32 %v2857, %v2870
          %v2873 = vmul.f32 %v2872, 1.442695
          %v2874 = vpow.pop %v2873
          %s2875 = scalar_lea.vmem [#allocation3], 40
          %v2876 = vld [vmem:[%s2875] sm:$0xff]
          %v2877 = vmul.f32 %v2866, %v2876
          %v2878 = vsel %vm2186, %v2874, 0.0
          %2879 = vadd.xlane.f32.xlu0 %v2878
          %v2880 = vpop.xlane.xlu0 %2879
          %v2881 = vadd.f32 %v2877, %v2880
          %2882 = vst.msk [vmem:[%s2875] sm:$0xff] %vm967, %v2881
          %s2883 = scalar_lea.vmem [#allocation4], 40
          %v2884 = vld [vmem:[%s2883] sm:$0xff]
          %2886 = vset.pattern.permute.xlu0 0
          %2887 = vperm.xlu0 %2886, %v2866
          %v2888 = vpop.permute.xlu0 %2887
          %v2890 = vmul.f32 %v2888, %v2884
          %v2891 = vpack.c.bf16 %v2874, %v2874
          %2893 = vrot.lane.b32.xlu0 %v2132, 64
          %v2894 = vpop.permute.xlu0 %2893
          %v2896 = vsel %vm2186, %v2891, 0
          %v2899 = vsel %vm2220, %v2894, 0
          %2901 = vmatprep.subr.bf16.mxu0 0
          %2902 = vmatpush1.bf16.msra.mxu0 %v2899
          %2903 = vmatprep.subr.bf16.mxu0 0
          %2904 = vmatpush1.bf16.msra.mxu0 0
          %2905 = vmatprep.subr.bf16.mxu0 0
          %2906 = vmatpush1.bf16.msra.mxu0 0
          %2907 = vmatprep.subr.bf16.mxu0 0
          %2908 = vmatpush1.bf16.msra.mxu0 0
          %2909 = vmatprep.subr.bf16.mxu0 0
          %2910 = vmatpush1.bf16.msra.mxu0 0
          %2911 = vmatprep.subr.bf16.mxu0 0
          %2912 = vmatpush1.bf16.msra.mxu0 0
          %2913 = vmatprep.subr.bf16.mxu0 0
          %2914 = vmatpush1.bf16.msra.mxu0 0
          %2915 = vmatprep.subr.bf16.mxu0 0
          %2916 = vmatpush1.bf16.msra.mxu0 0
          %2917 = vmatprep.subr.bf16.mxu0 0
          %2918 = vmatpush1.bf16.msra.mxu0 0
          %2919 = vmatprep.subr.bf16.mxu0 0
          %2920 = vmatpush1.bf16.msra.mxu0 0
          %2921 = vmatprep.subr.bf16.mxu0 0
          %2922 = vmatpush1.bf16.msra.mxu0 0
          %2923 = vmatprep.subr.bf16.mxu0 0
          %2924 = vmatpush1.bf16.msra.mxu0 0
          %2925 = vmatprep.subr.bf16.mxu0 0
          %2926 = vmatpush1.bf16.msra.mxu0 0
          %2927 = vmatprep.subr.bf16.mxu0 0
          %2928 = vmatpush1.bf16.msra.mxu0 0
          %2929 = vmatprep.subr.bf16.mxu0 0
          %2930 = vmatpush1.bf16.msra.mxu0 0
          %2931 = vmatprep.subr.bf16.mxu0 0
          %2932 = vmatpush1.bf16.msra.mxu0 0
          %2933 = vmatprep.mubr.bf16.mxu0 0
          %2934 = vmatmul.mubr.bf16.gmra.mrb[0].mxu0 %v2896
          %v2935 = vpop.f32.mrb[0].mxu0
          %v2936 = vadd.f32 0.0, %v2935
          %v2937 = vpop.f32.mrb[0].mxu0
          %v2938 = vpop.f32.mrb[0].mxu0
          %v2939 = vpop.f32.mrb[0].mxu0
          %2940 = vdwg.mxu0
          %v2941 = vadd.f32 %v2890, %v2936
          %2942 = vst.msk [vmem:[%s2883] sm:$0xff] %vm980, %v2941
          %2943 = vst.msk [vmem:[%s2858] sm:$0xff] %vm967, %v2863
        $region61: #{tpu_custom_call.1} parent=39 // loop_footer
          %s995 = sadd.s32 %s993, 1
        $region62: #{tpu_custom_call.1} parent=39 // loop_footer_branch
          %992 = sbr.rel target = $region58
        $region63: #{tpu_custom_call.1} parent=39 // loop_exit
          _
        %v2944 = vld [vmem:[#allocation3] sm:$0xff]
        %v2945 = vrcp.pop %v2944
        %v2946 = vld [vmem:[#allocation4] sm:$0xff]
        %2948 = vset.pattern.permute.xlu0 0
        %2949 = vperm.xlu0 %2948, %v2945
        %v2950 = vpop.permute.xlu0 %2949
        %v2952 = vmul.f32 %v2946, %v2950
        %v2953 = vpack.c.bf16 %v2952, %v2952
        %vm2954 = vcmask 519168
        %2955 = vst.msk [vmem:[#allocation5] sm:$0xf] %vm2954, %v2953
        %s2956 = scalar_lea.vmem [#allocation3], 8
        %v2957 = vld [vmem:[%s2956] sm:$0xff]
        %v2958 = vrcp.pop %v2957
        %s2959 = scalar_lea.vmem [#allocation4], 8
        %v2960 = vld [vmem:[%s2959] sm:$0xff]
        %2962 = vset.pattern.permute.xlu0 0
        %2963 = vperm.xlu0 %2962, %v2958
        %v2964 = vpop.permute.xlu0 %2963
        %v2966 = vmul.f32 %v2960, %v2964
        %v2967 = vpack.c.bf16 %v2966, %v2966
        %v2969 = vunpack.c.l.b16 %v2967
        %v2970 = vpack.c.b16 %v2969, %v2969
        %2971 = vrot.lane.b32.xlu0 %v2970, 64
        %v2972 = vpop.permute.xlu0 %2971
        %vm2974 = vcmask 1043968
        %2975 = vst.msk [vmem:[#allocation5] sm:$0xf] %vm2974, %v2972
        %s2976 = scalar_lea.vmem [#allocation3], 16
        %v2977 = vld [vmem:[%s2976] sm:$0xff]
        %v2978 = vrcp.pop %v2977
        %s2979 = scalar_lea.vmem [#allocation4], 16
        %v2980 = vld [vmem:[%s2979] sm:$0xff]
        %2982 = vset.pattern.permute.xlu0 0
        %2983 = vperm.xlu0 %2982, %v2978
        %v2984 = vpop.permute.xlu0 %2983
        %v2986 = vmul.f32 %v2980, %v2984
        %v2987 = vpack.c.bf16 %v2986, %v2986
        %2988 = vst.msk [vmem:[#allocation5 + $0x4] sm:$0xf] %vm2954, %v2987
        %s2989 = scalar_lea.vmem [#allocation3], 24
        %v2990 = vld [vmem:[%s2989] sm:$0xff]
        %v2991 = vrcp.pop %v2990
        %s2992 = scalar_lea.vmem [#allocation4], 24
        %v2993 = vld [vmem:[%s2992] sm:$0xff]
        %2995 = vset.pattern.permute.xlu0 0
        %2996 = vperm.xlu0 %2995, %v2991
        %v2997 = vpop.permute.xlu0 %2996
        %v2999 = vmul.f32 %v2993, %v2997
        %v3000 = vpack.c.bf16 %v2999, %v2999
        %v3002 = vunpack.c.l.b16 %v3000
        %v3003 = vpack.c.b16 %v3002, %v3002
        %3004 = vrot.lane.b32.xlu0 %v3003, 64
        %v3005 = vpop.permute.xlu0 %3004
        %3007 = vst.msk [vmem:[#allocation5 + $0x4] sm:$0xf] %vm2974, %v3005
        %s3008 = scalar_lea.vmem [#allocation3], 32
        %v3009 = vld [vmem:[%s3008] sm:$0xff]
        %v3010 = vrcp.pop %v3009
        %s3011 = scalar_lea.vmem [#allocation4], 32
        %v3012 = vld [vmem:[%s3011] sm:$0xff]
        %3014 = vset.pattern.permute.xlu0 0
        %3015 = vperm.xlu0 %3014, %v3010
        %v3016 = vpop.permute.xlu0 %3015
        %v3018 = vmul.f32 %v3012, %v3016
        %v3019 = vpack.c.bf16 %v3018, %v3018
        %3020 = vst.msk [vmem:[#allocation5 + $0x8] sm:$0xf] %vm2954, %v3019
        %s3021 = scalar_lea.vmem [#allocation3], 40
        %v3022 = vld [vmem:[%s3021] sm:$0xff]
        %v3023 = vrcp.pop %v3022
        %s3024 = scalar_lea.vmem [#allocation4], 40
        %v3025 = vld [vmem:[%s3024] sm:$0xff]
        %3027 = vset.pattern.permute.xlu0 0
        %3028 = vperm.xlu0 %3027, %v3023
        %v3029 = vpop.permute.xlu0 %3028
        %v3031 = vmul.f32 %v3025, %v3029
        %v3032 = vpack.c.bf16 %v3031, %v3031
        %v3034 = vunpack.c.l.b16 %v3032
        %v3035 = vpack.c.b16 %v3034, %v3034
        %3036 = vrot.lane.b32.xlu0 %v3035, 64
        %v3037 = vpop.permute.xlu0 %3036
        %3039 = vst.msk [vmem:[#allocation5 + $0x8] sm:$0xf] %vm2974, %v3037
        %v3040 = vld [vmem:[#allocation5] sm:$0xff]
        %v3041 = vld [vmem:[#allocation5 + $0x8] sm:$0xf]
        %v3042 = vld [vmem:[#allocation12] sm:$0xff]
        %v3043 = vld [vmem:[#allocation12 + $0x8] sm:$0xf]
        %v3044 = vld [vmem:[#allocation12 + $0xc] sm:$0xff]
        %v3045 = vld [vmem:[#allocation12 + $0x14] sm:$0xf]
        %v3046 = vld [vmem:[#allocation12 + $0x18] sm:$0xff]
        %v3047 = vld [vmem:[#allocation12 + $0x20] sm:$0xf]
        %v3048 = vld [vmem:[#allocation12 + $0x24] sm:$0xff]
        %v3049 = vld [vmem:[#allocation12 + $0x2c] sm:$0xf]
        %v3050 = vld [vmem:[#allocation12 + $0x30] sm:$0xff]
        %v3051 = vld [vmem:[#allocation12 + $0x38] sm:$0xf]
        %v3052 = vld [vmem:[#allocation12 + $0x3c] sm:$0xff]
        %v3053 = vld [vmem:[#allocation12 + $0x44] sm:$0xf]
        %v3054 = vld [vmem:[#allocation12 + $0x48] sm:$0xff]
        %v3055 = vld [vmem:[#allocation12 + $0x50] sm:$0xf]
        %v3056 = vld [vmem:[#allocation12 + $0x54] sm:$0xff]
        %v3057 = vld [vmem:[#allocation12 + $0x5c] sm:$0xf]
        %v3058 = vld [vmem:[#allocation12 + $0x60] sm:$0xff]
        %v3059 = vld [vmem:[#allocation12 + $0x68] sm:$0xf]
        %v3060 = vld [vmem:[#allocation12 + $0x6c] sm:$0xff]
        %v3061 = vld [vmem:[#allocation12 + $0x74] sm:$0xf]
        %v3062 = vld [vmem:[#allocation12 + $0x78] sm:$0xff]
        %v3063 = vld [vmem:[#allocation12 + $0x80] sm:$0xf]
        %v3064 = vld [vmem:[#allocation12 + $0x84] sm:$0xff]
        %v3065 = vld [vmem:[#allocation12 + $0x8c] sm:$0xf]
        %v3066 = vld [vmem:[#allocation12 + $0x90] sm:$0xff]
        %v3067 = vld [vmem:[#allocation12 + $0x98] sm:$0xf]
        %v3068 = vld [vmem:[#allocation12 + $0x9c] sm:$0xff]
        %v3069 = vld [vmem:[#allocation12 + $0xa4] sm:$0xf]
        %v3070 = vld [vmem:[#allocation12 + $0xa8] sm:$0xff]
        %v3071 = vld [vmem:[#allocation12 + $0xb0] sm:$0xf]
        %v3072 = vld [vmem:[#allocation12 + $0xb4] sm:$0xff]
        %v3073 = vld [vmem:[#allocation12 + $0xbc] sm:$0xf]
        %v3074 = vld [vmem:[#allocation12 + $0xc0] sm:$0xff]
        %v3075 = vld [vmem:[#allocation12 + $0xc8] sm:$0xf]
        %v3076 = vld [vmem:[#allocation12 + $0xcc] sm:$0xff]
        %v3077 = vld [vmem:[#allocation12 + $0xd4] sm:$0xf]
        %v3078 = vld [vmem:[#allocation12 + $0xd8] sm:$0xff]
        %v3079 = vld [vmem:[#allocation12 + $0xe0] sm:$0xf]
        %v3080 = vld [vmem:[#allocation12 + $0xe4] sm:$0xff]
        %v3081 = vld [vmem:[#allocation12 + $0xec] sm:$0xf]
        %v3082 = vld [vmem:[#allocation12 + $0xf0] sm:$0xff]
        %v3083 = vld [vmem:[#allocation12 + $0xf8] sm:$0xf]
        %v3084 = vld [vmem:[#allocation12 + $0xfc] sm:$0xff]
        %v3085 = vld [vmem:[#allocation12 + $0x104] sm:$0xf]
        %v3086 = vld [vmem:[#allocation12 + $0x108] sm:$0xff]
        %v3087 = vld [vmem:[#allocation12 + $0x110] sm:$0xf]
        %v3088 = vld [vmem:[#allocation12 + $0x114] sm:$0xff]
        %v3089 = vld [vmem:[#allocation12 + $0x11c] sm:$0xf]
        %v3090 = vld [vmem:[#allocation12 + $0x120] sm:$0xff]
        %v3091 = vld [vmem:[#allocation12 + $0x128] sm:$0xf]
        %v3092 = vld [vmem:[#allocation12 + $0x12c] sm:$0xff]
        %v3093 = vld [vmem:[#allocation12 + $0x134] sm:$0xf]
        %v3094 = vld [vmem:[#allocation12 + $0x138] sm:$0xff]
        %v3095 = vld [vmem:[#allocation12 + $0x140] sm:$0xf]
        %v3096 = vld [vmem:[#allocation12 + $0x144] sm:$0xff]
        %v3097 = vld [vmem:[#allocation12 + $0x14c] sm:$0xf]
        %v3098 = vld [vmem:[#allocation12 + $0x150] sm:$0xff]
        %v3099 = vld [vmem:[#allocation12 + $0x158] sm:$0xf]
        %v3100 = vld [vmem:[#allocation12 + $0x15c] sm:$0xff]
        %v3101 = vld [vmem:[#allocation12 + $0x164] sm:$0xf]
        %v3102 = vld [vmem:[#allocation12 + $0x168] sm:$0xff]
        %v3103 = vld [vmem:[#allocation12 + $0x170] sm:$0xf]
        %v3104 = vld [vmem:[#allocation12 + $0x174] sm:$0xff]
        %v3105 = vld [vmem:[#allocation12 + $0x17c] sm:$0xf]
        %v3106 = vld [vmem:[#allocation12 + $0x180] sm:$0xff]
        %v3107 = vld [vmem:[#allocation12 + $0x188] sm:$0xf]
        %v3108 = vld [vmem:[#allocation12 + $0x18c] sm:$0xff]
        %v3109 = vld [vmem:[#allocation12 + $0x194] sm:$0xf]
        %v3110 = vld [vmem:[#allocation12 + $0x198] sm:$0xff]
        %v3111 = vld [vmem:[#allocation12 + $0x1a0] sm:$0xf]
        %v3112 = vld [vmem:[#allocation12 + $0x1a4] sm:$0xff]
        %v3113 = vld [vmem:[#allocation12 + $0x1ac] sm:$0xf]
        %v3114 = vld [vmem:[#allocation12 + $0x1b0] sm:$0xff]
        %v3115 = vld [vmem:[#allocation12 + $0x1b8] sm:$0xf]
        %v3116 = vld [vmem:[#allocation12 + $0x1bc] sm:$0xff]
        %v3117 = vld [vmem:[#allocation12 + $0x1c4] sm:$0xf]
        %v3118 = vld [vmem:[#allocation12 + $0x1c8] sm:$0xff]
        %v3119 = vld [vmem:[#allocation12 + $0x1d0] sm:$0xf]
        %v3120 = vld [vmem:[#allocation12 + $0x1d4] sm:$0xff]
        %v3121 = vld [vmem:[#allocation12 + $0x1dc] sm:$0xf]
        %v3122 = vld [vmem:[#allocation12 + $0x1e0] sm:$0xff]
        %v3123 = vld [vmem:[#allocation12 + $0x1e8] sm:$0xf]
        %v3124 = vld [vmem:[#allocation12 + $0x1ec] sm:$0xff]
        %v3125 = vld [vmem:[#allocation12 + $0x1f4] sm:$0xf]
        %v3126 = vld [vmem:[#allocation12 + $0x1f8] sm:$0xff]
        %v3127 = vld [vmem:[#allocation12 + $0x200] sm:$0xf]
        %v3128 = vld [vmem:[#allocation12 + $0x204] sm:$0xff]
        %v3129 = vld [vmem:[#allocation12 + $0x20c] sm:$0xf]
        %v3130 = vld [vmem:[#allocation12 + $0x210] sm:$0xff]
        %v3131 = vld [vmem:[#allocation12 + $0x218] sm:$0xf]
        %v3132 = vld [vmem:[#allocation12 + $0x21c] sm:$0xff]
        %v3133 = vld [vmem:[#allocation12 + $0x224] sm:$0xf]
        %v3134 = vld [vmem:[#allocation12 + $0x228] sm:$0xff]
        %v3135 = vld [vmem:[#allocation12 + $0x230] sm:$0xf]
        %v3136 = vld [vmem:[#allocation12 + $0x234] sm:$0xff]
        %v3137 = vld [vmem:[#allocation12 + $0x23c] sm:$0xf]
        %v3138 = vld [vmem:[%s4] sm:$0x7]
        %v3140 = vlaneseq
        %v3141 = vshrl.u32 %v3140, 7
        %v3142 = vsub.s32 0, %v3141
        %v3143 = vrot.slane %v3138, %v3142
        %v3144 = vlaneseq
        %v3145 = vshrl.u32 %v3144, 7
        %v3146 = vsub.s32 1, %v3145
        %v3147 = vrot.slane %v3138, %v3146
        %v3148 = vlaneseq
        %v3149 = vshrl.u32 %v3148, 7
        %v3150 = vsub.s32 2, %v3149
        %v3151 = vrot.slane %v3138, %v3150
        %v3157 = vunpack.c.l.b16 %v3040
        %v3158 = vunpack.c.h.b16 %v3040
        %v3159 = vunpack.c.l.b16 %v3041
        %v3160 = vpack.c.b16 %v3157, %v3157
        %v3161 = vpack.c.b16 %v3158, %v3158
        %v3162 = vpack.c.b16 %v3159, %v3159
        %v3262 = vunpack.c.l.b16 %v3042
        %v3263 = vunpack.c.h.b16 %v3042
        %v3264 = vunpack.c.l.b16 %v3043
        %v3265 = vunpack.c.l.b16 %v3044
        %v3266 = vunpack.c.h.b16 %v3044
        %v3267 = vunpack.c.l.b16 %v3045
        %v3268 = vunpack.c.l.b16 %v3046
        %v3269 = vunpack.c.h.b16 %v3046
        %v3270 = vunpack.c.l.b16 %v3047
        %v3271 = vunpack.c.l.b16 %v3048
        %v3272 = vunpack.c.h.b16 %v3048
        %v3273 = vunpack.c.l.b16 %v3049
        %v3274 = vunpack.c.l.b16 %v3050
        %v3275 = vunpack.c.h.b16 %v3050
        %v3276 = vunpack.c.l.b16 %v3051
        %v3277 = vunpack.c.l.b16 %v3052
        %v3278 = vunpack.c.h.b16 %v3052
        %v3279 = vunpack.c.l.b16 %v3053
        %v3280 = vunpack.c.l.b16 %v3054
        %v3281 = vunpack.c.h.b16 %v3054
        %v3282 = vunpack.c.l.b16 %v3055
        %v3283 = vunpack.c.l.b16 %v3056
        %v3284 = vunpack.c.h.b16 %v3056
        %v3285 = vunpack.c.l.b16 %v3057
        %v3286 = vunpack.c.l.b16 %v3058
        %v3287 = vunpack.c.h.b16 %v3058
        %v3288 = vunpack.c.l.b16 %v3059
        %v3289 = vunpack.c.l.b16 %v3060
        %v3290 = vunpack.c.h.b16 %v3060
        %v3291 = vunpack.c.l.b16 %v3061
        %v3292 = vunpack.c.l.b16 %v3062
        %v3293 = vunpack.c.h.b16 %v3062
        %v3294 = vunpack.c.l.b16 %v3063
        %v3295 = vunpack.c.l.b16 %v3064
        %v3296 = vunpack.c.h.b16 %v3064
        %v3297 = vunpack.c.l.b16 %v3065
        %v3298 = vunpack.c.l.b16 %v3066
        %v3299 = vunpack.c.h.b16 %v3066
        %v3300 = vunpack.c.l.b16 %v3067
        %v3301 = vunpack.c.l.b16 %v3068
        %v3302 = vunpack.c.h.b16 %v3068
        %v3303 = vunpack.c.l.b16 %v3069
        %v3304 = vunpack.c.l.b16 %v3070
        %v3305 = vunpack.c.h.b16 %v3070
        %v3306 = vunpack.c.l.b16 %v3071
        %v3307 = vunpack.c.l.b16 %v3072
        %v3308 = vunpack.c.h.b16 %v3072
        %v3309 = vunpack.c.l.b16 %v3073
        %v3310 = vunpack.c.l.b16 %v3074
        %v3311 = vunpack.c.h.b16 %v3074
        %v3312 = vunpack.c.l.b16 %v3075
        %v3313 = vunpack.c.l.b16 %v3076
        %v3314 = vunpack.c.h.b16 %v3076
        %v3315 = vunpack.c.l.b16 %v3077
        %v3316 = vunpack.c.l.b16 %v3078
        %v3317 = vunpack.c.h.b16 %v3078
        %v3318 = vunpack.c.l.b16 %v3079
        %v3319 = vunpack.c.l.b16 %v3080
        %v3320 = vunpack.c.h.b16 %v3080
        %v3321 = vunpack.c.l.b16 %v3081
        %v3322 = vunpack.c.l.b16 %v3082
        %v3323 = vunpack.c.h.b16 %v3082
        %v3324 = vunpack.c.l.b16 %v3083
        %v3325 = vunpack.c.l.b16 %v3084
        %v3326 = vunpack.c.h.b16 %v3084
        %v3327 = vunpack.c.l.b16 %v3085
        %v3328 = vunpack.c.l.b16 %v3086
        %v3329 = vunpack.c.h.b16 %v3086
        %v3330 = vunpack.c.l.b16 %v3087
        %v3331 = vunpack.c.l.b16 %v3088
        %v3332 = vunpack.c.h.b16 %v3088
        %v3333 = vunpack.c.l.b16 %v3089
        %v3334 = vunpack.c.l.b16 %v3090
        %v3335 = vunpack.c.h.b16 %v3090
        %v3336 = vunpack.c.l.b16 %v3091
        %v3337 = vunpack.c.l.b16 %v3092
        %v3338 = vunpack.c.h.b16 %v3092
        %v3339 = vunpack.c.l.b16 %v3093
        %v3340 = vunpack.c.l.b16 %v3094
        %v3341 = vunpack.c.h.b16 %v3094
        %v3342 = vunpack.c.l.b16 %v3095
        %v3343 = vunpack.c.l.b16 %v3096
        %v3344 = vunpack.c.h.b16 %v3096
        %v3345 = vunpack.c.l.b16 %v3097
        %v3346 = vunpack.c.l.b16 %v3098
        %v3347 = vunpack.c.h.b16 %v3098
        %v3348 = vunpack.c.l.b16 %v3099
        %v3349 = vunpack.c.l.b16 %v3100
        %v3350 = vunpack.c.h.b16 %v3100
        %v3351 = vunpack.c.l.b16 %v3101
        %v3352 = vunpack.c.l.b16 %v3102
        %v3353 = vunpack.c.h.b16 %v3102
        %v3354 = vunpack.c.l.b16 %v3103
        %v3355 = vunpack.c.l.b16 %v3104
        %v3356 = vunpack.c.h.b16 %v3104
        %v3357 = vunpack.c.l.b16 %v3105
        %v3358 = vunpack.c.l.b16 %v3106
        %v3359 = vunpack.c.h.b16 %v3106
        %v3360 = vunpack.c.l.b16 %v3107
        %v3361 = vunpack.c.l.b16 %v3108
        %v3362 = vunpack.c.h.b16 %v3108
        %v3363 = vunpack.c.l.b16 %v3109
        %v3364 = vunpack.c.l.b16 %v3110
        %v3365 = vunpack.c.h.b16 %v3110
        %v3366 = vunpack.c.l.b16 %v3111
        %v3367 = vunpack.c.l.b16 %v3112
        %v3368 = vunpack.c.h.b16 %v3112
        %v3369 = vunpack.c.l.b16 %v3113
        %v3370 = vunpack.c.l.b16 %v3114
        %v3371 = vunpack.c.h.b16 %v3114
        %v3372 = vunpack.c.l.b16 %v3115
        %v3373 = vunpack.c.l.b16 %v3116
        %v3374 = vunpack.c.h.b16 %v3116
        %v3375 = vunpack.c.l.b16 %v3117
        %v3376 = vunpack.c.l.b16 %v3118
        %v3377 = vunpack.c.h.b16 %v3118
        %v3378 = vunpack.c.l.b16 %v3119
        %v3379 = vunpack.c.l.b16 %v3120
        %v3380 = vunpack.c.h.b16 %v3120
        %v3381 = vunpack.c.l.b16 %v3121
        %v3382 = vunpack.c.l.b16 %v3122
        %v3383 = vunpack.c.h.b16 %v3122
        %v3384 = vunpack.c.l.b16 %v3123
        %v3385 = vunpack.c.l.b16 %v3124
        %v3386 = vunpack.c.h.b16 %v3124
        %v3387 = vunpack.c.l.b16 %v3125
        %v3388 = vunpack.c.l.b16 %v3126
        %v3389 = vunpack.c.h.b16 %v3126
        %v3390 = vunpack.c.l.b16 %v3127
        %v3391 = vunpack.c.l.b16 %v3128
        %v3392 = vunpack.c.h.b16 %v3128
        %v3393 = vunpack.c.l.b16 %v3129
        %v3394 = vunpack.c.l.b16 %v3130
        %v3395 = vunpack.c.h.b16 %v3130
        %v3396 = vunpack.c.l.b16 %v3131
        %v3397 = vunpack.c.l.b16 %v3132
        %v3398 = vunpack.c.h.b16 %v3132
        %v3399 = vunpack.c.l.b16 %v3133
        %v3400 = vunpack.c.l.b16 %v3134
        %v3401 = vunpack.c.h.b16 %v3134
        %v3402 = vunpack.c.l.b16 %v3135
        %v3403 = vunpack.c.l.b16 %v3136
        %v3404 = vunpack.c.h.b16 %v3136
        %v3405 = vunpack.c.l.b16 %v3137
        %v3406 = vpack.c.b16 %v3265, %v3262
        %v3407 = vpack.c.b16 %v3266, %v3263
        %v3408 = vpack.c.b16 %v3267, %v3264
        %v3409 = vpack.c.b16 %v3271, %v3268
        %v3410 = vpack.c.b16 %v3272, %v3269
        %v3411 = vpack.c.b16 %v3273, %v3270
        %v3412 = vpack.c.b16 %v3277, %v3274
        %v3413 = vpack.c.b16 %v3278, %v3275
        %v3414 = vpack.c.b16 %v3279, %v3276
        %v3415 = vpack.c.b16 %v3283, %v3280
        %v3416 = vpack.c.b16 %v3284, %v3281
        %v3417 = vpack.c.b16 %v3285, %v3282
        %v3418 = vpack.c.b16 %v3289, %v3286
        %v3419 = vpack.c.b16 %v3290, %v3287
        %v3420 = vpack.c.b16 %v3291, %v3288
        %v3421 = vpack.c.b16 %v3295, %v3292
        %v3422 = vpack.c.b16 %v3296, %v3293
        %v3423 = vpack.c.b16 %v3297, %v3294
        %v3424 = vpack.c.b16 %v3301, %v3298
        %v3425 = vpack.c.b16 %v3302, %v3299
        %v3426 = vpack.c.b16 %v3303, %v3300
        %v3427 = vpack.c.b16 %v3307, %v3304
        %v3428 = vpack.c.b16 %v3308, %v3305
        %v3429 = vpack.c.b16 %v3309, %v3306
        %v3430 = vpack.c.b16 %v3313, %v3310
        %v3431 = vpack.c.b16 %v3314, %v3311
        %v3432 = vpack.c.b16 %v3315, %v3312
        %v3433 = vpack.c.b16 %v3319, %v3316
        %v3434 = vpack.c.b16 %v3320, %v3317
        %v3435 = vpack.c.b16 %v3321, %v3318
        %v3436 = vpack.c.b16 %v3325, %v3322
        %v3437 = vpack.c.b16 %v3326, %v3323
        %v3438 = vpack.c.b16 %v3327, %v3324
        %v3439 = vpack.c.b16 %v3331, %v3328
        %v3440 = vpack.c.b16 %v3332, %v3329
        %v3441 = vpack.c.b16 %v3333, %v3330
        %v3442 = vpack.c.b16 %v3337, %v3334
        %v3443 = vpack.c.b16 %v3338, %v3335
        %v3444 = vpack.c.b16 %v3339, %v3336
        %v3445 = vpack.c.b16 %v3343, %v3340
        %v3446 = vpack.c.b16 %v3344, %v3341
        %v3447 = vpack.c.b16 %v3345, %v3342
        %v3448 = vpack.c.b16 %v3349, %v3346
        %v3449 = vpack.c.b16 %v3350, %v3347
        %v3450 = vpack.c.b16 %v3351, %v3348
        %v3451 = vpack.c.b16 %v3355, %v3352
        %v3452 = vpack.c.b16 %v3356, %v3353
        %v3453 = vpack.c.b16 %v3357, %v3354
        %v3454 = vpack.c.b16 %v3361, %v3358
        %v3455 = vpack.c.b16 %v3362, %v3359
        %v3456 = vpack.c.b16 %v3363, %v3360
        %v3457 = vpack.c.b16 %v3367, %v3364
        %v3458 = vpack.c.b16 %v3368, %v3365
        %v3459 = vpack.c.b16 %v3369, %v3366
        %v3460 = vpack.c.b16 %v3373, %v3370
        %v3461 = vpack.c.b16 %v3374, %v3371
        %v3462 = vpack.c.b16 %v3375, %v3372
        %v3463 = vpack.c.b16 %v3379, %v3376
        %v3464 = vpack.c.b16 %v3380, %v3377
        %v3465 = vpack.c.b16 %v3381, %v3378
        %v3466 = vpack.c.b16 %v3385, %v3382
        %v3467 = vpack.c.b16 %v3386, %v3383
        %v3468 = vpack.c.b16 %v3387, %v3384
        %v3469 = vpack.c.b16 %v3391, %v3388
        %v3470 = vpack.c.b16 %v3392, %v3389
        %v3471 = vpack.c.b16 %v3393, %v3390
        %v3472 = vpack.c.b16 %v3397, %v3394
        %v3473 = vpack.c.b16 %v3398, %v3395
        %v3474 = vpack.c.b16 %v3399, %v3396
        %v3475 = vpack.c.b16 %v3403, %v3400
        %v3476 = vpack.c.b16 %v3404, %v3401
        %v3477 = vpack.c.b16 %v3405, %v3402
        %3550 = vmatprep.subr.bf16.mxu0 %v3407
        %3551 = vmatpush1.bf16.msra.mxu0 %v3406
        %3552 = vmatprep.subr.bf16.mxu0 %v3410
        %3553 = vmatpush1.bf16.msra.mxu0 %v3409
        %3554 = vmatprep.subr.bf16.mxu0 %v3413
        %3555 = vmatpush1.bf16.msra.mxu0 %v3412
        %3556 = vmatprep.subr.bf16.mxu0 %v3416
        %3557 = vmatpush1.bf16.msra.mxu0 %v3415
        %3558 = vmatprep.subr.bf16.mxu0 %v3419
        %3559 = vmatpush1.bf16.msra.mxu0 %v3418
        %3560 = vmatprep.subr.bf16.mxu0 %v3422
        %3561 = vmatpush1.bf16.msra.mxu0 %v3421
        %3562 = vmatprep.subr.bf16.mxu0 %v3425
        %3563 = vmatpush1.bf16.msra.mxu0 %v3424
        %3564 = vmatprep.subr.bf16.mxu0 %v3428
        %3565 = vmatpush1.bf16.msra.mxu0 %v3427
        %3566 = vmatprep.subr.bf16.mxu0 %v3431
        %3567 = vmatpush1.bf16.msra.mxu0 %v3430
        %3568 = vmatprep.subr.bf16.mxu0 %v3434
        %3569 = vmatpush1.bf16.msra.mxu0 %v3433
        %3570 = vmatprep.subr.bf16.mxu0 %v3437
        %3571 = vmatpush1.bf16.msra.mxu0 %v3436
        %3572 = vmatprep.subr.bf16.mxu0 %v3440
        %3573 = vmatpush1.bf16.msra.mxu0 %v3439
        %3574 = vmatprep.subr.bf16.mxu0 %v3443
        %3575 = vmatpush1.bf16.msra.mxu0 %v3442
        %3576 = vmatprep.subr.bf16.mxu0 %v3446
        %3577 = vmatpush1.bf16.msra.mxu0 %v3445
        %3578 = vmatprep.subr.bf16.mxu0 %v3449
        %3579 = vmatpush1.bf16.msra.mxu0 %v3448
        %3580 = vmatprep.subr.bf16.mxu0 %v3452
        %3581 = vmatpush1.bf16.msra.mxu0 %v3451
        %3582 = vmatprep.mubr.bf16.mxu0 %v3161
        %3583 = vmatmul.mubr.bf16.gmra.mrb[0].mxu0 %v3160
        %v3584 = vpop.f32.mrb[0].mxu0
        %v3585 = vadd.f32 %v3143, %v3584
        %v3586 = vpop.f32.mrb[0].mxu0
        %v3587 = vadd.f32 %v3147, %v3586
        %v3588 = vpop.f32.mrb[0].mxu0
        %v3589 = vpop.f32.mrb[0].mxu0
        %3590 = vdwg.mxu0
        %3591 = vmatprep.subr.bf16.mxu0 %v3455
        %3592 = vmatpush1.bf16.msra.mxu0 %v3454
        %3593 = vmatprep.subr.bf16.mxu0 %v3458
        %3594 = vmatpush1.bf16.msra.mxu0 %v3457
        %3595 = vmatprep.subr.bf16.mxu0 %v3461
        %3596 = vmatpush1.bf16.msra.mxu0 %v3460
        %3597 = vmatprep.subr.bf16.mxu0 %v3464
        %3598 = vmatpush1.bf16.msra.mxu0 %v3463
        %3599 = vmatprep.subr.bf16.mxu0 %v3467
        %3600 = vmatpush1.bf16.msra.mxu0 %v3466
        %3601 = vmatprep.subr.bf16.mxu0 %v3470
        %3602 = vmatpush1.bf16.msra.mxu0 %v3469
        %3603 = vmatprep.subr.bf16.mxu0 %v3473
        %3604 = vmatpush1.bf16.msra.mxu0 %v3472
        %3605 = vmatprep.subr.bf16.mxu0 %v3476
        %3606 = vmatpush1.bf16.msra.mxu0 %v3475
        %3607 = vmatprep.subr.bf16.mxu0 0
        %3608 = vmatpush1.bf16.msra.mxu0 0
        %3609 = vmatprep.subr.bf16.mxu0 0
        %3610 = vmatpush1.bf16.msra.mxu0 0
        %3611 = vmatprep.subr.bf16.mxu0 0
        %3612 = vmatpush1.bf16.msra.mxu0 0
        %3613 = vmatprep.subr.bf16.mxu0 0
        %3614 = vmatpush1.bf16.msra.mxu0 0
        %3615 = vmatprep.subr.bf16.mxu0 0
        %3616 = vmatpush1.bf16.msra.mxu0 0
        %3617 = vmatprep.subr.bf16.mxu0 0
        %3618 = vmatpush1.bf16.msra.mxu0 0
        %3619 = vmatprep.subr.bf16.mxu0 0
        %3620 = vmatpush1.bf16.msra.mxu0 0
        %3621 = vmatprep.subr.bf16.mxu0 0
        %3622 = vmatpush1.bf16.msra.mxu0 0
        %3623 = vmatprep.mubr.bf16.mxu0 0
        %3624 = vmatmul.mubr.bf16.gmra.mrb[0].mxu0 %v3162
        %v3625 = vpop.f32.mrb[0].mxu0
        %v3626 = vadd.f32 %v3585, %v3625
        %v3627 = vpop.f32.mrb[0].mxu0
        %v3628 = vadd.f32 %v3587, %v3627
        %v3629 = vpop.f32.mrb[0].mxu0
        %v3630 = vpop.f32.mrb[0].mxu0
        %3631 = vdwg.mxu0
        %3632 = vmatprep.subr.bf16.mxu0 0
        %3633 = vmatpush1.bf16.msra.mxu0 %v3408
        %3634 = vmatprep.subr.bf16.mxu0 0
        %3635 = vmatpush1.bf16.msra.mxu0 %v3411
        %3636 = vmatprep.subr.bf16.mxu0 0
        %3637 = vmatpush1.bf16.msra.mxu0 %v3414
        %3638 = vmatprep.subr.bf16.mxu0 0
        %3639 = vmatpush1.bf16.msra.mxu0 %v3417
        %3640 = vmatprep.subr.bf16.mxu0 0
        %3641 = vmatpush1.bf16.msra.mxu0 %v3420
        %3642 = vmatprep.subr.bf16.mxu0 0
        %3643 = vmatpush1.bf16.msra.mxu0 %v3423
        %3644 = vmatprep.subr.bf16.mxu0 0
        %3645 = vmatpush1.bf16.msra.mxu0 %v3426
        %3646 = vmatprep.subr.bf16.mxu0 0
        %3647 = vmatpush1.bf16.msra.mxu0 %v3429
        %3648 = vmatprep.subr.bf16.mxu0 0
        %3649 = vmatpush1.bf16.msra.mxu0 %v3432
        %3650 = vmatprep.subr.bf16.mxu0 0
        %3651 = vmatpush1.bf16.msra.mxu0 %v3435
        %3652 = vmatprep.subr.bf16.mxu0 0
        %3653 = vmatpush1.bf16.msra.mxu0 %v3438
        %3654 = vmatprep.subr.bf16.mxu0 0
        %3655 = vmatpush1.bf16.msra.mxu0 %v3441
        %3656 = vmatprep.subr.bf16.mxu0 0
        %3657 = vmatpush1.bf16.msra.mxu0 %v3444
        %3658 = vmatprep.subr.bf16.mxu0 0
        %3659 = vmatpush1.bf16.msra.mxu0 %v3447
        %3660 = vmatprep.subr.bf16.mxu0 0
        %3661 = vmatpush1.bf16.msra.mxu0 %v3450
        %3662 = vmatprep.subr.bf16.mxu0 0
        %3663 = vmatpush1.bf16.msra.mxu0 %v3453
        %3664 = vmatprep.mubr.bf16.mxu0 %v3161
        %3665 = vmatmul.mubr.bf16.gmra.mrb[0].mxu0 %v3160
        %v3666 = vpop.f32.mrb[0].mxu0
        %v3667 = vadd.f32 %v3151, %v3666
        %v3668 = vpop.f32.mrb[0].mxu0
        %v3669 = vpop.f32.mrb[0].mxu0
        %v3670 = vpop.f32.mrb[0].mxu0
        %3671 = vdwg.mxu0
        %3672 = vmatprep.subr.bf16.mxu0 0
        %3673 = vmatpush1.bf16.msra.mxu0 %v3456
        %3674 = vmatprep.subr.bf16.mxu0 0
        %3675 = vmatpush1.bf16.msra.mxu0 %v3459
        %3676 = vmatprep.subr.bf16.mxu0 0
        %3677 = vmatpush1.bf16.msra.mxu0 %v3462
        %3678 = vmatprep.subr.bf16.mxu0 0
        %3679 = vmatpush1.bf16.msra.mxu0 %v3465
        %3680 = vmatprep.subr.bf16.mxu0 0
        %3681 = vmatpush1.bf16.msra.mxu0 %v3468
        %3682 = vmatprep.subr.bf16.mxu0 0
        %3683 = vmatpush1.bf16.msra.mxu0 %v3471
        %3684 = vmatprep.subr.bf16.mxu0 0
        %3685 = vmatpush1.bf16.msra.mxu0 %v3474
        %3686 = vmatprep.subr.bf16.mxu0 0
        %3687 = vmatpush1.bf16.msra.mxu0 %v3477
        %3688 = vmatprep.subr.bf16.mxu0 0
        %3689 = vmatpush1.bf16.msra.mxu0 0
        %3690 = vmatprep.subr.bf16.mxu0 0
        %3691 = vmatpush1.bf16.msra.mxu0 0
        %3692 = vmatprep.subr.bf16.mxu0 0
        %3693 = vmatpush1.bf16.msra.mxu0 0
        %3694 = vmatprep.subr.bf16.mxu0 0
        %3695 = vmatpush1.bf16.msra.mxu0 0
        %3696 = vmatprep.subr.bf16.mxu0 0
        %3697 = vmatpush1.bf16.msra.mxu0 0
        %3698 = vmatprep.subr.bf16.mxu0 0
        %3699 = vmatpush1.bf16.msra.mxu0 0
        %3700 = vmatprep.subr.bf16.mxu0 0
        %3701 = vmatpush1.bf16.msra.mxu0 0
        %3702 = vmatprep.subr.bf16.mxu0 0
        %3703 = vmatpush1.bf16.msra.mxu0 0
        %3704 = vmatprep.mubr.bf16.mxu0 0
        %3705 = vmatmul.mubr.bf16.gmra.mrb[0].mxu0 %v3162
        %v3706 = vpop.f32.mrb[0].mxu0
        %v3707 = vadd.f32 %v3667, %v3706
        %v3708 = vpop.f32.mrb[0].mxu0
        %v3709 = vpop.f32.mrb[0].mxu0
        %v3710 = vpop.f32.mrb[0].mxu0
        %3711 = vdwg.mxu0
        %3712 = vst [vmem:[%s298] sm:$0xff] %v3626
        %3713 = vst [vmem:[%s298 + $0x8] sm:$0xff] %v3628
        %3714 = vst [vmem:[%s298 + $0x10] sm:$0xff] %v3707
        %s3715 = sand.u32 %s156, 1
        %s3716 = scalar_lea.sflag [#allocation8], %s3715
        %s3717 = sand.u32 %s156, 1
        %s3718 = smul.addr %s3717, 24
        %s3719 = scalar_lea.vmem [#allocation14], %s3718
        // Predicated region
        $region64: #{tpu_custom_call.1} parent=39 // pred_check
          %p3720 = pneg %p166
        $region65: #{tpu_custom_call.1} parent=39 // pred_check_branch
          %3722 = sbr.rel (%p3720) target = $region67
        $region66: #{tpu_custom_call.1} parent=39 // pred_region
          %s3724 = ssub.s32 384, 384
          %3725 = vsyncadd %s3716, %s3724
          %s3726 = smul.addr %s29, 3
          %s3727 = smul.addr %s28, 3
          %s3728 = sadd.s32 %s3726, %s3727
          %s3729 = smul.addr %s3728, 128
          %s3730 = scalar_lea.hbm %s5, %s3729
          %s3732 = sshll.u32 %s3719, 4
          %s3733 = int_to_ptr.vmem [resolvable:$true] %s3732
          %3735 = dma.vmem_to_hbm [thread:$0]  %s3733, 384, %s3730, %s3716
        $region67: #{tpu_custom_call.1} parent=39 // pred_fallthru
          _
      $region40: #{tpu_custom_call.1} parent=5 // pred_fallthru
        _
      %p3736 = scmp.le.s32.totalorder 2, %s19
      // Predicated region
      $region68: #{tpu_custom_call.1} parent=5 // pred_check
        %p3737 = pneg %p3736
      $region69: #{tpu_custom_call.1} parent=5 // pred_check_branch
        %3739 = sbr.rel (%p3737) target = $region71
      $region70: #{tpu_custom_call.1} parent=5 // pred_region
        %s3740 = ssub.s32 %s19, 2
        // Predicated region
        $region72: #{tpu_custom_call.1} parent=70 // pred_check
          %p3741 = pneg %p172
        $region73: #{tpu_custom_call.1} parent=70 // pred_check_branch
          %3743 = sbr.rel (%p3741) target = $region75
        $region74: #{tpu_custom_call.1} parent=70 // pred_region
          %s3744 = sand.u32 %s157, 1
          %s3745 = scalar_lea.sflag [#allocation8], %s3744
          %s3746 = sand.u32 %s157, 1
          %s3747 = smul.addr %s3746, 24
          %s3748 = scalar_lea.vmem [#allocation14], %s3747
          %3749 = dma.done %s3745, 384
        $region75: #{tpu_custom_call.1} parent=70 // pred_fallthru
          _
      $region71: #{tpu_custom_call.1} parent=5 // pred_fallthru
        _
    $region6: #{tpu_custom_call.1} parent=1 // loop_footer
      %s23 = sadd.s32 1, %s19
    $region7: #{tpu_custom_call.1} parent=1 // loop_footer_branch
      %18 = sbr.rel target = $region3
    $region8: #{tpu_custom_call.1} parent=1 // loop_exit
      _
    %3750 = vsyncpa [#allocation7], 1
    %s3751 = scalar_lea.sflag [#allocation7], 1
    %3752 = vsyncpa %s3751, 1
    %3753 = vsyncpa [#allocation10], 1
    %3754 = vsyncpa [#allocation13], 1
    %3755 = vsyncpa [#allocation8], 1
    %s3756 = scalar_lea.sflag [#allocation8], 1
    %3757 = vsyncpa %s3756, 1

</llo_original>
